<compile_context>
chip_gen: v7x
topology: tpu7x:2x2x1
jax: 0.10.0
libtpu: 0.0.40
codegen_flags: <defaults>
</compile_context>

<pallas_src>
import functools
import math

import jax
import jax.numpy as jnp
from jax.experimental import pallas as pl
from jax.experimental.pallas import tpu as pltpu


def _round_up(n, m):
    return ((n + m - 1) // m) * m


# ----------------------------- Pallas kernels ------------------------------ #

def _gemm_shift_act_kernel(*refs, apply_relu, has_residual):
    """One (M,N) tile of y = relu?( x @ w + shift (+ residual) ).

    x / w / residual arrive in bf16 (MXU-native); the accumulator, folded-BN
    shift, residual add and ReLU are float32.  BN scale is pre-folded into w.
    """
    if has_residual:
        x_ref, w_ref, shift_ref, res_ref, o_ref = refs
    else:
        x_ref, w_ref, shift_ref, o_ref = refs
        res_ref = None
    acc = jnp.dot(x_ref[...], w_ref[...], preferred_element_type=jnp.float32)
    acc = acc + shift_ref[...]
    if res_ref is not None:
        acc = acc + res_ref[...].astype(jnp.float32)
    if apply_relu:
        acc = jnp.maximum(acc, 0.0)
    o_ref[...] = acc.astype(o_ref.dtype)


def _conv3x3_s1_kernel(*refs, Ho, Wo, C, apply_relu, has_residual):
    """Fused 3x3 / stride-1 / pad-1 conv + BN shift (+residual) + ReLU for one
    (image b, output-channel tile j) grid step.

    x_ref : (1, Ho+2, Wo+2, C) bf16 spatially padded image (whole tile in VMEM)
    w_ref : (Kf, tn)           bf16, rows ordered (dy, dx, cin), Kf >= 9*C
    shift : (1, tn)            f32 folded-BN shift
    res   : (Ho*Wo, tn)        bf16 (optional)
    o_ref : (Ho*Wo, tn)
    The 9 taps are accumulated as 9 MXU matmuls -- no im2col in HBM.
    """
    if has_residual:
        x_ref, w_ref, shift_ref, res_ref, o_ref = refs
    else:
        x_ref, w_ref, shift_ref, o_ref = refs
        res_ref = None
    acc = None
    for dy in range(3):
        for dx in range(3):
            win = x_ref[0, dy:dy + Ho, dx:dx + Wo, :]          # (Ho, Wo, C)
            win2d = win.reshape(Ho * Wo, C)
            tap = dy * 3 + dx
            part = jnp.dot(win2d, w_ref[tap * C:(tap + 1) * C, :],
                           preferred_element_type=jnp.float32)
            acc = part if acc is None else acc + part
    acc = acc + shift_ref[...]
    if res_ref is not None:
        acc = acc + res_ref[...].astype(jnp.float32)
    if apply_relu:
        acc = jnp.maximum(acc, 0.0)
    o_ref[...] = acc.astype(o_ref.dtype)


# ------------------------------ kernel wrappers ----------------------------- #

def matmul_shift_act(x, w, shift, residual=None, *, apply_relu, out_dtype,
                     tm=256):
    """y = relu?( x @ w + shift (+ residual) ), M- and N-tiled GEMM.

    x: (M, K) bf16; w: (K, Np) bf16 (BN scale folded in), Np % 128 == 0;
    shift: (1, Np) f32; residual: (M, Np) bf16 or None.
    tm=256 suits v5e/v7x VMEM; v6e (128 MiB VMEM) can afford tm=512.
    """
    M, K = x.shape
    K2, Np = w.shape
    assert K == K2 and Np % 128 == 0
    if x.dtype != jnp.bfloat16:
        x = x.astype(jnp.bfloat16)
    tm = min(tm, _round_up(M, 8))
    Mp = _round_up(M, tm)
    if Mp != M:
        x = jnp.pad(x, ((0, Mp - M), (0, 0)))
    tn = min(Np, 256)

    args = [x, w, shift]
    in_specs = [
        pl.BlockSpec((tm, K), lambda i, j: (i, 0)),
        pl.BlockSpec((K, tn), lambda i, j: (0, j)),
        pl.BlockSpec((1, tn), lambda i, j: (0, j)),
    ]
    if residual is not None:
        r = residual if residual.dtype == jnp.bfloat16 else residual.astype(jnp.bfloat16)
        if Mp != M:
            r = jnp.pad(r, ((0, Mp - M), (0, 0)))
        args.append(r)
        in_specs.append(pl.BlockSpec((tm, tn), lambda i, j: (i, j)))

    out = pl.pallas_call(
        functools.partial(_gemm_shift_act_kernel, apply_relu=apply_relu,
                          has_residual=residual is not None),
        out_shape=jax.ShapeDtypeStruct((Mp, Np), out_dtype),
        grid=(Mp // tm, Np // tn),
        in_specs=in_specs,
        out_specs=pl.BlockSpec((tm, tn), lambda i, j: (i, j)),
        compiler_params=pltpu.CompilerParams(
            dimension_semantics=("parallel", "parallel")),
    )(*args)
    return out[:M] if Mp != M else out


def conv3x3_s1_bn_act(x, w, shift, residual=None, *, apply_relu, out_dtype):
    """Fused 3x3 / stride-1 / pad-1 conv (+BN shift, +residual, +ReLU).

    x: (B, H, W, C) bf16; w: (Kf, Np) bf16 with Kf >= 9*C, Np % 128 == 0.
    Returns (B*H*W, Np).  Grid = (batch, N tiles), both "parallel"; one whole
    padded image per step is resident in VMEM (fine for CIFAR-sized maps).
    """
    B, H, W, C = x.shape
    Kf, Np = w.shape
    assert Kf >= 9 * C and Np % 128 == 0
    assert (H * W) % 8 == 0            # sublane rule for the (H*W, tn) blocks
    xp = jnp.pad(x, ((0, 0), (1, 1), (1, 1), (0, 0)))
    M = B * H * W
    tn = min(Np, 256)

    args = [xp, w, shift]
    in_specs = [
        pl.BlockSpec((1, H + 2, W + 2, C), lambda b, j: (b, 0, 0, 0)),
        pl.BlockSpec((Kf, tn), lambda b, j: (0, j)),
        pl.BlockSpec((1, tn), lambda b, j: (0, j)),
    ]
    if residual is not None:
        assert residual.shape == (M, Np)
        r = residual if residual.dtype == jnp.bfloat16 else residual.astype(jnp.bfloat16)
        args.append(r)
        in_specs.append(pl.BlockSpec((H * W, tn), lambda b, j: (b, j)))

    return pl.pallas_call(
        functools.partial(_conv3x3_s1_kernel, Ho=H, Wo=W, C=C,
                          apply_relu=apply_relu,
                          has_residual=residual is not None),
        out_shape=jax.ShapeDtypeStruct((M, Np), out_dtype),
        grid=(B, Np // tn),
        in_specs=in_specs,
        out_specs=pl.BlockSpec((H * W, tn), lambda b, j: (b, j)),
        compiler_params=pltpu.CompilerParams(
            dimension_semantics=("parallel", "parallel")),
    )(*args)


# ------------------------------- JAX glue ---------------------------------- #

def _im2col(x, k, stride, pad, k_align=128):
    """bf16 patch extraction for the stride!=1 GEMM fallback.
    (B,H,W,C) -> (B*Ho*Wo, round_up(k*k*C, k_align)); the zero K-padding is
    appended inside the existing concatenate so x tiles stay lane-aligned."""
    B, H, W, C = x.shape
    xp = jnp.pad(x, ((0, 0), (pad, pad), (pad, pad), (0, 0)))
    Ho = (H + 2 * pad - k) // stride + 1
    Wo = (W + 2 * pad - k) // stride + 1
    cols = []
    for dy in range(k):
        for dx in range(k):
            cols.append(xp[:, dy:dy + stride * (Ho - 1) + 1:stride,
                              dx:dx + stride * (Wo - 1) + 1:stride, :])
    kk = k * k * C
    kp = _round_up(kk, k_align)
    if kp != kk:
        cols.append(jnp.zeros((B, Ho, Wo, kp - kk), x.dtype))
    patches = jnp.concatenate(cols, axis=-1)            # (B, Ho, Wo, kp)
    return patches.reshape(B * Ho * Wo, kp)


def prepare_params(raw, eps=1e-5):
    """One-time preprocessing (hoisted out of the forward):
    torch conv weights -> GEMM layout (rows ordered dy,dx,cin); eval-mode BN
    folded (scale into weight columns, shift kept as (1,npad) f32); output
    channels lane-padded to a multiple of 128; conv2's input-channel rows
    padded to npad (h stays lane-padded); conv1's K padded to a multiple of
    128 (matches _im2col); weights cast to bf16."""
    fout = raw["w1"].shape[0]
    npad = _round_up(fout, 128)

    def bn_fold(prefix):
        g, b = raw[prefix + "_g"], raw[prefix + "_b"]
        m, v = raw[prefix + "_m"], raw[prefix + "_v"]
        scale = g / jnp.sqrt(v + eps)
        shift = b - m * scale
        return scale, shift

    def conv_w_to_mat(w, scale, cin_pad=None, k_align=None):
        cout, cin, kh, kw = w.shape
        m = jnp.transpose(w, (2, 3, 1, 0)) * scale[None, None, None, :]  # fold scale (f32)
        if cin_pad is not None and cin_pad != cin:
            m = jnp.pad(m, ((0, 0), (0, 0), (0, cin_pad - cin), (0, 0)))
            cin = cin_pad
        m = m.reshape(kh * kw * cin, cout)
        m = jnp.pad(m, ((0, 0), (0, npad - cout)))                       # lane-pad N
        if k_align is not None:
            kp = _round_up(kh * kw * cin, k_align)
            m = jnp.pad(m, ((0, kp - kh * kw * cin), (0, 0)))
        return m.astype(jnp.bfloat16)

    def pad_shift(shift):
        return jnp.pad(shift, (0, npad - fout)).reshape(1, npad).astype(jnp.float32)

    s1, b1 = bn_fold("bn1")
    s2, b2 = bn_fold("bn2")
    p = {"w1": conv_w_to_mat(raw["w1"], s1, k_align=128),
         "w2": conv_w_to_mat(raw["w2"], s2, cin_pad=npad),
         "shift1": pad_shift(b1), "shift2": pad_shift(b2)}
    if "wr" in raw:
        sr, br = bn_fold("bnr")
        p["wr"] = conv_w_to_mat(raw["wr"], sr)
        p["shift_r"] = pad_shift(br)
    return p


def resblock_forward(params, x_nchw, *, stride, fout, has_proj):
    """ResNet basic block: relu(BN2(conv2(relu(BN1(conv1(x))))) + residual).

    NCHW in / NCHW out to match the PyTorch module.  When chaining several
    Pallas blocks, keep activations NHWC (lane-padded) across blocks and only
    transpose at the network boundary."""
    x = jnp.transpose(x_nchw, (0, 2, 3, 1)).astype(jnp.bfloat16)   # NHWC, bf16 once
    B, H, W, fin = x.shape
    npad = params["w1"].shape[1]
    Ho, Wo = (H - 1) // stride + 1, (W - 1) // stride + 1
    fused_ok = (Ho * Wo) % 8 == 0

    # ---- residual branch: 1x1 strided conv + BN (bf16 out), or identity ----
    if has_proj:
        xs = x[:, ::stride, ::stride, :].reshape(B * Ho * Wo, fin)
        res = matmul_shift_act(xs, params["wr"], params["shift_r"],
                               apply_relu=False, out_dtype=jnp.bfloat16)
    else:
        res = jnp.pad(x.reshape(B * H * W, fin), ((0, 0), (0, npad - fin)))

    # ---- conv1(3x3, stride) + BN1 + ReLU -> h (M, npad) bf16 ----
    if stride == 1 and fused_ok:
        h2d = conv3x3_s1_bn_act(x, params["w1"], params["shift1"],
                                apply_relu=True, out_dtype=jnp.bfloat16)
    else:
        p1 = _im2col(x, 3, stride, 1)                              # bf16, K aligned
        h2d = matmul_shift_act(p1, params["w1"], params["shift1"],
                               apply_relu=True, out_dtype=jnp.bfloat16)

    # ---- conv2(3x3, s=1) + BN2 + residual add + ReLU (one fused kernel) ----
    h = h2d.reshape(B, Ho, Wo, npad)
    if fused_ok:
        y2d = conv3x3_s1_bn_act(h, params["w2"], params["shift2"], residual=res,
                                apply_relu=True, out_dtype=jnp.float32)
    else:
        p2 = _im2col(h, 3, 1, 1)
        y2d = matmul_shift_act(p2, params["w2"], params["shift2"], residual=res,
                               apply_relu=True, out_dtype=jnp.float32)

    y = y2d[:, :fout].reshape(B, Ho, Wo, fout)
    return jnp.transpose(y, (0, 3, 1, 2))                          # NHWC -> NCHW


# --------------------------- params / reference ---------------------------- #

def init_raw_params(key, fin, fout, stride):
    ks = jax.random.split(key, 8)

    def conv_w(k, cout, cin, kh, kw):
        bound = 1.0 / math.sqrt(cin * kh * kw)
        return jax.random.uniform(k, (cout, cin, kh, kw), jnp.float32, -bound, bound)

    def bn(k, c, prefix, d):
        k1, k2, k3, k4 = jax.random.split(k, 4)
        d[prefix + "_g"] = 1.0 + 0.1 * jax.random.normal(k1, (c,), jnp.float32)
        d[prefix + "_b"] = 0.1 * jax.random.normal(k2, (c,), jnp.float32)
        d[prefix + "_m"] = 0.1 * jax.random.normal(k3, (c,), jnp.float32)
        d[prefix + "_v"] = 0.5 + jnp.abs(jax.random.normal(k4, (c,), jnp.float32))

    raw = {"w1": conv_w(ks[0], fout, fin, 3, 3),
           "w2": conv_w(ks[1], fout, fout, 3, 3)}
    bn(ks[2], fout, "bn1", raw)
    bn(ks[3], fout, "bn2", raw)
    if fin != fout or stride != 1:
        raw["wr"] = conv_w(ks[4], fout, fin, 1, 1)
        bn(ks[5], fout, "bnr", raw)
    return raw


def ref_forward(raw, x, stride, eps=1e-5):
    """Plain-JAX f32 reference matching the PyTorch module in eval mode."""
    def conv(x, w, s, pad):
        return jax.lax.conv_general_dilated(
            x, w, (s, s), ((pad, pad), (pad, pad)),
            dimension_numbers=("NCHW", "OIHW", "NCHW"))

    def bn(x, prefix):
        g = raw[prefix + "_g"][None, :, None, None]
        b = raw[prefix + "_b"][None, :, None, None]
        m = raw[prefix + "_m"][None, :, None, None]
        v = raw[prefix + "_v"][None, :, None, None]
        return (x - m) / jnp.sqrt(v + eps) * g + b

    h = jax.nn.relu(bn(conv(x, raw["w1"], stride, 1), "bn1"))
    f = bn(conv(h, raw["w2"], 1, 1), "bn2")
    r = bn(conv(x, raw["wr"], stride, 0), "bnr") if "wr" in raw else x
    return jax.nn.relu(f + r)


if __name__ == "__main__":
    def run_case(key, B, FIN, FOUT, H, W, STRIDE):
        kx, kp = jax.random.split(key)
        x = jax.random.normal(kx, (B, FIN, H, W), jnp.float32)
        raw = init_raw_params(kp, FIN, FOUT, STRIDE)
        params = prepare_params(raw)
        has_proj = (FIN != FOUT) or (STRIDE != 1)

        fwd = jax.jit(functools.partial(
            resblock_forward, stride=STRIDE, fout=FOUT, has_proj=has_proj))
        out = jax.block_until_ready(fwd(params, x))

        ho, wo = (H - 1) // STRIDE + 1, (W - 1) // STRIDE + 1
        assert out.shape == (B, FOUT, ho, wo), out.shape
        assert out.dtype == jnp.float32
        assert bool(jnp.all(jnp.isfinite(out)))
        assert bool(jnp.all(out >= 0.0))         # final ReLU

        # numeric check vs plain-JAX f32 reference (bf16 MXU operands and bf16
        # intermediates -> loose absolute tolerance; intentional trade-off)
        ref = ref_forward(raw, x, STRIDE)
        err = float(jnp.max(jnp.abs(out - ref)))
        assert err < 0.3, err

    key = jax.random.PRNGKey(0)
    k1, k2 = jax.random.split(key)
    # downsampling block: stride-2 conv1 (bf16 im2col GEMM) + 1x1 projection;
    # conv2 runs in the fused 3x3 kernel with fused residual + ReLU.
    run_case(k1, B=2, FIN=32, FOUT=64, H=16, W=16, STRIDE=2)
    # identity block: both convs on the fused 3x3 kernel, identity residual.
    run_case(k2, B=2, FIN=64, FOUT=64, H=8, W=8, STRIDE=1)
    print("KERNEL_OK")
</pallas_src>

<mosaic_0001>
module attributes {stable_mosaic.version = 11 : i64} {
  func.func @_gemm_shift_act_kernel(%arg0: i32, %arg1: i32, %arg2: memref<128x32xbf16, #tpu.memory_space<vmem>>, %arg3: memref<32x128xbf16, #tpu.memory_space<vmem>>, %arg4: memref<1x128xf32, #tpu.memory_space<vmem>>, %arg5: memref<128x128xbf16, #tpu.memory_space<vmem>>) attributes {dimension_semantics = [#tpu.dimension_semantics<parallel>, #tpu.dimension_semantics<parallel>], iteration_bounds = array<i64: 1, 1>, scalar_prefetch = 0 : i64, scratch_operands = 0 : i64, tpu.core_type = #tpu.core_type<tc>, window_params = [{transform_indices = @transform_0, window_bounds = array<i64: 128, 32>}, {transform_indices = @transform_1, window_bounds = array<i64: 32, 128>}, {transform_indices = @transform_2, window_bounds = array<i64: 1, 128>}, {transform_indices = @transform_3, window_bounds = array<i64: 128, 128>}]} {
    %c0 = arith.constant 0 : index
    %c0_0 = arith.constant 0 : index
    %0 = vector.load %arg2[%c0, %c0_0] : memref<128x32xbf16, #tpu.memory_space<vmem>>, vector<128x32xbf16>
    %c0_1 = arith.constant 0 : index
    %c0_2 = arith.constant 0 : index
    %1 = vector.load %arg3[%c0_1, %c0_2] : memref<32x128xbf16, #tpu.memory_space<vmem>>, vector<32x128xbf16>
    %cst = arith.constant dense<0.000000e+00> : vector<128x128xf32>
    %2 = tpu.matmul %0, %1, %cst {dimension_numbers = #tpu.dot_dimension_numbers<[1], [0], [0], [1], [0, 0, 1, 1], [], []>} : vector<128x32xbf16>, vector<32x128xbf16>, vector<128x128xf32> -> vector<128x128xf32>
    %c0_3 = arith.constant 0 : index
    %c0_4 = arith.constant 0 : index
    %3 = vector.load %arg4[%c0_3, %c0_4] : memref<1x128xf32, #tpu.memory_space<vmem>>, vector<1x128xf32>
    %4 = vector.broadcast %3 : vector<1x128xf32> to vector<128x128xf32>
    %5 = arith.addf %2, %4 : vector<128x128xf32>
    %6 = arith.truncf %5 : vector<128x128xf32> to vector<128x128xbf16>
    %c0_5 = arith.constant 0 : index
    %c0_6 = arith.constant 0 : index
    %7 = vector.load %arg5[%c0_5, %c0_6] : memref<128x128xbf16, #tpu.memory_space<vmem>>, vector<128x128xbf16>
    tpu.vector_store %arg5[%c0_5, %c0_6], %6 {strides = array<i32>} : memref<128x128xbf16, #tpu.memory_space<vmem>>, vector<128x128xbf16>,
    return
  }
  func.func @transform_0(%arg0: i32, %arg1: i32) -> (i32, i32) {
    %c0_i32 = arith.constant 0 : i32
    %c0_i32_0 = arith.constant 0 : i32
    return %arg0, %c0_i32 : i32, i32
  }
  func.func @transform_1(%arg0: i32, %arg1: i32) -> (i32, i32) {
    %c0_i32 = arith.constant 0 : i32
    %c0_i32_0 = arith.constant 0 : i32
    return %c0_i32, %arg1 : i32, i32
  }
  func.func @transform_2(%arg0: i32, %arg1: i32) -> (i32, i32) {
    %c0_i32 = arith.constant 0 : i32
    %c0_i32_0 = arith.constant 0 : i32
    return %c0_i32, %arg1 : i32, i32
  }
  func.func @transform_3(%arg0: i32, %arg1: i32) -> (i32, i32) {
    %c0_i32 = arith.constant 0 : i32
    return %arg0, %arg1 : i32, i32
  }
}

module attributes {stable_mosaic.version = 11 : i64} {
  func.func @_gemm_shift_act_kernel(%arg0: i32, %arg1: i32, %arg2: memref<128x384xbf16, #tpu.memory_space<vmem>>, %arg3: memref<384x128xbf16, #tpu.memory_space<vmem>>, %arg4: memref<1x128xf32, #tpu.memory_space<vmem>>, %arg5: memref<128x128xbf16, #tpu.memory_space<vmem>>) attributes {dimension_semantics = [#tpu.dimension_semantics<parallel>, #tpu.dimension_semantics<parallel>], iteration_bounds = array<i64: 1, 1>, scalar_prefetch = 0 : i64, scratch_operands = 0 : i64, tpu.core_type = #tpu.core_type<tc>, window_params = [{transform_indices = @transform_0, window_bounds = array<i64: 128, 384>}, {transform_indices = @transform_1, window_bounds = array<i64: 384, 128>}, {transform_indices = @transform_2, window_bounds = array<i64: 1, 128>}, {transform_indices = @transform_3, window_bounds = array<i64: 128, 128>}]} {
    %c0 = arith.constant 0 : index
    %c0_0 = arith.constant 0 : index
    %0 = vector.load %arg2[%c0, %c0_0] : memref<128x384xbf16, #tpu.memory_space<vmem>>, vector<128x384xbf16>
    %c0_1 = arith.constant 0 : index
    %c0_2 = arith.constant 0 : index
    %1 = vector.load %arg3[%c0_1, %c0_2] : memref<384x128xbf16, #tpu.memory_space<vmem>>, vector<384x128xbf16>
    %cst = arith.constant dense<0.000000e+00> : vector<128x128xf32>
    %2 = tpu.matmul %0, %1, %cst {dimension_numbers = #tpu.dot_dimension_numbers<[1], [0], [0], [1], [0, 0, 1, 1], [], []>} : vector<128x384xbf16>, vector<384x128xbf16>, vector<128x128xf32> -> vector<128x128xf32>
    %c0_3 = arith.constant 0 : index
    %c0_4 = arith.constant 0 : index
    %3 = vector.load %arg4[%c0_3, %c0_4] : memref<1x128xf32, #tpu.memory_space<vmem>>, vector<1x128xf32>
    %4 = vector.broadcast %3 : vector<1x128xf32> to vector<128x128xf32>
    %5 = arith.addf %2, %4 : vector<128x128xf32>
    %cst_5 = arith.constant 0.000000e+00 : f32
    %6 = vector.broadcast %cst_5 : f32 to vector<128x128xf32>
    %7 = arith.maximumf %5, %6 : vector<128x128xf32>
    %8 = arith.truncf %7 : vector<128x128xf32> to vector<128x128xbf16>
    %c0_6 = arith.constant 0 : index
    %c0_7 = arith.constant 0 : index
    %9 = vector.load %arg5[%c0_6, %c0_7] : memref<128x128xbf16, #tpu.memory_space<vmem>>, vector<128x128xbf16>
    tpu.vector_store %arg5[%c0_6, %c0_7], %8 {strides = array<i32>} : memref<128x128xbf16, #tpu.memory_space<vmem>>, vector<128x128xbf16>,
    return
  }
  func.func @transform_0(%arg0: i32, %arg1: i32) -> (i32, i32) {
    %c0_i32 = arith.constant 0 : i32
    %c0_i32_0 = arith.constant 0 : i32
    return %arg0, %c0_i32 : i32, i32
  }
  func.func @transform_1(%arg0: i32, %arg1: i32) -> (i32, i32) {
    %c0_i32 = arith.constant 0 : i32
    %c0_i32_0 = arith.constant 0 : i32
    return %c0_i32, %arg1 : i32, i32
  }
  func.func @transform_2(%arg0: i32, %arg1: i32) -> (i32, i32) {
    %c0_i32 = arith.constant 0 : i32
    %c0_i32_0 = arith.constant 0 : i32
    return %c0_i32, %arg1 : i32, i32
  }
  func.func @transform_3(%arg0: i32, %arg1: i32) -> (i32, i32) {
    %c0_i32 = arith.constant 0 : i32
    return %arg0, %arg1 : i32, i32
  }
}

module attributes {stable_mosaic.version = 11 : i64} {
  func.func @_conv3x3_s1_kernel(%arg0: i32, %arg1: i32, %arg2: memref<1x10x10x128xbf16, #tpu.memory_space<vmem>>, %arg3: memref<1152x128xbf16, #tpu.memory_space<vmem>>, %arg4: memref<1x128xf32, #tpu.memory_space<vmem>>, %arg5: memref<64x128xbf16, #tpu.memory_space<vmem>>, %arg6: memref<64x128xf32, #tpu.memory_space<vmem>>) attributes {dimension_semantics = [#tpu.dimension_semantics<parallel>, #tpu.dimension_semantics<parallel>], iteration_bounds = array<i64: 2, 1>, scalar_prefetch = 0 : i64, scratch_operands = 0 : i64, tpu.core_type = #tpu.core_type<tc>, window_params = [{transform_indices = @transform_0, window_bounds = array<i64: 1, 10, 10, 128>}, {transform_indices = @transform_1, window_bounds = array<i64: 1152, 128>}, {transform_indices = @transform_2, window_bounds = array<i64: 1, 128>}, {transform_indices = @transform_3, window_bounds = array<i64: 64, 128>}, {transform_indices = @transform_4, window_bounds = array<i64: 64, 128>}]} {
    %c0 = arith.constant 0 : index
    %c0_0 = arith.constant 0 : index
    %c0_1 = arith.constant 0 : index
    %c0_2 = arith.constant 0 : index
    %0 = vector.load %arg2[%c0, %c0_0, %c0_1, %c0_2] : memref<1x10x10x128xbf16, #tpu.memory_space<vmem>>, vector<1x8x8x128xbf16>
    %1 = vector.shape_cast %0 : vector<1x8x8x128xbf16> to vector<8x8x128xbf16>
    %2 = vector.shape_cast %1 : vector<8x8x128xbf16> to vector<64x128xbf16>
    %c0_3 = arith.constant 0 : index
    %c0_4 = arith.constant 0 : index
    %3 = vector.load %arg3[%c0_3, %c0_4] : memref<1152x128xbf16, #tpu.memory_space<vmem>>, vector<128x128xbf16>
    %cst = arith.constant dense<0.000000e+00> : vector<64x128xf32>
    %4 = tpu.matmul %2, %3, %cst {dimension_numbers = #tpu.dot_dimension_numbers<[1], [0], [0], [1], [0, 0, 1, 1], [], []>} : vector<64x128xbf16>, vector<128x128xbf16>, vector<64x128xf32> -> vector<64x128xf32>
    %c0_5 = arith.constant 0 : index
    %c0_6 = arith.constant 0 : index
    %c1 = arith.constant 1 : index
    %c0_7 = arith.constant 0 : index
    %5 = vector.load %arg2[%c0_5, %c0_6, %c1, %c0_7] : memref<1x10x10x128xbf16, #tpu.memory_space<vmem>>, vector<1x8x8x128xbf16>
    %6 = vector.shape_cast %5 : vector<1x8x8x128xbf16> to vector<8x8x128xbf16>
    %7 = vector.shape_cast %6 : vector<8x8x128xbf16> to vector<64x128xbf16>
    %c128 = arith.constant 128 : index
    %c0_8 = arith.constant 0 : index
    %8 = vector.load %arg3[%c128, %c0_8] : memref<1152x128xbf16, #tpu.memory_space<vmem>>, vector<128x128xbf16>
    %cst_9 = arith.constant dense<0.000000e+00> : vector<64x128xf32>
    %9 = tpu.matmul %7, %8, %cst_9 {dimension_numbers = #tpu.dot_dimension_numbers<[1], [0], [0], [1], [0, 0, 1, 1], [], []>} : vector<64x128xbf16>, vector<128x128xbf16>, vector<64x128xf32> -> vector<64x128xf32>
    %10 = arith.addf %4, %9 : vector<64x128xf32>
    %c0_10 = arith.constant 0 : index
    %c0_11 = arith.constant 0 : index
    %c2 = arith.constant 2 : index
    %c0_12 = arith.constant 0 : index
    %11 = vector.load %arg2[%c0_10, %c0_11, %c2, %c0_12] : memref<1x10x10x128xbf16, #tpu.memory_space<vmem>>, vector<1x8x8x128xbf16>
    %12 = vector.shape_cast %11 : vector<1x8x8x128xbf16> to vector<8x8x128xbf16>
    %13 = vector.shape_cast %12 : vector<8x8x128xbf16> to vector<64x128xbf16>
    %c256 = arith.constant 256 : index
    %c0_13 = arith.constant 0 : index
    %14 = vector.load %arg3[%c256, %c0_13] : memref<1152x128xbf16, #tpu.memory_space<vmem>>, vector<128x128xbf16>
    %cst_14 = arith.constant dense<0.000000e+00> : vector<64x128xf32>
    %15 = tpu.matmul %13, %14, %cst_14 {dimension_numbers = #tpu.dot_dimension_numbers<[1], [0], [0], [1], [0, 0, 1, 1], [], []>} : vector<64x128xbf16>, vector<128x128xbf16>, vector<64x128xf32> -> vector<64x128xf32>
    %16 = arith.addf %10, %15 : vector<64x128xf32>
    %c0_15 = arith.constant 0 : index
    %c1_16 = arith.constant 1 : index
    %c0_17 = arith.constant 0 : index
    %c0_18 = arith.constant 0 : index
    %17 = vector.load %arg2[%c0_15, %c1_16, %c0_17, %c0_18] : memref<1x10x10x128xbf16, #tpu.memory_space<vmem>>, vector<1x8x8x128xbf16>
    %18 = vector.shape_cast %17 : vector<1x8x8x128xbf16> to vector<8x8x128xbf16>
    %19 = vector.shape_cast %18 : vector<8x8x128xbf16> to vector<64x128xbf16>
    %c384 = arith.constant 384 : index
    %c0_19 = arith.constant 0 : index
    %20 = vector.load %arg3[%c384, %c0_19] : memref<1152x128xbf16, #tpu.memory_space<vmem>>, vector<128x128xbf16>
    %cst_20 = arith.constant dense<0.000000e+00> : vector<64x128xf32>
    %21 = tpu.matmul %19, %20, %cst_20 {dimension_numbers = #tpu.dot_dimension_numbers<[1], [0], [0], [1], [0, 0, 1, 1], [], []>} : vector<64x128xbf16>, vector<128x128xbf16>, vector<64x128xf32> -> vector<64x128xf32>
    %22 = arith.addf %16, %21 : vector<64x128xf32>
    %c0_21 = arith.constant 0 : index
    %c1_22 = arith.constant 1 : index
    %c1_23 = arith.constant 1 : index
    %c0_24 = arith.constant 0 : index
    %23 = vector.load %arg2[%c0_21, %c1_22, %c1_23, %c0_24] : memref<1x10x10x128xbf16, #tpu.memory_space<vmem>>, vector<1x8x8x128xbf16>
    %24 = vector.shape_cast %23 : vector<1x8x8x128xbf16> to vector<8x8x128xbf16>
    %25 = vector.shape_cast %24 : vector<8x8x128xbf16> to vector<64x128xbf16>
    %c512 = arith.constant 512 : index
    %c0_25 = arith.constant 0 : index
    %26 = vector.load %arg3[%c512, %c0_25] : memref<1152x128xbf16, #tpu.memory_space<vmem>>, vector<128x128xbf16>
    %cst_26 = arith.constant dense<0.000000e+00> : vector<64x128xf32>
    %27 = tpu.matmul %25, %26, %cst_26 {dimension_numbers = #tpu.dot_dimension_numbers<[1], [0], [0], [1], [0, 0, 1, 1], [], []>} : vector<64x128xbf16>, vector<128x128xbf16>, vector<64x128xf32> -> vector<64x128xf32>
    %28 = arith.addf %22, %27 : vector<64x128xf32>
    %c0_27 = arith.constant 0 : index
    %c1_28 = arith.constant 1 : index
    %c2_29 = arith.constant 2 : index
    %c0_30 = arith.constant 0 : index
    %29 = vector.load %arg2[%c0_27, %c1_28, %c2_29, %c0_30] : memref<1x10x10x128xbf16, #tpu.memory_space<vmem>>, vector<1x8x8x128xbf16>
    %30 = vector.shape_cast %29 : vector<1x8x8x128xbf16> to vector<8x8x128xbf16>
    %31 = vector.shape_cast %30 : vector<8x8x128xbf16> to vector<64x128xbf16>
    %c640 = arith.constant 640 : index
    %c0_31 = arith.constant 0 : index
    %32 = vector.load %arg3[%c640, %c0_31] : memref<1152x128xbf16, #tpu.memory_space<vmem>>, vector<128x128xbf16>
    %cst_32 = arith.constant dense<0.000000e+00> : vector<64x128xf32>
    %33 = tpu.matmul %31, %32, %cst_32 {dimension_numbers = #tpu.dot_dimension_numbers<[1], [0], [0], [1], [0, 0, 1, 1], [], []>} : vector<64x128xbf16>, vector<128x128xbf16>, vector<64x128xf32> -> vector<64x128xf32>
    %34 = arith.addf %28, %33 : vector<64x128xf32>
    %c0_33 = arith.constant 0 : index
    %c2_34 = arith.constant 2 : index
    %c0_35 = arith.constant 0 : index
    %c0_36 = arith.constant 0 : index
    %35 = vector.load %arg2[%c0_33, %c2_34, %c0_35, %c0_36] : memref<1x10x10x128xbf16, #tpu.memory_space<vmem>>, vector<1x8x8x128xbf16>
    %36 = vector.shape_cast %35 : vector<1x8x8x128xbf16> to vector<8x8x128xbf16>
    %37 = vector.shape_cast %36 : vector<8x8x128xbf16> to vector<64x128xbf16>
    %c768 = arith.constant 768 : index
    %c0_37 = arith.constant 0 : index
    %38 = vector.load %arg3[%c768, %c0_37] : memref<1152x128xbf16, #tpu.memory_space<vmem>>, vector<128x128xbf16>
    %cst_38 = arith.constant dense<0.000000e+00> : vector<64x128xf32>
    %39 = tpu.matmul %37, %38, %cst_38 {dimension_numbers = #tpu.dot_dimension_numbers<[1], [0], [0], [1], [0, 0, 1, 1], [], []>} : vector<64x128xbf16>, vector<128x128xbf16>, vector<64x128xf32> -> vector<64x128xf32>
    %40 = arith.addf %34, %39 : vector<64x128xf32>
    %c0_39 = arith.constant 0 : index
    %c2_40 = arith.constant 2 : index
    %c1_41 = arith.constant 1 : index
    %c0_42 = arith.constant 0 : index
    %41 = vector.load %arg2[%c0_39, %c2_40, %c1_41, %c0_42] : memref<1x10x10x128xbf16, #tpu.memory_space<vmem>>, vector<1x8x8x128xbf16>
    %42 = vector.shape_cast %41 : vector<1x8x8x128xbf16> to vector<8x8x128xbf16>
    %43 = vector.shape_cast %42 : vector<8x8x128xbf16> to vector<64x128xbf16>
    %c896 = arith.constant 896 : index
    %c0_43 = arith.constant 0 : index
    %44 = vector.load %arg3[%c896, %c0_43] : memref<1152x128xbf16, #tpu.memory_space<vmem>>, vector<128x128xbf16>
    %cst_44 = arith.constant dense<0.000000e+00> : vector<64x128xf32>
    %45 = tpu.matmul %43, %44, %cst_44 {dimension_numbers = #tpu.dot_dimension_numbers<[1], [0], [0], [1], [0, 0, 1, 1], [], []>} : vector<64x128xbf16>, vector<128x128xbf16>, vector<64x128xf32> -> vector<64x128xf32>
    %46 = arith.addf %40, %45 : vector<64x128xf32>
    %c0_45 = arith.constant 0 : index
    %c2_46 = arith.constant 2 : index
    %c2_47 = arith.constant 2 : index
    %c0_48 = arith.constant 0 : index
    %47 = vector.load %arg2[%c0_45, %c2_46, %c2_47, %c0_48] : memref<1x10x10x128xbf16, #tpu.memory_space<vmem>>, vector<1x8x8x128xbf16>
    %48 = vector.shape_cast %47 : vector<1x8x8x128xbf16> to vector<8x8x128xbf16>
    %49 = vector.shape_cast %48 : vector<8x8x128xbf16> to vector<64x128xbf16>
    %c1024 = arith.constant 1024 : index
    %c0_49 = arith.constant 0 : index
    %50 = vector.load %arg3[%c1024, %c0_49] : memref<1152x128xbf16, #tpu.memory_space<vmem>>, vector<128x128xbf16>
    %cst_50 = arith.constant dense<0.000000e+00> : vector<64x128xf32>
    %51 = tpu.matmul %49, %50, %cst_50 {dimension_numbers = #tpu.dot_dimension_numbers<[1], [0], [0], [1], [0, 0, 1, 1], [], []>} : vector<64x128xbf16>, vector<128x128xbf16>, vector<64x128xf32> -> vector<64x128xf32>
    %52 = arith.addf %46, %51 : vector<64x128xf32>
    %c0_51 = arith.constant 0 : index
    %c0_52 = arith.constant 0 : index
    %53 = vector.load %arg4[%c0_51, %c0_52] : memref<1x128xf32, #tpu.memory_space<vmem>>, vector<1x128xf32>
    %54 = vector.broadcast %53 : vector<1x128xf32> to vector<64x128xf32>
    %55 = arith.addf %52, %54 : vector<64x128xf32>
    %c0_53 = arith.constant 0 : index
    %c0_54 = arith.constant 0 : index
    %56 = vector.load %arg5[%c0_53, %c0_54] : memref<64x128xbf16, #tpu.memory_space<vmem>>, vector<64x128xbf16>
    %57 = arith.extf %56 : vector<64x128xbf16> to vector<64x128xf32>
    %58 = arith.addf %55, %57 : vector<64x128xf32>
    %cst_55 = arith.constant 0.000000e+00 : f32
    %59 = vector.broadcast %cst_55 : f32 to vector<64x128xf32>
    %60 = arith.maximumf %58, %59 : vector<64x128xf32>
    %c0_56 = arith.constant 0 : index
    %c0_57 = arith.constant 0 : index
    %61 = vector.load %arg6[%c0_56, %c0_57] : memref<64x128xf32, #tpu.memory_space<vmem>>, vector<64x128xf32>
    tpu.vector_store %arg6[%c0_56, %c0_57], %60 {strides = array<i32>} : memref<64x128xf32, #tpu.memory_space<vmem>>, vector<64x128xf32>,
    return
  }
  func.func @transform_0(%arg0: i32, %arg1: i32) -> (i32, i32, i32, i32) {
    %c0_i32 = arith.constant 0 : i32
    %c0_i32_0 = arith.constant 0 : i32
    %c0_i32_1 = arith.constant 0 : i32
    %c0_i32_2 = arith.constant 0 : i32
    return %arg0, %c0_i32, %c0_i32_0, %c0_i32_1 : i32, i32, i32, i32
  }
  func.func @transform_1(%arg0: i32, %arg1: i32) -> (i32, i32) {
    %c0_i32 = arith.constant 0 : i32
    %c0_i32_0 = arith.constant 0 : i32
    return %c0_i32, %arg1 : i32, i32
  }
  func.func @transform_2(%arg0: i32, %arg1: i32) -> (i32, i32) {
    %c0_i32 = arith.constant 0 : i32
    %c0_i32_0 = arith.constant 0 : i32
    return %c0_i32, %arg1 : i32, i32
  }
  func.func @transform_3(%arg0: i32, %arg1: i32) -> (i32, i32) {
    %c0_i32 = arith.constant 0 : i32
    return %arg0, %arg1 : i32, i32
  }
  func.func @transform_4(%arg0: i32, %arg1: i32) -> (i32, i32) {
    %c0_i32 = arith.constant 0 : i32
    return %arg0, %arg1 : i32, i32
  }
}

</mosaic_0001>

<llo_original>
// kernel: resblock_forward.4
$region0: #{resblock_forward.4}
  #allocation0 [shape = 'u32[]', space=smem, size = 0x4, offset = 0x4, fixed_abs, tag = 'smem constant byte address 0x4 - core index']
  #allocation1 [shape = 'u32[144,128]{1,0:T(1,128)}', space=vmem, size = 0x12000, scoped, tag = 'internal scratch']
  %s0 = inlined_call_operand.vmem [shape: bf16[128,384], index: 0, kind: input, shape index: {}]
  %s1 = inlined_call_operand.vmem [shape: bf16[384,128], index: 1, kind: input, shape index: {}]
  %s2 = inlined_call_operand.vmem [shape: f32[1,128], index: 2, kind: input, shape index: {}]
  %s3 = inlined_call_operand.vmem [shape: bf16[128,128], index: 3, kind: output, shape index: {}]
  %s4 = sld [smem:[#allocation0]]
  $region22: #{resblock_forward.4} parent=0
    _
  %s6 = ssub.s32 1, %s4
  %s7 = scalar_select 0, %s6, %s4
  // Predicated region
  $region2: #{resblock_forward.4} parent=0 // pred_check
    _
  $region3: #{resblock_forward.4} parent=0 // pred_check_branch
    %9 = sbr.rel (0) target = $region5
  $region4: #{resblock_forward.4} parent=0 // pred_region
    _
  $region5: #{resblock_forward.4} parent=0 // pred_fallthru
    _
  // Predicated region
  $region6: #{resblock_forward.4} parent=0 // pred_check
    _
  $region7: #{resblock_forward.4} parent=0 // pred_check_branch
    %11 = sbr.rel (0) target = $region9
  $region8: #{resblock_forward.4} parent=0 // pred_region
    _
  $region9: #{resblock_forward.4} parent=0 // pred_fallthru
    _
  // Predicated region
  $region10: #{resblock_forward.4} parent=0 // pred_check
    _
  $region11: #{resblock_forward.4} parent=0 // pred_check_branch
    %13 = sbr.rel (0) target = $region13
  $region12: #{resblock_forward.4} parent=0 // pred_region
    _
  $region13: #{resblock_forward.4} parent=0 // pred_fallthru
    _
  %v15 = vld [vmem:[%s0] sm:$0xff]
  %v16 = vld [vmem:[%s0 + $0x8] sm:$0xf]
  %v17 = vld [vmem:[%s0 + $0xc] sm:$0xff]
  %v18 = vld [vmem:[%s0 + $0x14] sm:$0xf]
  %v19 = vld [vmem:[%s0 + $0x18] sm:$0xff]
  %v20 = vld [vmem:[%s0 + $0x20] sm:$0xf]
  %v21 = vld [vmem:[%s0 + $0x24] sm:$0xff]
  %v22 = vld [vmem:[%s0 + $0x2c] sm:$0xf]
  %v23 = vld [vmem:[%s0 + $0x30] sm:$0xff]
  %v24 = vld [vmem:[%s0 + $0x38] sm:$0xf]
  %v25 = vld [vmem:[%s0 + $0x3c] sm:$0xff]
  %v26 = vld [vmem:[%s0 + $0x44] sm:$0xf]
  %v27 = vld [vmem:[%s0 + $0x48] sm:$0xff]
  %v28 = vld [vmem:[%s0 + $0x50] sm:$0xf]
  %v29 = vld [vmem:[%s0 + $0x54] sm:$0xff]
  %v30 = vld [vmem:[%s0 + $0x5c] sm:$0xf]
  %v31 = vld [vmem:[%s0 + $0x60] sm:$0xff]
  %v32 = vld [vmem:[%s0 + $0x68] sm:$0xf]
  %v33 = vld [vmem:[%s0 + $0x6c] sm:$0xff]
  %v34 = vld [vmem:[%s0 + $0x74] sm:$0xf]
  %v35 = vld [vmem:[%s0 + $0x78] sm:$0xff]
  %v36 = vld [vmem:[%s0 + $0x80] sm:$0xf]
  %v37 = vld [vmem:[%s0 + $0x84] sm:$0xff]
  %v38 = vld [vmem:[%s0 + $0x8c] sm:$0xf]
  %v39 = vld [vmem:[%s0 + $0x90] sm:$0xff]
  %v40 = vld [vmem:[%s0 + $0x98] sm:$0xf]
  %v41 = vld [vmem:[%s0 + $0x9c] sm:$0xff]
  %v42 = vld [vmem:[%s0 + $0xa4] sm:$0xf]
  %v43 = vld [vmem:[%s0 + $0xa8] sm:$0xff]
  %v44 = vld [vmem:[%s0 + $0xb0] sm:$0xf]
  %v45 = vld [vmem:[%s0 + $0xb4] sm:$0xff]
  %v46 = vld [vmem:[%s0 + $0xbc] sm:$0xf]
  %v47 = vld [vmem:[%s1] sm:$0xf]
  %v48 = vld [vmem:[%s1 + $0x4] sm:$0xf]
  %v49 = vld [vmem:[%s1 + $0x8] sm:$0xf]
  %v50 = vld [vmem:[%s1 + $0xc] sm:$0xf]
  %v51 = vld [vmem:[%s1 + $0x10] sm:$0xf]
  %v52 = vld [vmem:[%s1 + $0x14] sm:$0xf]
  %v53 = vld [vmem:[%s1 + $0x18] sm:$0xf]
  %v54 = vld [vmem:[%s1 + $0x1c] sm:$0xf]
  %v55 = vld [vmem:[%s1 + $0x20] sm:$0xf]
  %v56 = vld [vmem:[%s1 + $0x24] sm:$0xf]
  %v57 = vld [vmem:[%s1 + $0x28] sm:$0xf]
  %v58 = vld [vmem:[%s1 + $0x2c] sm:$0xf]
  %v59 = vld [vmem:[%s1 + $0x30] sm:$0xf]
  %v60 = vld [vmem:[%s1 + $0x34] sm:$0xf]
  %v61 = vld [vmem:[%s1 + $0x38] sm:$0xf]
  %v62 = vld [vmem:[%s1 + $0x3c] sm:$0xf]
  %v63 = vld [vmem:[%s1 + $0x40] sm:$0xf]
  %v64 = vld [vmem:[%s1 + $0x44] sm:$0xf]
  %v65 = vld [vmem:[%s1 + $0x48] sm:$0xf]
  %v66 = vld [vmem:[%s1 + $0x4c] sm:$0xf]
  %v67 = vld [vmem:[%s1 + $0x50] sm:$0xf]
  %v68 = vld [vmem:[%s1 + $0x54] sm:$0xf]
  %v69 = vld [vmem:[%s1 + $0x58] sm:$0xf]
  %v70 = vld [vmem:[%s1 + $0x5c] sm:$0xf]
  %v71 = vld [vmem:[%s1 + $0x60] sm:$0xf]
  %v72 = vld [vmem:[%s1 + $0x64] sm:$0xf]
  %v73 = vld [vmem:[%s1 + $0x68] sm:$0xf]
  %v74 = vld [vmem:[%s1 + $0x6c] sm:$0xf]
  %v75 = vld [vmem:[%s1 + $0x70] sm:$0xf]
  %v76 = vld [vmem:[%s1 + $0x74] sm:$0xf]
  %v77 = vld [vmem:[%s1 + $0x78] sm:$0xf]
  %v78 = vld [vmem:[%s1 + $0x7c] sm:$0xf]
  %v79 = vld [vmem:[%s1 + $0x80] sm:$0xf]
  %v80 = vld [vmem:[%s1 + $0x84] sm:$0xf]
  %v81 = vld [vmem:[%s1 + $0x88] sm:$0xf]
  %v82 = vld [vmem:[%s1 + $0x8c] sm:$0xf]
  %v83 = vld [vmem:[%s1 + $0x90] sm:$0xf]
  %v84 = vld [vmem:[%s1 + $0x94] sm:$0xf]
  %v85 = vld [vmem:[%s1 + $0x98] sm:$0xf]
  %v86 = vld [vmem:[%s1 + $0x9c] sm:$0xf]
  %v87 = vld [vmem:[%s1 + $0xa0] sm:$0xf]
  %v88 = vld [vmem:[%s1 + $0xa4] sm:$0xf]
  %v89 = vld [vmem:[%s1 + $0xa8] sm:$0xf]
  %v90 = vld [vmem:[%s1 + $0xac] sm:$0xf]
  %v91 = vld [vmem:[%s1 + $0xb0] sm:$0xf]
  %v92 = vld [vmem:[%s1 + $0xb4] sm:$0xf]
  %v93 = vld [vmem:[%s1 + $0xb8] sm:$0xf]
  %v94 = vld [vmem:[%s1 + $0xbc] sm:$0xf]
  %v95 = vld [vmem:[%s2] sm:$0x1]
  %v97 = vlaneseq
  %v98 = vshrl.u32 %v97, 7
  %v99 = vsub.s32 0, %v98
  %v100 = vrot.slane %v95, %v99
  %v134 = vunpack.c.l.b16 %v15
  %v135 = vunpack.c.h.b16 %v15
  %v136 = vunpack.c.l.b16 %v16
  %v137 = vunpack.c.l.b16 %v17
  %v138 = vunpack.c.h.b16 %v17
  %v139 = vunpack.c.l.b16 %v18
  %v140 = vunpack.c.l.b16 %v19
  %v141 = vunpack.c.h.b16 %v19
  %v142 = vunpack.c.l.b16 %v20
  %v143 = vunpack.c.l.b16 %v21
  %v144 = vunpack.c.h.b16 %v21
  %v145 = vunpack.c.l.b16 %v22
  %v146 = vunpack.c.l.b16 %v23
  %v147 = vunpack.c.h.b16 %v23
  %v148 = vunpack.c.l.b16 %v24
  %v149 = vunpack.c.l.b16 %v25
  %v150 = vunpack.c.h.b16 %v25
  %v151 = vunpack.c.l.b16 %v26
  %v152 = vunpack.c.l.b16 %v27
  %v153 = vunpack.c.h.b16 %v27
  %v154 = vunpack.c.l.b16 %v28
  %v155 = vunpack.c.l.b16 %v29
  %v156 = vunpack.c.h.b16 %v29
  %v157 = vunpack.c.l.b16 %v30
  %v158 = vunpack.c.l.b16 %v31
  %v159 = vunpack.c.h.b16 %v31
  %v160 = vunpack.c.l.b16 %v32
  %v161 = vunpack.c.l.b16 %v33
  %v162 = vunpack.c.h.b16 %v33
  %v163 = vunpack.c.l.b16 %v34
  %v164 = vunpack.c.l.b16 %v35
  %v165 = vunpack.c.h.b16 %v35
  %v166 = vunpack.c.l.b16 %v36
  %v167 = vunpack.c.l.b16 %v37
  %v168 = vunpack.c.h.b16 %v37
  %v169 = vunpack.c.l.b16 %v38
  %v170 = vunpack.c.l.b16 %v39
  %v171 = vunpack.c.h.b16 %v39
  %v172 = vunpack.c.l.b16 %v40
  %v173 = vunpack.c.l.b16 %v41
  %v174 = vunpack.c.h.b16 %v41
  %v175 = vunpack.c.l.b16 %v42
  %v176 = vunpack.c.l.b16 %v43
  %v177 = vunpack.c.h.b16 %v43
  %v178 = vunpack.c.l.b16 %v44
  %v179 = vunpack.c.l.b16 %v45
  %v180 = vunpack.c.h.b16 %v45
  %v181 = vunpack.c.l.b16 %v46
  %v182 = vpack.c.b16 %v137, %v134
  %v183 = vpack.c.b16 %v138, %v135
  %v184 = vpack.c.b16 %v139, %v136
  %v185 = vpack.c.b16 %v143, %v140
  %v186 = vpack.c.b16 %v144, %v141
  %v187 = vpack.c.b16 %v145, %v142
  %v188 = vpack.c.b16 %v149, %v146
  %v189 = vpack.c.b16 %v150, %v147
  %v190 = vpack.c.b16 %v151, %v148
  %v191 = vpack.c.b16 %v155, %v152
  %v192 = vpack.c.b16 %v156, %v153
  %v193 = vpack.c.b16 %v157, %v154
  %v194 = vpack.c.b16 %v161, %v158
  %v195 = vpack.c.b16 %v162, %v159
  %v196 = vpack.c.b16 %v163, %v160
  %v197 = vpack.c.b16 %v167, %v164
  %v198 = vpack.c.b16 %v168, %v165
  %v199 = vpack.c.b16 %v169, %v166
  %v200 = vpack.c.b16 %v173, %v170
  %v201 = vpack.c.b16 %v174, %v171
  %v202 = vpack.c.b16 %v175, %v172
  %v203 = vpack.c.b16 %v179, %v176
  %v204 = vpack.c.b16 %v180, %v177
  %v205 = vpack.c.b16 %v181, %v178
  %v278 = vunpack.c.l.b16 %v47
  %v279 = vunpack.c.l.b16 %v48
  %v280 = vunpack.c.l.b16 %v49
  %v281 = vunpack.c.l.b16 %v50
  %v282 = vunpack.c.l.b16 %v51
  %v283 = vunpack.c.l.b16 %v52
  %v284 = vunpack.c.l.b16 %v53
  %v285 = vunpack.c.l.b16 %v54
  %v286 = vunpack.c.l.b16 %v55
  %v287 = vunpack.c.l.b16 %v56
  %v288 = vunpack.c.l.b16 %v57
  %v289 = vunpack.c.l.b16 %v58
  %v290 = vunpack.c.l.b16 %v59
  %v291 = vunpack.c.l.b16 %v60
  %v292 = vunpack.c.l.b16 %v61
  %v293 = vunpack.c.l.b16 %v62
  %v294 = vunpack.c.l.b16 %v63
  %v295 = vunpack.c.l.b16 %v64
  %v296 = vunpack.c.l.b16 %v65
  %v297 = vunpack.c.l.b16 %v66
  %v298 = vunpack.c.l.b16 %v67
  %v299 = vunpack.c.l.b16 %v68
  %v300 = vunpack.c.l.b16 %v69
  %v301 = vunpack.c.l.b16 %v70
  %v302 = vunpack.c.l.b16 %v71
  %v303 = vunpack.c.l.b16 %v72
  %v304 = vunpack.c.l.b16 %v73
  %v305 = vunpack.c.l.b16 %v74
  %v306 = vunpack.c.l.b16 %v75
  %v307 = vunpack.c.l.b16 %v76
  %v308 = vunpack.c.l.b16 %v77
  %v309 = vunpack.c.l.b16 %v78
  %v310 = vunpack.c.l.b16 %v79
  %v311 = vunpack.c.l.b16 %v80
  %v312 = vunpack.c.l.b16 %v81
  %v313 = vunpack.c.l.b16 %v82
  %v314 = vunpack.c.l.b16 %v83
  %v315 = vunpack.c.l.b16 %v84
  %v316 = vunpack.c.l.b16 %v85
  %v317 = vunpack.c.l.b16 %v86
  %v318 = vunpack.c.l.b16 %v87
  %v319 = vunpack.c.l.b16 %v88
  %v320 = vunpack.c.l.b16 %v89
  %v321 = vunpack.c.l.b16 %v90
  %v322 = vunpack.c.l.b16 %v91
  %v323 = vunpack.c.l.b16 %v92
  %v324 = vunpack.c.l.b16 %v93
  %v325 = vunpack.c.l.b16 %v94
  %v326 = vpack.c.b16 %v279, %v278
  %v327 = vpack.c.b16 %v281, %v280
  %v328 = vpack.c.b16 %v283, %v282
  %v329 = vpack.c.b16 %v285, %v284
  %v330 = vpack.c.b16 %v287, %v286
  %v331 = vpack.c.b16 %v289, %v288
  %v332 = vpack.c.b16 %v291, %v290
  %v333 = vpack.c.b16 %v293, %v292
  %v334 = vpack.c.b16 %v295, %v294
  %v335 = vpack.c.b16 %v297, %v296
  %v336 = vpack.c.b16 %v299, %v298
  %v337 = vpack.c.b16 %v301, %v300
  %v338 = vpack.c.b16 %v303, %v302
  %v339 = vpack.c.b16 %v305, %v304
  %v340 = vpack.c.b16 %v307, %v306
  %v341 = vpack.c.b16 %v309, %v308
  %v342 = vpack.c.b16 %v311, %v310
  %v343 = vpack.c.b16 %v313, %v312
  %v344 = vpack.c.b16 %v315, %v314
  %v345 = vpack.c.b16 %v317, %v316
  %v346 = vpack.c.b16 %v319, %v318
  %v347 = vpack.c.b16 %v321, %v320
  %v348 = vpack.c.b16 %v323, %v322
  %v349 = vpack.c.b16 %v325, %v324
  %374 = vmatprep.subr.bf16.mxu0 0
  %375 = vmatpush1.bf16.msra.mxu0 %v326
  %376 = vmatprep.subr.bf16.mxu0 0
  %377 = vmatpush1.bf16.msra.mxu0 %v327
  %378 = vmatprep.subr.bf16.mxu0 0
  %379 = vmatpush1.bf16.msra.mxu0 %v328
  %380 = vmatprep.subr.bf16.mxu0 0
  %381 = vmatpush1.bf16.msra.mxu0 %v329
  %382 = vmatprep.subr.bf16.mxu0 0
  %383 = vmatpush1.bf16.msra.mxu0 %v330
  %384 = vmatprep.subr.bf16.mxu0 0
  %385 = vmatpush1.bf16.msra.mxu0 %v331
  %386 = vmatprep.subr.bf16.mxu0 0
  %387 = vmatpush1.bf16.msra.mxu0 %v332
  %388 = vmatprep.subr.bf16.mxu0 0
  %389 = vmatpush1.bf16.msra.mxu0 %v333
  %390 = vmatprep.subr.bf16.mxu0 0
  %391 = vmatpush1.bf16.msra.mxu0 %v334
  %392 = vmatprep.subr.bf16.mxu0 0
  %393 = vmatpush1.bf16.msra.mxu0 %v335
  %394 = vmatprep.subr.bf16.mxu0 0
  %395 = vmatpush1.bf16.msra.mxu0 %v336
  %396 = vmatprep.subr.bf16.mxu0 0
  %397 = vmatpush1.bf16.msra.mxu0 %v337
  %398 = vmatprep.subr.bf16.mxu0 0
  %399 = vmatpush1.bf16.msra.mxu0 %v338
  %400 = vmatprep.subr.bf16.mxu0 0
  %401 = vmatpush1.bf16.msra.mxu0 %v339
  %402 = vmatprep.subr.bf16.mxu0 0
  %403 = vmatpush1.bf16.msra.mxu0 %v340
  %404 = vmatprep.subr.bf16.mxu0 0
  %405 = vmatpush1.bf16.msra.mxu0 %v341
  %406 = vmatprep.mubr.bf16.mxu0 %v183
  %407 = vmatmul.mubr.bf16.gmra.mrb[0].mxu0 %v182
  %v408 = vpop.f32.mrb[0].mxu0
  %v409 = vadd.f32 %v100, %v408
  %v410 = vpop.f32.mrb[0].mxu0
  %v411 = vpop.f32.mrb[0].mxu0
  %v412 = vadd.f32 %v100, %v411
  %v413 = vpop.f32.mrb[0].mxu0
  %414 = vmatprep.mubr.bf16.mxu0 %v186
  %415 = vmatmul.mubr.bf16.gmra.mrb[0].mxu0 %v185
  %v416 = vpop.f32.mrb[0].mxu0
  %v417 = vadd.f32 %v100, %v416
  %v418 = vpop.f32.mrb[0].mxu0
  %v419 = vpop.f32.mrb[0].mxu0
  %v420 = vadd.f32 %v100, %v419
  %v421 = vpop.f32.mrb[0].mxu0
  %422 = vmatprep.mubr.bf16.mxu0 %v189
  %423 = vmatmul.mubr.bf16.gmra.mrb[0].mxu0 %v188
  %v424 = vpop.f32.mrb[0].mxu0
  %v425 = vadd.f32 %v100, %v424
  %v426 = vpop.f32.mrb[0].mxu0
  %v427 = vpop.f32.mrb[0].mxu0
  %v428 = vadd.f32 %v100, %v427
  %v429 = vpop.f32.mrb[0].mxu0
  %430 = vmatprep.mubr.bf16.mxu0 %v192
  %431 = vmatmul.mubr.bf16.gmra.mrb[0].mxu0 %v191
  %v432 = vpop.f32.mrb[0].mxu0
  %v433 = vadd.f32 %v100, %v432
  %v434 = vpop.f32.mrb[0].mxu0
  %v435 = vpop.f32.mrb[0].mxu0
  %v436 = vadd.f32 %v100, %v435
  %v437 = vpop.f32.mrb[0].mxu0
  %438 = vmatprep.mubr.bf16.mxu0 %v195
  %439 = vmatmul.mubr.bf16.gmra.mrb[0].mxu0 %v194
  %v440 = vpop.f32.mrb[0].mxu0
  %v441 = vadd.f32 %v100, %v440
  %v442 = vpop.f32.mrb[0].mxu0
  %v443 = vpop.f32.mrb[0].mxu0
  %v444 = vadd.f32 %v100, %v443
  %v445 = vpop.f32.mrb[0].mxu0
  %446 = vmatprep.mubr.bf16.mxu0 %v198
  %447 = vmatmul.mubr.bf16.gmra.mrb[0].mxu0 %v197
  %v448 = vpop.f32.mrb[0].mxu0
  %v449 = vadd.f32 %v100, %v448
  %v450 = vpop.f32.mrb[0].mxu0
  %v451 = vpop.f32.mrb[0].mxu0
  %v452 = vadd.f32 %v100, %v451
  %v453 = vpop.f32.mrb[0].mxu0
  %454 = vmatprep.mubr.bf16.mxu0 %v201
  %455 = vmatmul.mubr.bf16.gmra.mrb[0].mxu0 %v200
  %v456 = vpop.f32.mrb[0].mxu0
  %v457 = vadd.f32 %v100, %v456
  %v458 = vpop.f32.mrb[0].mxu0
  %v459 = vpop.f32.mrb[0].mxu0
  %v460 = vadd.f32 %v100, %v459
  %v461 = vpop.f32.mrb[0].mxu0
  %462 = vmatprep.mubr.bf16.mxu0 %v204
  %463 = vmatmul.mubr.bf16.gmra.mrb[0].mxu0 %v203
  %v464 = vpop.f32.mrb[0].mxu0
  %v465 = vadd.f32 %v100, %v464
  %v466 = vpop.f32.mrb[0].mxu0
  %v467 = vpop.f32.mrb[0].mxu0
  %v468 = vadd.f32 %v100, %v467
  %v469 = vpop.f32.mrb[0].mxu0
  %470 = vdwg.mxu0
  %471 = vmatprep.subr.bf16.mxu0 0
  %472 = vmatpush1.bf16.msra.mxu0 %v342
  %473 = vmatprep.subr.bf16.mxu0 0
  %474 = vmatpush1.bf16.msra.mxu0 %v343
  %475 = vmatprep.subr.bf16.mxu0 0
  %476 = vmatpush1.bf16.msra.mxu0 %v344
  %477 = vmatprep.subr.bf16.mxu0 0
  %478 = vmatpush1.bf16.msra.mxu0 %v345
  %479 = vmatprep.subr.bf16.mxu0 0
  %480 = vmatpush1.bf16.msra.mxu0 %v346
  %481 = vmatprep.subr.bf16.mxu0 0
  %482 = vmatpush1.bf16.msra.mxu0 %v347
  %483 = vmatprep.subr.bf16.mxu0 0
  %484 = vmatpush1.bf16.msra.mxu0 %v348
  %485 = vmatprep.subr.bf16.mxu0 0
  %486 = vmatpush1.bf16.msra.mxu0 %v349
  %487 = vmatprep.subr.bf16.mxu0 0
  %488 = vmatpush1.bf16.msra.mxu0 0
  %489 = vmatprep.subr.bf16.mxu0 0
  %490 = vmatpush1.bf16.msra.mxu0 0
  %491 = vmatprep.subr.bf16.mxu0 0
  %492 = vmatpush1.bf16.msra.mxu0 0
  %493 = vmatprep.subr.bf16.mxu0 0
  %494 = vmatpush1.bf16.msra.mxu0 0
  %495 = vmatprep.subr.bf16.mxu0 0
  %496 = vmatpush1.bf16.msra.mxu0 0
  %497 = vmatprep.subr.bf16.mxu0 0
  %498 = vmatpush1.bf16.msra.mxu0 0
  %499 = vmatprep.subr.bf16.mxu0 0
  %500 = vmatpush1.bf16.msra.mxu0 0
  %501 = vmatprep.subr.bf16.mxu0 0
  %502 = vmatpush1.bf16.msra.mxu0 0
  %503 = vmatprep.mubr.bf16.mxu0 0
  %504 = vmatmul.mubr.bf16.gmra.mrb[0].mxu0 %v184
  %v505 = vpop.f32.mrb[0].mxu0
  %v506 = vadd.f32 %v409, %v505
  %v507 = vpop.f32.mrb[0].mxu0
  %v508 = vpop.f32.mrb[0].mxu0
  %v509 = vadd.f32 %v412, %v508
  %v510 = vpop.f32.mrb[0].mxu0
  %511 = vmatprep.mubr.bf16.mxu0 0
  %512 = vmatmul.mubr.bf16.gmra.mrb[0].mxu0 %v187
  %v513 = vpop.f32.mrb[0].mxu0
  %v514 = vadd.f32 %v417, %v513
  %v515 = vpop.f32.mrb[0].mxu0
  %v516 = vpop.f32.mrb[0].mxu0
  %v517 = vadd.f32 %v420, %v516
  %v518 = vpop.f32.mrb[0].mxu0
  %519 = vmatprep.mubr.bf16.mxu0 0
  %520 = vmatmul.mubr.bf16.gmra.mrb[0].mxu0 %v190
  %v521 = vpop.f32.mrb[0].mxu0
  %v522 = vadd.f32 %v425, %v521
  %v523 = vpop.f32.mrb[0].mxu0
  %v524 = vpop.f32.mrb[0].mxu0
  %v525 = vadd.f32 %v428, %v524
  %v526 = vpop.f32.mrb[0].mxu0
  %527 = vmatprep.mubr.bf16.mxu0 0
  %528 = vmatmul.mubr.bf16.gmra.mrb[0].mxu0 %v193
  %v529 = vpop.f32.mrb[0].mxu0
  %v530 = vadd.f32 %v433, %v529
  %v531 = vpop.f32.mrb[0].mxu0
  %v532 = vpop.f32.mrb[0].mxu0
  %v533 = vadd.f32 %v436, %v532
  %v534 = vpop.f32.mrb[0].mxu0
  %535 = vmatprep.mubr.bf16.mxu0 0
  %536 = vmatmul.mubr.bf16.gmra.mrb[0].mxu0 %v196
  %v537 = vpop.f32.mrb[0].mxu0
  %v538 = vadd.f32 %v441, %v537
  %v539 = vpop.f32.mrb[0].mxu0
  %v540 = vpop.f32.mrb[0].mxu0
  %v541 = vadd.f32 %v444, %v540
  %v542 = vpop.f32.mrb[0].mxu0
  %543 = vmatprep.mubr.bf16.mxu0 0
  %544 = vmatmul.mubr.bf16.gmra.mrb[0].mxu0 %v199
  %v545 = vpop.f32.mrb[0].mxu0
  %v546 = vadd.f32 %v449, %v545
  %v547 = vpop.f32.mrb[0].mxu0
  %v548 = vpop.f32.mrb[0].mxu0
  %v549 = vadd.f32 %v452, %v548
  %v550 = vpop.f32.mrb[0].mxu0
  %551 = vmatprep.mubr.bf16.mxu0 0
  %552 = vmatmul.mubr.bf16.gmra.mrb[0].mxu0 %v202
  %v553 = vpop.f32.mrb[0].mxu0
  %v554 = vadd.f32 %v457, %v553
  %v555 = vpop.f32.mrb[0].mxu0
  %v556 = vpop.f32.mrb[0].mxu0
  %v557 = vadd.f32 %v460, %v556
  %v558 = vpop.f32.mrb[0].mxu0
  %559 = vmatprep.mubr.bf16.mxu0 0
  %560 = vmatmul.mubr.bf16.gmra.mrb[0].mxu0 %v205
  %v561 = vpop.f32.mrb[0].mxu0
  %v562 = vadd.f32 %v465, %v561
  %v563 = vpop.f32.mrb[0].mxu0
  %v564 = vpop.f32.mrb[0].mxu0
  %v565 = vadd.f32 %v468, %v564
  %v566 = vpop.f32.mrb[0].mxu0
  %567 = vdwg.mxu0
  %v568 = vmax.f32 %v506, 0.0
  %v569 = vmax.f32 %v509, 0.0
  %v570 = vmax.f32 %v514, 0.0
  %v571 = vmax.f32 %v517, 0.0
  %v572 = vmax.f32 %v522, 0.0
  %v573 = vmax.f32 %v525, 0.0
  %v574 = vmax.f32 %v530, 0.0
  %v575 = vmax.f32 %v533, 0.0
  %v576 = vmax.f32 %v538, 0.0
  %v577 = vmax.f32 %v541, 0.0
  %v578 = vmax.f32 %v546, 0.0
  %v579 = vmax.f32 %v549, 0.0
  %v580 = vmax.f32 %v554, 0.0
  %v581 = vmax.f32 %v557, 0.0
  %v582 = vmax.f32 %v562, 0.0
  %v583 = vmax.f32 %v565, 0.0
  %v584 = vpack.c.bf16 %v569, %v568
  %v585 = vpack.c.bf16 %v571, %v570
  %v586 = vpack.c.bf16 %v573, %v572
  %v587 = vpack.c.bf16 %v575, %v574
  %v588 = vpack.c.bf16 %v577, %v576
  %v589 = vpack.c.bf16 %v579, %v578
  %v590 = vpack.c.bf16 %v581, %v580
  %v591 = vpack.c.bf16 %v583, %v582
  %v600 = vunpack.c.l.b16 %v584
  %v601 = vunpack.c.h.b16 %v584
  %v602 = vunpack.c.l.b16 %v585
  %v603 = vunpack.c.h.b16 %v585
  %v604 = vunpack.c.l.b16 %v586
  %v605 = vunpack.c.h.b16 %v586
  %v606 = vunpack.c.l.b16 %v587
  %v607 = vunpack.c.h.b16 %v587
  %v608 = vunpack.c.l.b16 %v588
  %v609 = vunpack.c.h.b16 %v588
  %v610 = vunpack.c.l.b16 %v589
  %v611 = vunpack.c.h.b16 %v589
  %v612 = vunpack.c.l.b16 %v590
  %v613 = vunpack.c.h.b16 %v590
  %v614 = vunpack.c.l.b16 %v591
  %v615 = vunpack.c.h.b16 %v591
  %v616 = vpack.c.b16 %v600, %v600
  %v617 = vpack.c.b16 %v601, %v601
  %v618 = vpack.c.b16 %v602, %v602
  %v619 = vpack.c.b16 %v603, %v603
  %v620 = vpack.c.b16 %v604, %v604
  %v621 = vpack.c.b16 %v605, %v605
  %v622 = vpack.c.b16 %v606, %v606
  %v623 = vpack.c.b16 %v607, %v607
  %v624 = vpack.c.b16 %v608, %v608
  %v625 = vpack.c.b16 %v609, %v609
  %v626 = vpack.c.b16 %v610, %v610
  %v627 = vpack.c.b16 %v611, %v611
  %v628 = vpack.c.b16 %v612, %v612
  %v629 = vpack.c.b16 %v613, %v613
  %v630 = vpack.c.b16 %v614, %v614
  %v631 = vpack.c.b16 %v615, %v615
  %648 = vst [vmem:[%s3] sm:$0xf] %v616
  %649 = vst [vmem:[%s3 + $0x4] sm:$0xf] %v617
  %650 = vst [vmem:[%s3 + $0x8] sm:$0xf] %v618
  %651 = vst [vmem:[%s3 + $0xc] sm:$0xf] %v619
  %652 = vst [vmem:[%s3 + $0x10] sm:$0xf] %v620
  %653 = vst [vmem:[%s3 + $0x14] sm:$0xf] %v621
  %654 = vst [vmem:[%s3 + $0x18] sm:$0xf] %v622
  %655 = vst [vmem:[%s3 + $0x1c] sm:$0xf] %v623
  %656 = vst [vmem:[%s3 + $0x20] sm:$0xf] %v624
  %657 = vst [vmem:[%s3 + $0x24] sm:$0xf] %v625
  %658 = vst [vmem:[%s3 + $0x28] sm:$0xf] %v626
  %659 = vst [vmem:[%s3 + $0x2c] sm:$0xf] %v627
  %660 = vst [vmem:[%s3 + $0x30] sm:$0xf] %v628
  %661 = vst [vmem:[%s3 + $0x34] sm:$0xf] %v629
  %662 = vst [vmem:[%s3 + $0x38] sm:$0xf] %v630
  %663 = vst [vmem:[%s3 + $0x3c] sm:$0xf] %v631
  // Predicated region
  $region14: #{resblock_forward.4} parent=0 // pred_check
    _
  $region15: #{resblock_forward.4} parent=0 // pred_check_branch
    %665 = sbr.rel (0) target = $region17
  $region16: #{resblock_forward.4} parent=0 // pred_region
    _
  $region17: #{resblock_forward.4} parent=0 // pred_fallthru
    _
  // Predicated region
  $region18: #{resblock_forward.4} parent=0 // pred_check
    _
  $region19: #{resblock_forward.4} parent=0 // pred_check_branch
    %667 = sbr.rel (0) target = $region21
  $region20: #{resblock_forward.4} parent=0 // pred_region
    _
  $region21: #{resblock_forward.4} parent=0 // pred_fallthru
    _

// kernel: resblock_forward.3
$region0: #{resblock_forward.3}
  #allocation0 [shape = 'u32[]', space=smem, size = 0x4, offset = 0x4, fixed_abs, tag = 'smem constant byte address 0x4 - core index']
  #allocation1 [shape = 'u32[144,128]{1,0:T(1,128)}', space=vmem, size = 0x12000, scoped, tag = 'internal scratch']
  %s0 = inlined_call_operand.vmem [shape: bf16[128,32], index: 0, kind: input, shape index: {}]
  %s1 = inlined_call_operand.vmem [shape: bf16[32,128], index: 1, kind: input, shape index: {}]
  %s2 = inlined_call_operand.vmem [shape: f32[1,128], index: 2, kind: input, shape index: {}]
  %s3 = inlined_call_operand.vmem [shape: bf16[128,128], index: 3, kind: output, shape index: {}]
  %s4 = sld [smem:[#allocation0]]
  $region22: #{resblock_forward.3} parent=0
    _
  %s6 = ssub.s32 1, %s4
  %s7 = scalar_select 0, %s6, %s4
  // Predicated region
  $region2: #{resblock_forward.3} parent=0 // pred_check
    _
  $region3: #{resblock_forward.3} parent=0 // pred_check_branch
    %9 = sbr.rel (0) target = $region5
  $region4: #{resblock_forward.3} parent=0 // pred_region
    _
  $region5: #{resblock_forward.3} parent=0 // pred_fallthru
    _
  // Predicated region
  $region6: #{resblock_forward.3} parent=0 // pred_check
    _
  $region7: #{resblock_forward.3} parent=0 // pred_check_branch
    %11 = sbr.rel (0) target = $region9
  $region8: #{resblock_forward.3} parent=0 // pred_region
    _
  $region9: #{resblock_forward.3} parent=0 // pred_fallthru
    _
  // Predicated region
  $region10: #{resblock_forward.3} parent=0 // pred_check
    _
  $region11: #{resblock_forward.3} parent=0 // pred_check_branch
    %13 = sbr.rel (0) target = $region13
  $region12: #{resblock_forward.3} parent=0 // pred_region
    _
  $region13: #{resblock_forward.3} parent=0 // pred_fallthru
    _
  %v15 = vld [vmem:[%s0] sm:$0xf]
  %v16 = vld [vmem:[%s0 + $0x4] sm:$0xf]
  %v17 = vld [vmem:[%s0 + $0x8] sm:$0xf]
  %v18 = vld [vmem:[%s0 + $0xc] sm:$0xf]
  %v19 = vld [vmem:[%s0 + $0x10] sm:$0xf]
  %v20 = vld [vmem:[%s0 + $0x14] sm:$0xf]
  %v21 = vld [vmem:[%s0 + $0x18] sm:$0xf]
  %v22 = vld [vmem:[%s0 + $0x1c] sm:$0xf]
  %v23 = vld [vmem:[%s0 + $0x20] sm:$0xf]
  %v24 = vld [vmem:[%s0 + $0x24] sm:$0xf]
  %v25 = vld [vmem:[%s0 + $0x28] sm:$0xf]
  %v26 = vld [vmem:[%s0 + $0x2c] sm:$0xf]
  %v27 = vld [vmem:[%s0 + $0x30] sm:$0xf]
  %v28 = vld [vmem:[%s0 + $0x34] sm:$0xf]
  %v29 = vld [vmem:[%s0 + $0x38] sm:$0xf]
  %v30 = vld [vmem:[%s0 + $0x3c] sm:$0xf]
  %v31 = vld [vmem:[%s1] sm:$0xf]
  %v32 = vld [vmem:[%s1 + $0x4] sm:$0xf]
  %v33 = vld [vmem:[%s1 + $0x8] sm:$0xf]
  %v34 = vld [vmem:[%s1 + $0xc] sm:$0xf]
  %v35 = vld [vmem:[%s2] sm:$0x1]
  %v37 = vlaneseq
  %v38 = vshrl.u32 %v37, 7
  %v39 = vsub.s32 0, %v38
  %v40 = vrot.slane %v35, %v39
  %v58 = vunpack.c.l.b16 %v15
  %v59 = vunpack.c.l.b16 %v16
  %v60 = vunpack.c.l.b16 %v17
  %v61 = vunpack.c.l.b16 %v18
  %v62 = vunpack.c.l.b16 %v19
  %v63 = vunpack.c.l.b16 %v20
  %v64 = vunpack.c.l.b16 %v21
  %v65 = vunpack.c.l.b16 %v22
  %v66 = vunpack.c.l.b16 %v23
  %v67 = vunpack.c.l.b16 %v24
  %v68 = vunpack.c.l.b16 %v25
  %v69 = vunpack.c.l.b16 %v26
  %v70 = vunpack.c.l.b16 %v27
  %v71 = vunpack.c.l.b16 %v28
  %v72 = vunpack.c.l.b16 %v29
  %v73 = vunpack.c.l.b16 %v30
  %v74 = vpack.c.b16 %v59, %v58
  %v75 = vpack.c.b16 %v61, %v60
  %v76 = vpack.c.b16 %v63, %v62
  %v77 = vpack.c.b16 %v65, %v64
  %v78 = vpack.c.b16 %v67, %v66
  %v79 = vpack.c.b16 %v69, %v68
  %v80 = vpack.c.b16 %v71, %v70
  %v81 = vpack.c.b16 %v73, %v72
  %v86 = vunpack.c.l.b16 %v31
  %v87 = vunpack.c.l.b16 %v32
  %v88 = vunpack.c.l.b16 %v33
  %v89 = vunpack.c.l.b16 %v34
  %v90 = vpack.c.b16 %v87, %v86
  %v91 = vpack.c.b16 %v89, %v88
  %vm94 = vcmask 261120
  %v96 = vsel %vm94, %v74, 0
  %v99 = vsel %vm94, %v75, 0
  %v102 = vsel %vm94, %v76, 0
  %v105 = vsel %vm94, %v77, 0
  %v108 = vsel %vm94, %v78, 0
  %v111 = vsel %vm94, %v79, 0
  %v114 = vsel %vm94, %v80, 0
  %v117 = vsel %vm94, %v81, 0
  %119 = vmatprep.subr.bf16.mxu0 0
  %120 = vmatpush1.bf16.msra.mxu0 %v90
  %121 = vmatprep.subr.bf16.mxu0 0
  %122 = vmatpush1.bf16.msra.mxu0 %v91
  %123 = vmatprep.subr.bf16.mxu0 0
  %124 = vmatpush1.bf16.msra.mxu0 0
  %125 = vmatprep.subr.bf16.mxu0 0
  %126 = vmatpush1.bf16.msra.mxu0 0
  %127 = vmatprep.subr.bf16.mxu0 0
  %128 = vmatpush1.bf16.msra.mxu0 0
  %129 = vmatprep.subr.bf16.mxu0 0
  %130 = vmatpush1.bf16.msra.mxu0 0
  %131 = vmatprep.subr.bf16.mxu0 0
  %132 = vmatpush1.bf16.msra.mxu0 0
  %133 = vmatprep.subr.bf16.mxu0 0
  %134 = vmatpush1.bf16.msra.mxu0 0
  %135 = vmatprep.subr.bf16.mxu0 0
  %136 = vmatpush1.bf16.msra.mxu0 0
  %137 = vmatprep.subr.bf16.mxu0 0
  %138 = vmatpush1.bf16.msra.mxu0 0
  %139 = vmatprep.subr.bf16.mxu0 0
  %140 = vmatpush1.bf16.msra.mxu0 0
  %141 = vmatprep.subr.bf16.mxu0 0
  %142 = vmatpush1.bf16.msra.mxu0 0
  %143 = vmatprep.subr.bf16.mxu0 0
  %144 = vmatpush1.bf16.msra.mxu0 0
  %145 = vmatprep.subr.bf16.mxu0 0
  %146 = vmatpush1.bf16.msra.mxu0 0
  %147 = vmatprep.subr.bf16.mxu0 0
  %148 = vmatpush1.bf16.msra.mxu0 0
  %149 = vmatprep.subr.bf16.mxu0 0
  %150 = vmatpush1.bf16.msra.mxu0 0
  %151 = vmatprep.mubr.bf16.mxu0 0
  %152 = vmatmul.mubr.bf16.gmra.mrb[0].mxu0 %v96
  %v153 = vpop.f32.mrb[0].mxu0
  %v154 = vadd.f32 %v40, %v153
  %v155 = vpop.f32.mrb[0].mxu0
  %v156 = vpop.f32.mrb[0].mxu0
  %v157 = vadd.f32 %v40, %v156
  %v158 = vpop.f32.mrb[0].mxu0
  %159 = vmatprep.mubr.bf16.mxu0 0
  %160 = vmatmul.mubr.bf16.gmra.mrb[0].mxu0 %v99
  %v161 = vpop.f32.mrb[0].mxu0
  %v162 = vadd.f32 %v40, %v161
  %v163 = vpop.f32.mrb[0].mxu0
  %v164 = vpop.f32.mrb[0].mxu0
  %v165 = vadd.f32 %v40, %v164
  %v166 = vpop.f32.mrb[0].mxu0
  %167 = vmatprep.mubr.bf16.mxu0 0
  %168 = vmatmul.mubr.bf16.gmra.mrb[0].mxu0 %v102
  %v169 = vpop.f32.mrb[0].mxu0
  %v170 = vadd.f32 %v40, %v169
  %v171 = vpop.f32.mrb[0].mxu0
  %v172 = vpop.f32.mrb[0].mxu0
  %v173 = vadd.f32 %v40, %v172
  %v174 = vpop.f32.mrb[0].mxu0
  %175 = vmatprep.mubr.bf16.mxu0 0
  %176 = vmatmul.mubr.bf16.gmra.mrb[0].mxu0 %v105
  %v177 = vpop.f32.mrb[0].mxu0
  %v178 = vadd.f32 %v40, %v177
  %v179 = vpop.f32.mrb[0].mxu0
  %v180 = vpop.f32.mrb[0].mxu0
  %v181 = vadd.f32 %v40, %v180
  %v182 = vpop.f32.mrb[0].mxu0
  %183 = vmatprep.mubr.bf16.mxu0 0
  %184 = vmatmul.mubr.bf16.gmra.mrb[0].mxu0 %v108
  %v185 = vpop.f32.mrb[0].mxu0
  %v186 = vadd.f32 %v40, %v185
  %v187 = vpop.f32.mrb[0].mxu0
  %v188 = vpop.f32.mrb[0].mxu0
  %v189 = vadd.f32 %v40, %v188
  %v190 = vpop.f32.mrb[0].mxu0
  %191 = vmatprep.mubr.bf16.mxu0 0
  %192 = vmatmul.mubr.bf16.gmra.mrb[0].mxu0 %v111
  %v193 = vpop.f32.mrb[0].mxu0
  %v194 = vadd.f32 %v40, %v193
  %v195 = vpop.f32.mrb[0].mxu0
  %v196 = vpop.f32.mrb[0].mxu0
  %v197 = vadd.f32 %v40, %v196
  %v198 = vpop.f32.mrb[0].mxu0
  %199 = vmatprep.mubr.bf16.mxu0 0
  %200 = vmatmul.mubr.bf16.gmra.mrb[0].mxu0 %v114
  %v201 = vpop.f32.mrb[0].mxu0
  %v202 = vadd.f32 %v40, %v201
  %v203 = vpop.f32.mrb[0].mxu0
  %v204 = vpop.f32.mrb[0].mxu0
  %v205 = vadd.f32 %v40, %v204
  %v206 = vpop.f32.mrb[0].mxu0
  %207 = vmatprep.mubr.bf16.mxu0 0
  %208 = vmatmul.mubr.bf16.gmra.mrb[0].mxu0 %v117
  %v209 = vpop.f32.mrb[0].mxu0
  %v210 = vadd.f32 %v40, %v209
  %v211 = vpop.f32.mrb[0].mxu0
  %v212 = vpop.f32.mrb[0].mxu0
  %v213 = vadd.f32 %v40, %v212
  %v214 = vpop.f32.mrb[0].mxu0
  %215 = vdwg.mxu0
  %v216 = vpack.c.bf16 %v157, %v154
  %v217 = vpack.c.bf16 %v165, %v162
  %v218 = vpack.c.bf16 %v173, %v170
  %v219 = vpack.c.bf16 %v181, %v178
  %v220 = vpack.c.bf16 %v189, %v186
  %v221 = vpack.c.bf16 %v197, %v194
  %v222 = vpack.c.bf16 %v205, %v202
  %v223 = vpack.c.bf16 %v213, %v210
  %v232 = vunpack.c.l.b16 %v216
  %v233 = vunpack.c.h.b16 %v216
  %v234 = vunpack.c.l.b16 %v217
  %v235 = vunpack.c.h.b16 %v217
  %v236 = vunpack.c.l.b16 %v218
  %v237 = vunpack.c.h.b16 %v218
  %v238 = vunpack.c.l.b16 %v219
  %v239 = vunpack.c.h.b16 %v219
  %v240 = vunpack.c.l.b16 %v220
  %v241 = vunpack.c.h.b16 %v220
  %v242 = vunpack.c.l.b16 %v221
  %v243 = vunpack.c.h.b16 %v221
  %v244 = vunpack.c.l.b16 %v222
  %v245 = vunpack.c.h.b16 %v222
  %v246 = vunpack.c.l.b16 %v223
  %v247 = vunpack.c.h.b16 %v223
  %v248 = vpack.c.b16 %v232, %v232
  %v249 = vpack.c.b16 %v233, %v233
  %v250 = vpack.c.b16 %v234, %v234
  %v251 = vpack.c.b16 %v235, %v235
  %v252 = vpack.c.b16 %v236, %v236
  %v253 = vpack.c.b16 %v237, %v237
  %v254 = vpack.c.b16 %v238, %v238
  %v255 = vpack.c.b16 %v239, %v239
  %v256 = vpack.c.b16 %v240, %v240
  %v257 = vpack.c.b16 %v241, %v241
  %v258 = vpack.c.b16 %v242, %v242
  %v259 = vpack.c.b16 %v243, %v243
  %v260 = vpack.c.b16 %v244, %v244
  %v261 = vpack.c.b16 %v245, %v245
  %v262 = vpack.c.b16 %v246, %v246
  %v263 = vpack.c.b16 %v247, %v247
  %280 = vst [vmem:[%s3] sm:$0xf] %v248
  %281 = vst [vmem:[%s3 + $0x4] sm:$0xf] %v249
  %282 = vst [vmem:[%s3 + $0x8] sm:$0xf] %v250
  %283 = vst [vmem:[%s3 + $0xc] sm:$0xf] %v251
  %284 = vst [vmem:[%s3 + $0x10] sm:$0xf] %v252
  %285 = vst [vmem:[%s3 + $0x14] sm:$0xf] %v253
  %286 = vst [vmem:[%s3 + $0x18] sm:$0xf] %v254
  %287 = vst [vmem:[%s3 + $0x1c] sm:$0xf] %v255
  %288 = vst [vmem:[%s3 + $0x20] sm:$0xf] %v256
  %289 = vst [vmem:[%s3 + $0x24] sm:$0xf] %v257
  %290 = vst [vmem:[%s3 + $0x28] sm:$0xf] %v258
  %291 = vst [vmem:[%s3 + $0x2c] sm:$0xf] %v259
  %292 = vst [vmem:[%s3 + $0x30] sm:$0xf] %v260
  %293 = vst [vmem:[%s3 + $0x34] sm:$0xf] %v261
  %294 = vst [vmem:[%s3 + $0x38] sm:$0xf] %v262
  %295 = vst [vmem:[%s3 + $0x3c] sm:$0xf] %v263
  // Predicated region
  $region14: #{resblock_forward.3} parent=0 // pred_check
    _
  $region15: #{resblock_forward.3} parent=0 // pred_check_branch
    %297 = sbr.rel (0) target = $region17
  $region16: #{resblock_forward.3} parent=0 // pred_region
    _
  $region17: #{resblock_forward.3} parent=0 // pred_fallthru
    _
  // Predicated region
  $region18: #{resblock_forward.3} parent=0 // pred_check
    _
  $region19: #{resblock_forward.3} parent=0 // pred_check_branch
    %299 = sbr.rel (0) target = $region21
  $region20: #{resblock_forward.3} parent=0 // pred_region
    _
  $region21: #{resblock_forward.3} parent=0 // pred_fallthru
    _

// kernel: resblock_forward.5
$region0: #{resblock_forward.5}
  #allocation0 [shape = 'u32[]', space=smem, size = 0x4, offset = 0x4, fixed_abs, tag = 'smem constant byte address 0x4 - core index']
  #allocation1 [shape = 'u32[144,128]{1,0:T(1,128)}', space=vmem, size = 0x12000, scoped, tag = 'internal scratch']
  %s0 = inlined_call_operand.vmem [shape: bf16[2,10,10,128], index: 0, kind: input, shape index: {}]
  %s1 = inlined_call_operand.vmem [shape: bf16[1152,128], index: 1, kind: input, shape index: {}]
  %s2 = inlined_call_operand.vmem [shape: f32[1,128], index: 2, kind: input, shape index: {}]
  %s3 = inlined_call_operand.vmem [shape: bf16[128,128], index: 3, kind: input, shape index: {}]
  %s4 = inlined_call_operand.hbm [shape: f32[128,128], index: 4, kind: output, shape index: {}]
  %s5 = sld [smem:[#allocation0]]
  $region49: #{resblock_forward.5} parent=0
    _
  %s7 = ssub.s32 1, %s5
  %s8 = scalar_select 0, %s7, %s5
  $region1: #{resblock_forward.5} parent=0
    #allocation2 [shape = 'u8[65536]{0}', space=vmem, size = 0x10000, scoped, tag = 'output window, operand 0']
    #allocation3 [shape = 's32[2]{0}', space=sflag, size = 0x8, scoped, tag = 'scoped memory for resblock_forward.5']
    %9 = vsyncpa [#allocation3], 0
    %s10 = scalar_lea.sflag [#allocation3], 1
    %11 = vsyncpa %s10, 0
    loop: start=0, step=1, limit=4
    $region2: #{resblock_forward.5} parent=1 // loop_pre_header
      _
    $region3: #{resblock_forward.5} parent=1 // loop_header
      %s13 = sphi 0, %s17
      %p14 = scmp.ge.s32.totalorder %s13, 4
      %s20 = sphi 0, %s32
      %s21 = sphi 0, %s28
      %s22 = sphi 0, %s20
      %s23 = sphi 0, %s21
      %s24 = sphi 0, %s22
      %s25 = sphi 0, %s23
      %s35 = sphi 0, %s37
      %s38 = sphi 0, %s35
      %s39 = sphi 0, %s38
      %s55 = sphi 0, %s39
      %s61 = sphi 0, %s63
      %s64 = sphi 0, %s61
      %s65 = sphi 0, %s64
      %s81 = sphi 0, %s65
      %s87 = sphi 0, %s89
      %s90 = sphi 0, %s87
      %s91 = sphi 0, %s90
      %s107 = sphi 0, %s91
      %s115 = sphi 0, %s117
      %s118 = sphi 0, %s115
      %s119 = sphi 0, %s118
      %s135 = sphi 0, %s119
      %s143 = sphi 0, %s145
      %s146 = sphi 0, %s143
      %s147 = sphi 0, %s146
      %s163 = sphi 0, %s147
    $region4: #{resblock_forward.5} parent=1 // loop_header_branch
      %16 = sbr.rel (%p14) target = $region8
    $region5: #{resblock_forward.5} parent=1 // loop_body
      %s18 = ssub.s32 %s13, 1
      %s19 = ssub.s32 %s13, 2
      %s26 = sadd.s32 1, %s21
      %p27 = scmp.ge.s32.totalorder %s26, 1
      %s28 = scalar_select %p27, 0, %s26
      %s29 = sadd.s32 1, %s20
      %s30 = scalar_select %p27, %s29, %s20
      %p31 = scmp.ge.s32.totalorder %s30, 2
      %s32 = scalar_select %p31, 0, %s30
      %s33 = ssub.s32 %s20, %s32
      %p34 = scmp.eq.s32.totalorder %s33, 0
      %s36 = sadd.s32 %s35, 1
      %s37 = scalar_select %p34, %s35, %s36
      %p40 = pneg %p34
      %p41 = scmp.eq.s32.totalorder %s13, 1
      %p42 = por %p40, %p41
      %p43 = scmp.ne.s32.totalorder %s35, %s38
      %p44 = scmp.eq.s32.totalorder %s13, 0
      %p45 = por %p43, %p44
      %p46 = scmp.ne.s32.totalorder %s35, %s38
      %p47 = scmp.eq.s32.totalorder %s18, 1
      %p48 = por %p46, %p47
      %p49 = scmp.ne.s32.totalorder %s38, %s39
      %p50 = scmp.eq.s32.totalorder %s18, 0
      %p51 = por %p49, %p50
      %p52 = scmp.ne.s32.totalorder %s38, %s39
      %p53 = scmp.eq.s32.totalorder %s19, 1
      %p54 = por %p52, %p53
      %p56 = scmp.ne.s32.totalorder %s39, %s55
      %p57 = scmp.eq.s32.totalorder %s19, 0
      %p58 = por %p56, %p57
      %s59 = ssub.s32 %s21, %s28
      %p60 = scmp.eq.s32.totalorder %s59, 0
      %s62 = sadd.s32 %s61, 1
      %s63 = scalar_select %p60, %s61, %s62
      %p66 = pneg %p60
      %p67 = scmp.eq.s32.totalorder %s13, 1
      %p68 = por %p66, %p67
      %p69 = scmp.ne.s32.totalorder %s61, %s64
      %p70 = scmp.eq.s32.totalorder %s13, 0
      %p71 = por %p69, %p70
      %p72 = scmp.ne.s32.totalorder %s61, %s64
      %p73 = scmp.eq.s32.totalorder %s18, 1
      %p74 = por %p72, %p73
      %p75 = scmp.ne.s32.totalorder %s64, %s65
      %p76 = scmp.eq.s32.totalorder %s18, 0
      %p77 = por %p75, %p76
      %p78 = scmp.ne.s32.totalorder %s64, %s65
      %p79 = scmp.eq.s32.totalorder %s19, 1
      %p80 = por %p78, %p79
      %p82 = scmp.ne.s32.totalorder %s65, %s81
      %p83 = scmp.eq.s32.totalorder %s19, 0
      %p84 = por %p82, %p83
      %s85 = ssub.s32 %s21, %s28
      %p86 = scmp.eq.s32.totalorder %s85, 0
      %s88 = sadd.s32 %s87, 1
      %s89 = scalar_select %p86, %s87, %s88
      %p92 = pneg %p86
      %p93 = scmp.eq.s32.totalorder %s13, 1
      %p94 = por %p92, %p93
      %p95 = scmp.ne.s32.totalorder %s87, %s90
      %p96 = scmp.eq.s32.totalorder %s13, 0
      %p97 = por %p95, %p96
      %p98 = scmp.ne.s32.totalorder %s87, %s90
      %p99 = scmp.eq.s32.totalorder %s18, 1
      %p100 = por %p98, %p99
      %p101 = scmp.ne.s32.totalorder %s90, %s91
      %p102 = scmp.eq.s32.totalorder %s18, 0
      %p103 = por %p101, %p102
      %p104 = scmp.ne.s32.totalorder %s90, %s91
      %p105 = scmp.eq.s32.totalorder %s19, 1
      %p106 = por %p104, %p105
      %p108 = scmp.ne.s32.totalorder %s91, %s107
      %p109 = scmp.eq.s32.totalorder %s19, 0
      %p110 = por %p108, %p109
      %s111 = ssub.s32 %s20, %s32
      %s112 = ssub.s32 %s21, %s28
      %s113 = sor.u32 %s111, %s112
      %p114 = scmp.eq.s32.totalorder %s113, 0
      %s116 = sadd.s32 %s115, 1
      %s117 = scalar_select %p114, %s115, %s116
      %p120 = pneg %p114
      %p121 = scmp.eq.s32.totalorder %s13, 1
      %p122 = por %p120, %p121
      %p123 = scmp.ne.s32.totalorder %s115, %s118
      %p124 = scmp.eq.s32.totalorder %s13, 0
      %p125 = por %p123, %p124
      %p126 = scmp.ne.s32.totalorder %s115, %s118
      %p127 = scmp.eq.s32.totalorder %s18, 1
      %p128 = por %p126, %p127
      %p129 = scmp.ne.s32.totalorder %s118, %s119
      %p130 = scmp.eq.s32.totalorder %s18, 0
      %p131 = por %p129, %p130
      %p132 = scmp.ne.s32.totalorder %s118, %s119
      %p133 = scmp.eq.s32.totalorder %s19, 1
      %p134 = por %p132, %p133
      %p136 = scmp.ne.s32.totalorder %s119, %s135
      %p137 = scmp.eq.s32.totalorder %s19, 0
      %p138 = por %p136, %p137
      %s139 = ssub.s32 %s20, %s32
      %s140 = ssub.s32 %s21, %s28
      %s141 = sor.u32 %s139, %s140
      %p142 = scmp.eq.s32.totalorder %s141, 0
      %s144 = sadd.s32 %s143, 1
      %s145 = scalar_select %p142, %s143, %s144
      %p148 = pneg %p142
      %p149 = scmp.eq.s32.totalorder %s13, 1
      %p150 = por %p148, %p149
      %p151 = scmp.ne.s32.totalorder %s143, %s146
      %p152 = scmp.eq.s32.totalorder %s13, 0
      %p153 = por %p151, %p152
      %p154 = scmp.ne.s32.totalorder %s143, %s146
      %p155 = scmp.eq.s32.totalorder %s18, 1
      %p156 = por %p154, %p155
      %p157 = scmp.ne.s32.totalorder %s146, %s147
      %p158 = scmp.eq.s32.totalorder %s18, 0
      %p159 = por %p157, %p158
      %p160 = scmp.ne.s32.totalorder %s146, %s147
      %p161 = scmp.eq.s32.totalorder %s19, 1
      %p162 = por %p160, %p161
      %p164 = scmp.ne.s32.totalorder %s147, %s163
      %p165 = scmp.eq.s32.totalorder %s19, 0
      %p166 = por %p164, %p165
      %p167 = scmp.le.s32.totalorder 1, %s13
      %p168 = scmp.lt.s32.totalorder %s13, 3
      %p169 = pnand %p167, %p168
      %p170 = pneg %p169
      // Predicated region
      $region9: #{resblock_forward.5} parent=5 // pred_check
        _
      $region10: #{resblock_forward.5} parent=5 // pred_check_branch
        %172 = sbr.rel (%p169) target = $region12
      $region11: #{resblock_forward.5} parent=5 // pred_region
        %s173 = ssub.s32 %s13, 1
        // Predicated region
        $region13: #{resblock_forward.5} parent=11 // pred_check
          %p174 = pneg %p77
        $region14: #{resblock_forward.5} parent=11 // pred_check_branch
          %176 = sbr.rel (%p174) target = $region16
        $region15: #{resblock_forward.5} parent=11 // pred_region
          %p177 = scmp.lt.s32.totalorder %s23, 0
          %s178 = scalar_select %p177, %s23, 0
          %s179 = smul.addr %s178, 4
          %s180 = scalar_lea.vmem %s1, %s179
        $region16: #{resblock_forward.5} parent=11 // pred_fallthru
          _
        // Predicated region
        $region17: #{resblock_forward.5} parent=11 // pred_check
          %p181 = pneg %p103
        $region18: #{resblock_forward.5} parent=11 // pred_check_branch
          %183 = sbr.rel (%p181) target = $region20
        $region19: #{resblock_forward.5} parent=11 // pred_region
          %p184 = scmp.lt.s32.totalorder %s23, 0
          %s185 = scalar_select %p184, %s23, 0
          %s186 = scalar_lea.vmem %s2, %s185
        $region20: #{resblock_forward.5} parent=11 // pred_fallthru
          _
      $region12: #{resblock_forward.5} parent=5 // pred_fallthru
        _
      %p187 = scmp.lt.s32.totalorder %s13, 2
      // Predicated region
      $region21: #{resblock_forward.5} parent=5 // pred_check
        %p188 = pneg %p187
      $region22: #{resblock_forward.5} parent=5 // pred_check_branch
        %190 = sbr.rel (%p188) target = $region24
      $region23: #{resblock_forward.5} parent=5 // pred_region
        // Predicated region
        $region25: #{resblock_forward.5} parent=23 // pred_check
          %p191 = pneg %p45
        $region26: #{resblock_forward.5} parent=23 // pred_check_branch
          %193 = sbr.rel (%p191) target = $region28
        $region27: #{resblock_forward.5} parent=23 // pred_region
          %p194 = scmp.lt.s32.totalorder %s20, 1
          %s195 = scalar_select %p194, %s20, 1
          %s196 = smul.addr %s195, 20
          %s197 = smul.addr %s196, 4
          %s198 = scalar_lea.vmem %s0, %s197
        $region28: #{resblock_forward.5} parent=23 // pred_fallthru
          _
        // Predicated region
        $region29: #{resblock_forward.5} parent=23 // pred_check
          %p199 = pneg %p125
        $region30: #{resblock_forward.5} parent=23 // pred_check_branch
          %201 = sbr.rel (%p199) target = $region32
        $region31: #{resblock_forward.5} parent=23 // pred_region
          %s202 = smul.u32 8, %s20
          %p203 = scmp.lt.s32.totalorder %s202, 15
          %s204 = scalar_select %p203, %s202, 15
          %p205 = scmp.lt.s32.totalorder %s21, 0
          %s206 = scalar_select %p205, %s21, 0
          %s207 = sadd.s32 %s206, %s204
          %s208 = smul.addr %s207, 4
          %s209 = scalar_lea.vmem %s3, %s208
          %s210 = smul.u32 8, %s20
        $region32: #{resblock_forward.5} parent=23 // pred_fallthru
          _
      $region24: #{resblock_forward.5} parent=5 // pred_fallthru
        _
      %p211 = scmp.le.s32.totalorder 1, %s13
      %p212 = scmp.lt.s32.totalorder %s13, 3
      %p213 = pnand %p211, %p212
      %p214 = pneg %p213
      // Predicated region
      $region33: #{resblock_forward.5} parent=5 // pred_check
        _
      $region34: #{resblock_forward.5} parent=5 // pred_check_branch
        %216 = sbr.rel (%p213) target = $region36
      $region35: #{resblock_forward.5} parent=5 // pred_region
        %s217 = ssub.s32 %s13, 1
        %p218 = scmp.lt.s32.totalorder %s22, 1
        %s219 = scalar_select %p218, %s22, 1
        %s220 = smul.addr %s219, 20
        %s221 = smul.addr %s220, 4
        %s222 = scalar_lea.vmem %s0, %s221
        %p223 = pneg %p51
        %p224 = pneg %p48
        %p225 = scmp.lt.s32.totalorder %s23, 0
        %s226 = scalar_select %p225, %s23, 0
        %s227 = smul.addr %s226, 4
        %s228 = scalar_lea.vmem %s1, %s227
        %p229 = pneg %p77
        %p230 = pneg %p74
        %p231 = scmp.lt.s32.totalorder %s23, 0
        %s232 = scalar_select %p231, %s23, 0
        %s233 = scalar_lea.vmem %s2, %s232
        %p234 = pneg %p103
        %p235 = pneg %p100
        %s236 = smul.u32 8, %s22
        %p237 = scmp.lt.s32.totalorder %s236, 15
        %s238 = scalar_select %p237, %s236, 15
        %p239 = scmp.lt.s32.totalorder %s23, 0
        %s240 = scalar_select %p239, %s23, 0
        %s241 = sadd.s32 %s240, %s238
        %s242 = smul.addr %s241, 4
        %s243 = scalar_lea.vmem %s3, %s242
        %p244 = pneg %p131
        %p245 = pneg %p128
        %p246 = pneg %p159
        %p247 = pneg %p156
        %s248 = sand.u32 %s146, 1
        %s249 = scalar_lea.sflag [#allocation3], %s248
        %s250 = sand.u32 %s146, 1
        %s251 = smul.addr %s250, 64
        %s252 = scalar_lea.vmem [#allocation2], %s251
        %p253 = scmp.lt.s32.totalorder %s22, 1
        %s254 = scalar_select %p253, %s22, 1
        %s255 = smul.addr %s254, 20
        %s256 = smul.addr %s255, 4
        %s257 = scalar_lea.vmem %s0, %s256
        %p258 = scmp.lt.s32.totalorder %s23, 0
        %s259 = scalar_select %p258, %s23, 0
        %s260 = smul.addr %s259, 4
        %s261 = scalar_lea.vmem %s1, %s260
        %p262 = scmp.lt.s32.totalorder %s23, 0
        %s263 = scalar_select %p262, %s23, 0
        %s264 = scalar_lea.vmem %s2, %s263
        %s265 = smul.u32 8, %s22
        %p266 = scmp.lt.s32.totalorder %s265, 15
        %s267 = scalar_select %p266, %s265, 15
        %p268 = scmp.lt.s32.totalorder %s23, 0
        %s269 = scalar_select %p268, %s23, 0
        %s270 = sadd.s32 %s269, %s267
        %s271 = smul.addr %s270, 4
        %s272 = scalar_lea.vmem %s3, %s271
        %s273 = smul.u32 8, %s22
        %s274 = smul.u32 8, %s22
        %v276 = vld [vmem:[%s257] sm:$0xf]
        %v277 = vld [vmem:[%s257 + $0x8] sm:$0xf]
        %v278 = vld [vmem:[%s257 + $0x10] sm:$0xf]
        %v279 = vld [vmem:[%s257 + $0x18] sm:$0xf]
        %v280 = vld [vmem:[%s257 + $0x20] sm:$0xf]
        %v281 = vld [vmem:[%s257 + $0x28] sm:$0xf]
        %v282 = vld [vmem:[%s257 + $0x30] sm:$0xf]
        %v283 = vld [vmem:[%s257 + $0x38] sm:$0xf]
        %v284 = vld [vmem:[%s261] sm:$0xf]
        %v285 = vld [vmem:[%s261 + $0x4] sm:$0xf]
        %v286 = vld [vmem:[%s261 + $0x8] sm:$0xf]
        %v287 = vld [vmem:[%s261 + $0xc] sm:$0xf]
        %v288 = vld [vmem:[%s261 + $0x10] sm:$0xf]
        %v289 = vld [vmem:[%s261 + $0x14] sm:$0xf]
        %v290 = vld [vmem:[%s261 + $0x18] sm:$0xf]
        %v291 = vld [vmem:[%s261 + $0x1c] sm:$0xf]
        %v292 = vld [vmem:[%s261 + $0x20] sm:$0xf]
        %v293 = vld [vmem:[%s261 + $0x24] sm:$0xf]
        %v294 = vld [vmem:[%s261 + $0x28] sm:$0xf]
        %v295 = vld [vmem:[%s261 + $0x2c] sm:$0xf]
        %v296 = vld [vmem:[%s261 + $0x30] sm:$0xf]
        %v297 = vld [vmem:[%s261 + $0x34] sm:$0xf]
        %v298 = vld [vmem:[%s261 + $0x38] sm:$0xf]
        %v299 = vld [vmem:[%s261 + $0x3c] sm:$0xf]
        %v300 = vld [vmem:[%s257 + $0x4] sm:$0x1]
        %v301 = vld [vmem:[%s257 + $0xc] sm:$0x1]
        %v302 = vld [vmem:[%s257 + $0x14] sm:$0x1]
        %v303 = vld [vmem:[%s257 + $0x1c] sm:$0x1]
        %v304 = vld [vmem:[%s257 + $0x24] sm:$0x1]
        %v305 = vld [vmem:[%s257 + $0x2c] sm:$0x1]
        %v306 = vld [vmem:[%s257 + $0x34] sm:$0x1]
        %v307 = vld [vmem:[%s257 + $0x3c] sm:$0x1]
        %vm308 = vsmask.f32 3328
        %vm309 = vsmask.f32 7440
        %vm310 = vmor %vm308, %vm309
        %v312 = vshrl.u32 %v276, 16
        %v314 = vrot.slane %v312, 4
        %v315 = vshll.u32 %v276, 16
        %v317 = vrot.slane %v315, 5
        %v318 = vor.u32 %v314, %v317
        %v319 = vrot.slane %v318, 4
        %v321 = vshll.u32 %v300, 16
        %v323 = vrot.slane %v321, 5
        %v324 = vsel %vm310, %v319, %v323
        %v326 = vshrl.u32 %v277, 16
        %v328 = vrot.slane %v326, 4
        %v329 = vshll.u32 %v277, 16
        %v331 = vrot.slane %v329, 5
        %v332 = vor.u32 %v328, %v331
        %v333 = vrot.slane %v332, 4
        %v335 = vshll.u32 %v301, 16
        %v337 = vrot.slane %v335, 5
        %v338 = vsel %vm310, %v333, %v337
        %v340 = vshrl.u32 %v278, 16
        %v342 = vrot.slane %v340, 4
        %v343 = vshll.u32 %v278, 16
        %v345 = vrot.slane %v343, 5
        %v346 = vor.u32 %v342, %v345
        %v347 = vrot.slane %v346, 4
        %v349 = vshll.u32 %v302, 16
        %v351 = vrot.slane %v349, 5
        %v352 = vsel %vm310, %v347, %v351
        %v354 = vshrl.u32 %v279, 16
        %v356 = vrot.slane %v354, 4
        %v357 = vshll.u32 %v279, 16
        %v359 = vrot.slane %v357, 5
        %v360 = vor.u32 %v356, %v359
        %v361 = vrot.slane %v360, 4
        %v363 = vshll.u32 %v303, 16
        %v365 = vrot.slane %v363, 5
        %v366 = vsel %vm310, %v361, %v365
        %v368 = vshrl.u32 %v280, 16
        %v370 = vrot.slane %v368, 4
        %v371 = vshll.u32 %v280, 16
        %v373 = vrot.slane %v371, 5
        %v374 = vor.u32 %v370, %v373
        %v375 = vrot.slane %v374, 4
        %v377 = vshll.u32 %v304, 16
        %v379 = vrot.slane %v377, 5
        %v380 = vsel %vm310, %v375, %v379
        %v382 = vshrl.u32 %v281, 16
        %v384 = vrot.slane %v382, 4
        %v385 = vshll.u32 %v281, 16
        %v387 = vrot.slane %v385, 5
        %v388 = vor.u32 %v384, %v387
        %v389 = vrot.slane %v388, 4
        %v391 = vshll.u32 %v305, 16
        %v393 = vrot.slane %v391, 5
        %v394 = vsel %vm310, %v389, %v393
        %v396 = vshrl.u32 %v282, 16
        %v398 = vrot.slane %v396, 4
        %v399 = vshll.u32 %v282, 16
        %v401 = vrot.slane %v399, 5
        %v402 = vor.u32 %v398, %v401
        %v403 = vrot.slane %v402, 4
        %v405 = vshll.u32 %v306, 16
        %v407 = vrot.slane %v405, 5
        %v408 = vsel %vm310, %v403, %v407
        %v410 = vshrl.u32 %v283, 16
        %v412 = vrot.slane %v410, 4
        %v413 = vshll.u32 %v283, 16
        %v415 = vrot.slane %v413, 5
        %v416 = vor.u32 %v412, %v415
        %v417 = vrot.slane %v416, 4
        %v419 = vshll.u32 %v307, 16
        %v421 = vrot.slane %v419, 5
        %v422 = vsel %vm310, %v417, %v421
        %v423 = vld [vmem:[%s261 + $0x40] sm:$0xf]
        %v424 = vld [vmem:[%s261 + $0x44] sm:$0xf]
        %v425 = vld [vmem:[%s261 + $0x48] sm:$0xf]
        %v426 = vld [vmem:[%s261 + $0x4c] sm:$0xf]
        %v427 = vld [vmem:[%s261 + $0x50] sm:$0xf]
        %v428 = vld [vmem:[%s261 + $0x54] sm:$0xf]
        %v429 = vld [vmem:[%s261 + $0x58] sm:$0xf]
        %v430 = vld [vmem:[%s261 + $0x5c] sm:$0xf]
        %v431 = vld [vmem:[%s261 + $0x60] sm:$0xf]
        %v432 = vld [vmem:[%s261 + $0x64] sm:$0xf]
        %v433 = vld [vmem:[%s261 + $0x68] sm:$0xf]
        %v434 = vld [vmem:[%s261 + $0x6c] sm:$0xf]
        %v435 = vld [vmem:[%s261 + $0x70] sm:$0xf]
        %v436 = vld [vmem:[%s261 + $0x74] sm:$0xf]
        %v437 = vld [vmem:[%s261 + $0x78] sm:$0xf]
        %v438 = vld [vmem:[%s261 + $0x7c] sm:$0xf]
        %v439 = vunpack.c.l.b16 %v324
        %v440 = vunpack.c.l.b16 %v338
        %v441 = vunpack.c.l.b16 %v352
        %v442 = vunpack.c.l.b16 %v366
        %v443 = vunpack.c.l.b16 %v380
        %v444 = vunpack.c.l.b16 %v394
        %v445 = vunpack.c.l.b16 %v408
        %v446 = vunpack.c.l.b16 %v422
        %v447 = vpack.c.b16 %v440, %v439
        %v448 = vpack.c.b16 %v442, %v441
        %v449 = vpack.c.b16 %v444, %v443
        %v450 = vpack.c.b16 %v446, %v445
        %v471 = vunpack.c.l.b16 %v423
        %v472 = vunpack.c.l.b16 %v424
        %v473 = vunpack.c.l.b16 %v425
        %v474 = vunpack.c.l.b16 %v426
        %v475 = vunpack.c.l.b16 %v427
        %v476 = vunpack.c.l.b16 %v428
        %v477 = vunpack.c.l.b16 %v429
        %v478 = vunpack.c.l.b16 %v430
        %v479 = vunpack.c.l.b16 %v431
        %v480 = vunpack.c.l.b16 %v432
        %v481 = vunpack.c.l.b16 %v433
        %v482 = vunpack.c.l.b16 %v434
        %v483 = vunpack.c.l.b16 %v435
        %v484 = vunpack.c.l.b16 %v436
        %v485 = vunpack.c.l.b16 %v437
        %v486 = vunpack.c.l.b16 %v438
        %v487 = vpack.c.b16 %v472, %v471
        %v488 = vpack.c.b16 %v474, %v473
        %v489 = vpack.c.b16 %v476, %v475
        %v490 = vpack.c.b16 %v478, %v477
        %v491 = vpack.c.b16 %v480, %v479
        %v492 = vpack.c.b16 %v482, %v481
        %v493 = vpack.c.b16 %v484, %v483
        %v494 = vpack.c.b16 %v486, %v485
        %503 = vmatprep.subr.bf16.mxu0 0
        %504 = vmatpush1.bf16.msra.mxu0 %v487
        %505 = vmatprep.subr.bf16.mxu0 0
        %506 = vmatpush1.bf16.msra.mxu0 %v488
        %507 = vmatprep.subr.bf16.mxu0 0
        %508 = vmatpush1.bf16.msra.mxu0 %v489
        %509 = vmatprep.subr.bf16.mxu0 0
        %510 = vmatpush1.bf16.msra.mxu0 %v490
        %511 = vmatprep.subr.bf16.mxu0 0
        %512 = vmatpush1.bf16.msra.mxu0 %v491
        %513 = vmatprep.subr.bf16.mxu0 0
        %514 = vmatpush1.bf16.msra.mxu0 %v492
        %515 = vmatprep.subr.bf16.mxu0 0
        %516 = vmatpush1.bf16.msra.mxu0 %v493
        %517 = vmatprep.subr.bf16.mxu0 0
        %518 = vmatpush1.bf16.msra.mxu0 %v494
        %519 = vmatprep.subr.bf16.mxu0 0
        %520 = vmatpush1.bf16.msra.mxu0 0
        %521 = vmatprep.subr.bf16.mxu0 0
        %522 = vmatpush1.bf16.msra.mxu0 0
        %523 = vmatprep.subr.bf16.mxu0 0
        %524 = vmatpush1.bf16.msra.mxu0 0
        %525 = vmatprep.subr.bf16.mxu0 0
        %526 = vmatpush1.bf16.msra.mxu0 0
        %527 = vmatprep.subr.bf16.mxu0 0
        %528 = vmatpush1.bf16.msra.mxu0 0
        %529 = vmatprep.subr.bf16.mxu0 0
        %530 = vmatpush1.bf16.msra.mxu0 0
        %531 = vmatprep.subr.bf16.mxu0 0
        %532 = vmatpush1.bf16.msra.mxu0 0
        %533 = vmatprep.subr.bf16.mxu0 0
        %534 = vmatpush1.bf16.msra.mxu0 0
        %535 = vmatprep.mubr.bf16.mxu0 0
        %536 = vmatmul.mubr.bf16.gmra.mrb[0].mxu0 %v447
        %v537 = vpop.f32.mrb[0].mxu0
        %v538 = vadd.f32 0.0, %v537
        %v539 = vpop.f32.mrb[0].mxu0
        %v540 = vpop.f32.mrb[0].mxu0
        %v541 = vadd.f32 0.0, %v540
        %v542 = vpop.f32.mrb[0].mxu0
        %543 = vmatprep.mubr.bf16.mxu0 0
        %544 = vmatmul.mubr.bf16.gmra.mrb[0].mxu0 %v448
        %v545 = vpop.f32.mrb[0].mxu0
        %v546 = vadd.f32 0.0, %v545
        %v547 = vpop.f32.mrb[0].mxu0
        %v548 = vpop.f32.mrb[0].mxu0
        %v549 = vadd.f32 0.0, %v548
        %v550 = vpop.f32.mrb[0].mxu0
        %551 = vmatprep.mubr.bf16.mxu0 0
        %552 = vmatmul.mubr.bf16.gmra.mrb[0].mxu0 %v449
        %v553 = vpop.f32.mrb[0].mxu0
        %v554 = vadd.f32 0.0, %v553
        %v555 = vpop.f32.mrb[0].mxu0
        %v556 = vpop.f32.mrb[0].mxu0
        %v557 = vadd.f32 0.0, %v556
        %v558 = vpop.f32.mrb[0].mxu0
        %559 = vmatprep.mubr.bf16.mxu0 0
        %560 = vmatmul.mubr.bf16.gmra.mrb[0].mxu0 %v450
        %v561 = vpop.f32.mrb[0].mxu0
        %v562 = vadd.f32 0.0, %v561
        %v563 = vpop.f32.mrb[0].mxu0
        %v564 = vpop.f32.mrb[0].mxu0
        %v565 = vadd.f32 0.0, %v564
        %v566 = vpop.f32.mrb[0].mxu0
        %567 = vdwg.mxu0
        %v576 = vunpack.c.l.b16 %v276
        %v577 = vunpack.c.l.b16 %v277
        %v578 = vunpack.c.l.b16 %v278
        %v579 = vunpack.c.l.b16 %v279
        %v580 = vunpack.c.l.b16 %v280
        %v581 = vunpack.c.l.b16 %v281
        %v582 = vunpack.c.l.b16 %v282
        %v583 = vunpack.c.l.b16 %v283
        %v584 = vpack.c.b16 %v577, %v576
        %v585 = vpack.c.b16 %v579, %v578
        %v586 = vpack.c.b16 %v581, %v580
        %v587 = vpack.c.b16 %v583, %v582
        %v608 = vunpack.c.l.b16 %v284
        %v609 = vunpack.c.l.b16 %v285
        %v610 = vunpack.c.l.b16 %v286
        %v611 = vunpack.c.l.b16 %v287
        %v612 = vunpack.c.l.b16 %v288
        %v613 = vunpack.c.l.b16 %v289
        %v614 = vunpack.c.l.b16 %v290
        %v615 = vunpack.c.l.b16 %v291
        %v616 = vunpack.c.l.b16 %v292
        %v617 = vunpack.c.l.b16 %v293
        %v618 = vunpack.c.l.b16 %v294
        %v619 = vunpack.c.l.b16 %v295
        %v620 = vunpack.c.l.b16 %v296
        %v621 = vunpack.c.l.b16 %v297
        %v622 = vunpack.c.l.b16 %v298
        %v623 = vunpack.c.l.b16 %v299
        %v624 = vpack.c.b16 %v609, %v608
        %v625 = vpack.c.b16 %v611, %v610
        %v626 = vpack.c.b16 %v613, %v612
        %v627 = vpack.c.b16 %v615, %v614
        %v628 = vpack.c.b16 %v617, %v616
        %v629 = vpack.c.b16 %v619, %v618
        %v630 = vpack.c.b16 %v621, %v620
        %v631 = vpack.c.b16 %v623, %v622
        %640 = vmatprep.subr.bf16.mxu0 0
        %641 = vmatpush1.bf16.msra.mxu0 %v624
        %642 = vmatprep.subr.bf16.mxu0 0
        %643 = vmatpush1.bf16.msra.mxu0 %v625
        %644 = vmatprep.subr.bf16.mxu0 0
        %645 = vmatpush1.bf16.msra.mxu0 %v626
        %646 = vmatprep.subr.bf16.mxu0 0
        %647 = vmatpush1.bf16.msra.mxu0 %v627
        %648 = vmatprep.subr.bf16.mxu0 0
        %649 = vmatpush1.bf16.msra.mxu0 %v628
        %650 = vmatprep.subr.bf16.mxu0 0
        %651 = vmatpush1.bf16.msra.mxu0 %v629
        %652 = vmatprep.subr.bf16.mxu0 0
        %653 = vmatpush1.bf16.msra.mxu0 %v630
        %654 = vmatprep.subr.bf16.mxu0 0
        %655 = vmatpush1.bf16.msra.mxu0 %v631
        %656 = vmatprep.subr.bf16.mxu0 0
        %657 = vmatpush1.bf16.msra.mxu0 0
        %658 = vmatprep.subr.bf16.mxu0 0
        %659 = vmatpush1.bf16.msra.mxu0 0
        %660 = vmatprep.subr.bf16.mxu0 0
        %661 = vmatpush1.bf16.msra.mxu0 0
        %662 = vmatprep.subr.bf16.mxu0 0
        %663 = vmatpush1.bf16.msra.mxu0 0
        %664 = vmatprep.subr.bf16.mxu0 0
        %665 = vmatpush1.bf16.msra.mxu0 0
        %666 = vmatprep.subr.bf16.mxu0 0
        %667 = vmatpush1.bf16.msra.mxu0 0
        %668 = vmatprep.subr.bf16.mxu0 0
        %669 = vmatpush1.bf16.msra.mxu0 0
        %670 = vmatprep.subr.bf16.mxu0 0
        %671 = vmatpush1.bf16.msra.mxu0 0
        %672 = vmatprep.mubr.bf16.mxu0 0
        %673 = vmatmul.mubr.bf16.gmra.mrb[0].mxu0 %v584
        %v674 = vpop.f32.mrb[0].mxu0
        %v675 = vadd.f32 %v538, %v674
        %v676 = vpop.f32.mrb[0].mxu0
        %v677 = vpop.f32.mrb[0].mxu0
        %v678 = vadd.f32 %v541, %v677
        %v679 = vpop.f32.mrb[0].mxu0
        %680 = vmatprep.mubr.bf16.mxu0 0
        %681 = vmatmul.mubr.bf16.gmra.mrb[0].mxu0 %v585
        %v682 = vpop.f32.mrb[0].mxu0
        %v683 = vadd.f32 %v546, %v682
        %v684 = vpop.f32.mrb[0].mxu0
        %v685 = vpop.f32.mrb[0].mxu0
        %v686 = vadd.f32 %v549, %v685
        %v687 = vpop.f32.mrb[0].mxu0
        %688 = vmatprep.mubr.bf16.mxu0 0
        %689 = vmatmul.mubr.bf16.gmra.mrb[0].mxu0 %v586
        %v690 = vpop.f32.mrb[0].mxu0
        %v691 = vadd.f32 %v554, %v690
        %v692 = vpop.f32.mrb[0].mxu0
        %v693 = vpop.f32.mrb[0].mxu0
        %v694 = vadd.f32 %v557, %v693
        %v695 = vpop.f32.mrb[0].mxu0
        %696 = vmatprep.mubr.bf16.mxu0 0
        %697 = vmatmul.mubr.bf16.gmra.mrb[0].mxu0 %v587
        %v698 = vpop.f32.mrb[0].mxu0
        %v699 = vadd.f32 %v562, %v698
        %v700 = vpop.f32.mrb[0].mxu0
        %v701 = vpop.f32.mrb[0].mxu0
        %v702 = vadd.f32 %v565, %v701
        %v703 = vpop.f32.mrb[0].mxu0
        %704 = vdwg.mxu0
        %v705 = vld [vmem:[%s257] sm:$0xe]
        %v706 = vld [vmem:[%s257 + $0x8] sm:$0xe]
        %v707 = vld [vmem:[%s257 + $0x10] sm:$0xe]
        %v708 = vld [vmem:[%s257 + $0x18] sm:$0xe]
        %v709 = vld [vmem:[%s257 + $0x20] sm:$0xe]
        %v710 = vld [vmem:[%s257 + $0x28] sm:$0xe]
        %v711 = vld [vmem:[%s257 + $0x30] sm:$0xe]
        %v712 = vld [vmem:[%s257 + $0x38] sm:$0xe]
        %vm729 = vcmask 1042432
        %vm730 = vcmask 1046532
        %vm731 = vmor %vm729, %vm730
        %v732 = vrot.slane %v705, 5
        %v733 = vrot.slane %v732, 4
        %v734 = vrot.slane %v300, 5
        %v735 = vsel %vm731, %v733, %v734
        %v736 = vrot.slane %v706, 5
        %v737 = vrot.slane %v736, 4
        %v738 = vrot.slane %v301, 5
        %v739 = vsel %vm731, %v737, %v738
        %v740 = vrot.slane %v707, 5
        %v741 = vrot.slane %v740, 4
        %v742 = vrot.slane %v302, 5
        %v743 = vsel %vm731, %v741, %v742
        %v744 = vrot.slane %v708, 5
        %v745 = vrot.slane %v744, 4
        %v746 = vrot.slane %v303, 5
        %v747 = vsel %vm731, %v745, %v746
        %v748 = vrot.slane %v709, 5
        %v749 = vrot.slane %v748, 4
        %v750 = vrot.slane %v304, 5
        %v751 = vsel %vm731, %v749, %v750
        %v752 = vrot.slane %v710, 5
        %v753 = vrot.slane %v752, 4
        %v754 = vrot.slane %v305, 5
        %v755 = vsel %vm731, %v753, %v754
        %v756 = vrot.slane %v711, 5
        %v757 = vrot.slane %v756, 4
        %v758 = vrot.slane %v306, 5
        %v759 = vsel %vm731, %v757, %v758
        %v760 = vrot.slane %v712, 5
        %v761 = vrot.slane %v760, 4
        %v762 = vrot.slane %v307, 5
        %v763 = vsel %vm731, %v761, %v762
        %v764 = vld [vmem:[%s261 + $0x80] sm:$0xf]
        %v765 = vld [vmem:[%s261 + $0x84] sm:$0xf]
        %v766 = vld [vmem:[%s261 + $0x88] sm:$0xf]
        %v767 = vld [vmem:[%s261 + $0x8c] sm:$0xf]
        %v768 = vld [vmem:[%s261 + $0x90] sm:$0xf]
        %v769 = vld [vmem:[%s261 + $0x94] sm:$0xf]
        %v770 = vld [vmem:[%s261 + $0x98] sm:$0xf]
        %v771 = vld [vmem:[%s261 + $0x9c] sm:$0xf]
        %v772 = vld [vmem:[%s261 + $0xa0] sm:$0xf]
        %v773 = vld [vmem:[%s261 + $0xa4] sm:$0xf]
        %v774 = vld [vmem:[%s261 + $0xa8] sm:$0xf]
        %v775 = vld [vmem:[%s261 + $0xac] sm:$0xf]
        %v776 = vld [vmem:[%s261 + $0xb0] sm:$0xf]
        %v777 = vld [vmem:[%s261 + $0xb4] sm:$0xf]
        %v778 = vld [vmem:[%s261 + $0xb8] sm:$0xf]
        %v779 = vld [vmem:[%s261 + $0xbc] sm:$0xf]
        %v780 = vunpack.c.l.b16 %v735
        %v781 = vunpack.c.l.b16 %v739
        %v782 = vunpack.c.l.b16 %v743
        %v783 = vunpack.c.l.b16 %v747
        %v784 = vunpack.c.l.b16 %v751
        %v785 = vunpack.c.l.b16 %v755
        %v786 = vunpack.c.l.b16 %v759
        %v787 = vunpack.c.l.b16 %v763
        %v788 = vpack.c.b16 %v781, %v780
        %v789 = vpack.c.b16 %v783, %v782
        %v790 = vpack.c.b16 %v785, %v784
        %v791 = vpack.c.b16 %v787, %v786
        %v812 = vunpack.c.l.b16 %v764
        %v813 = vunpack.c.l.b16 %v765
        %v814 = vunpack.c.l.b16 %v766
        %v815 = vunpack.c.l.b16 %v767
        %v816 = vunpack.c.l.b16 %v768
        %v817 = vunpack.c.l.b16 %v769
        %v818 = vunpack.c.l.b16 %v770
        %v819 = vunpack.c.l.b16 %v771
        %v820 = vunpack.c.l.b16 %v772
        %v821 = vunpack.c.l.b16 %v773
        %v822 = vunpack.c.l.b16 %v774
        %v823 = vunpack.c.l.b16 %v775
        %v824 = vunpack.c.l.b16 %v776
        %v825 = vunpack.c.l.b16 %v777
        %v826 = vunpack.c.l.b16 %v778
        %v827 = vunpack.c.l.b16 %v779
        %v828 = vpack.c.b16 %v813, %v812
        %v829 = vpack.c.b16 %v815, %v814
        %v830 = vpack.c.b16 %v817, %v816
        %v831 = vpack.c.b16 %v819, %v818
        %v832 = vpack.c.b16 %v821, %v820
        %v833 = vpack.c.b16 %v823, %v822
        %v834 = vpack.c.b16 %v825, %v824
        %v835 = vpack.c.b16 %v827, %v826
        %844 = vmatprep.subr.bf16.mxu0 0
        %845 = vmatpush1.bf16.msra.mxu0 %v828
        %846 = vmatprep.subr.bf16.mxu0 0
        %847 = vmatpush1.bf16.msra.mxu0 %v829
        %848 = vmatprep.subr.bf16.mxu0 0
        %849 = vmatpush1.bf16.msra.mxu0 %v830
        %850 = vmatprep.subr.bf16.mxu0 0
        %851 = vmatpush1.bf16.msra.mxu0 %v831
        %852 = vmatprep.subr.bf16.mxu0 0
        %853 = vmatpush1.bf16.msra.mxu0 %v832
        %854 = vmatprep.subr.bf16.mxu0 0
        %855 = vmatpush1.bf16.msra.mxu0 %v833
        %856 = vmatprep.subr.bf16.mxu0 0
        %857 = vmatpush1.bf16.msra.mxu0 %v834
        %858 = vmatprep.subr.bf16.mxu0 0
        %859 = vmatpush1.bf16.msra.mxu0 %v835
        %860 = vmatprep.subr.bf16.mxu0 0
        %861 = vmatpush1.bf16.msra.mxu0 0
        %862 = vmatprep.subr.bf16.mxu0 0
        %863 = vmatpush1.bf16.msra.mxu0 0
        %864 = vmatprep.subr.bf16.mxu0 0
        %865 = vmatpush1.bf16.msra.mxu0 0
        %866 = vmatprep.subr.bf16.mxu0 0
        %867 = vmatpush1.bf16.msra.mxu0 0
        %868 = vmatprep.subr.bf16.mxu0 0
        %869 = vmatpush1.bf16.msra.mxu0 0
        %870 = vmatprep.subr.bf16.mxu0 0
        %871 = vmatpush1.bf16.msra.mxu0 0
        %872 = vmatprep.subr.bf16.mxu0 0
        %873 = vmatpush1.bf16.msra.mxu0 0
        %874 = vmatprep.subr.bf16.mxu0 0
        %875 = vmatpush1.bf16.msra.mxu0 0
        %876 = vmatprep.mubr.bf16.mxu0 0
        %877 = vmatmul.mubr.bf16.gmra.mrb[0].mxu0 %v788
        %v878 = vpop.f32.mrb[0].mxu0
        %v879 = vadd.f32 0.0, %v878
        %v880 = vpop.f32.mrb[0].mxu0
        %v881 = vpop.f32.mrb[0].mxu0
        %v882 = vadd.f32 0.0, %v881
        %v883 = vpop.f32.mrb[0].mxu0
        %884 = vmatprep.mubr.bf16.mxu0 0
        %885 = vmatmul.mubr.bf16.gmra.mrb[0].mxu0 %v789
        %v886 = vpop.f32.mrb[0].mxu0
        %v887 = vadd.f32 0.0, %v886
        %v888 = vpop.f32.mrb[0].mxu0
        %v889 = vpop.f32.mrb[0].mxu0
        %v890 = vadd.f32 0.0, %v889
        %v891 = vpop.f32.mrb[0].mxu0
        %892 = vmatprep.mubr.bf16.mxu0 0
        %893 = vmatmul.mubr.bf16.gmra.mrb[0].mxu0 %v790
        %v894 = vpop.f32.mrb[0].mxu0
        %v895 = vadd.f32 0.0, %v894
        %v896 = vpop.f32.mrb[0].mxu0
        %v897 = vpop.f32.mrb[0].mxu0
        %v898 = vadd.f32 0.0, %v897
        %v899 = vpop.f32.mrb[0].mxu0
        %900 = vmatprep.mubr.bf16.mxu0 0
        %901 = vmatmul.mubr.bf16.gmra.mrb[0].mxu0 %v791
        %v902 = vpop.f32.mrb[0].mxu0
        %v903 = vadd.f32 0.0, %v902
        %v904 = vpop.f32.mrb[0].mxu0
        %v905 = vpop.f32.mrb[0].mxu0
        %v906 = vadd.f32 0.0, %v905
        %v907 = vpop.f32.mrb[0].mxu0
        %908 = vdwg.mxu0
        %v909 = vadd.f32 %v675, %v879
        %v910 = vadd.f32 %v678, %v882
        %v911 = vadd.f32 %v683, %v887
        %v912 = vadd.f32 %v686, %v890
        %v913 = vadd.f32 %v691, %v895
        %v914 = vadd.f32 %v694, %v898
        %v915 = vadd.f32 %v699, %v903
        %v916 = vadd.f32 %v702, %v906
        %s917 = scalar_lea.vmem %s257, 8
        %v918 = vld [vmem:[%s917] sm:$0xf]
        %v919 = vld [vmem:[%s917 + $0x8] sm:$0xf]
        %v920 = vld [vmem:[%s917 + $0x10] sm:$0xf]
        %v921 = vld [vmem:[%s917 + $0x18] sm:$0xf]
        %v922 = vld [vmem:[%s917 + $0x20] sm:$0xf]
        %v923 = vld [vmem:[%s917 + $0x28] sm:$0xf]
        %v924 = vld [vmem:[%s917 + $0x30] sm:$0xf]
        %v925 = vld [vmem:[%s917 + $0x38] sm:$0xf]
        %v926 = vld [vmem:[%s261 + $0xc0] sm:$0xf]
        %v927 = vld [vmem:[%s261 + $0xc4] sm:$0xf]
        %v928 = vld [vmem:[%s261 + $0xc8] sm:$0xf]
        %v929 = vld [vmem:[%s261 + $0xcc] sm:$0xf]
        %v930 = vld [vmem:[%s261 + $0xd0] sm:$0xf]
        %v931 = vld [vmem:[%s261 + $0xd4] sm:$0xf]
        %v932 = vld [vmem:[%s261 + $0xd8] sm:$0xf]
        %v933 = vld [vmem:[%s261 + $0xdc] sm:$0xf]
        %v934 = vld [vmem:[%s261 + $0xe0] sm:$0xf]
        %v935 = vld [vmem:[%s261 + $0xe4] sm:$0xf]
        %v936 = vld [vmem:[%s261 + $0xe8] sm:$0xf]
        %v937 = vld [vmem:[%s261 + $0xec] sm:$0xf]
        %v938 = vld [vmem:[%s261 + $0xf0] sm:$0xf]
        %v939 = vld [vmem:[%s261 + $0xf4] sm:$0xf]
        %v940 = vld [vmem:[%s261 + $0xf8] sm:$0xf]
        %v941 = vld [vmem:[%s261 + $0xfc] sm:$0xf]
        %v950 = vunpack.c.l.b16 %v918
        %v951 = vunpack.c.l.b16 %v919
        %v952 = vunpack.c.l.b16 %v920
        %v953 = vunpack.c.l.b16 %v921
        %v954 = vunpack.c.l.b16 %v922
        %v955 = vunpack.c.l.b16 %v923
        %v956 = vunpack.c.l.b16 %v924
        %v957 = vunpack.c.l.b16 %v925
        %v958 = vpack.c.b16 %v951, %v950
        %v959 = vpack.c.b16 %v953, %v952
        %v960 = vpack.c.b16 %v955, %v954
        %v961 = vpack.c.b16 %v957, %v956
        %v982 = vunpack.c.l.b16 %v926
        %v983 = vunpack.c.l.b16 %v927
        %v984 = vunpack.c.l.b16 %v928
        %v985 = vunpack.c.l.b16 %v929
        %v986 = vunpack.c.l.b16 %v930
        %v987 = vunpack.c.l.b16 %v931
        %v988 = vunpack.c.l.b16 %v932
        %v989 = vunpack.c.l.b16 %v933
        %v990 = vunpack.c.l.b16 %v934
        %v991 = vunpack.c.l.b16 %v935
        %v992 = vunpack.c.l.b16 %v936
        %v993 = vunpack.c.l.b16 %v937
        %v994 = vunpack.c.l.b16 %v938
        %v995 = vunpack.c.l.b16 %v939
        %v996 = vunpack.c.l.b16 %v940
        %v997 = vunpack.c.l.b16 %v941
        %v998 = vpack.c.b16 %v983, %v982
        %v999 = vpack.c.b16 %v985, %v984
        %v1000 = vpack.c.b16 %v987, %v986
        %v1001 = vpack.c.b16 %v989, %v988
        %v1002 = vpack.c.b16 %v991, %v990
        %v1003 = vpack.c.b16 %v993, %v992
        %v1004 = vpack.c.b16 %v995, %v994
        %v1005 = vpack.c.b16 %v997, %v996
        %1014 = vmatprep.subr.bf16.mxu0 0
        %1015 = vmatpush1.bf16.msra.mxu0 %v998
        %1016 = vmatprep.subr.bf16.mxu0 0
        %1017 = vmatpush1.bf16.msra.mxu0 %v999
        %1018 = vmatprep.subr.bf16.mxu0 0
        %1019 = vmatpush1.bf16.msra.mxu0 %v1000
        %1020 = vmatprep.subr.bf16.mxu0 0
        %1021 = vmatpush1.bf16.msra.mxu0 %v1001
        %1022 = vmatprep.subr.bf16.mxu0 0
        %1023 = vmatpush1.bf16.msra.mxu0 %v1002
        %1024 = vmatprep.subr.bf16.mxu0 0
        %1025 = vmatpush1.bf16.msra.mxu0 %v1003
        %1026 = vmatprep.subr.bf16.mxu0 0
        %1027 = vmatpush1.bf16.msra.mxu0 %v1004
        %1028 = vmatprep.subr.bf16.mxu0 0
        %1029 = vmatpush1.bf16.msra.mxu0 %v1005
        %1030 = vmatprep.subr.bf16.mxu0 0
        %1031 = vmatpush1.bf16.msra.mxu0 0
        %1032 = vmatprep.subr.bf16.mxu0 0
        %1033 = vmatpush1.bf16.msra.mxu0 0
        %1034 = vmatprep.subr.bf16.mxu0 0
        %1035 = vmatpush1.bf16.msra.mxu0 0
        %1036 = vmatprep.subr.bf16.mxu0 0
        %1037 = vmatpush1.bf16.msra.mxu0 0
        %1038 = vmatprep.subr.bf16.mxu0 0
        %1039 = vmatpush1.bf16.msra.mxu0 0
        %1040 = vmatprep.subr.bf16.mxu0 0
        %1041 = vmatpush1.bf16.msra.mxu0 0
        %1042 = vmatprep.subr.bf16.mxu0 0
        %1043 = vmatpush1.bf16.msra.mxu0 0
        %1044 = vmatprep.subr.bf16.mxu0 0
        %1045 = vmatpush1.bf16.msra.mxu0 0
        %1046 = vmatprep.mubr.bf16.mxu0 0
        %1047 = vmatmul.mubr.bf16.gmra.mrb[0].mxu0 %v958
        %v1048 = vpop.f32.mrb[0].mxu0
        %v1049 = vadd.f32 0.0, %v1048
        %v1050 = vpop.f32.mrb[0].mxu0
        %v1051 = vpop.f32.mrb[0].mxu0
        %v1052 = vadd.f32 0.0, %v1051
        %v1053 = vpop.f32.mrb[0].mxu0
        %1054 = vmatprep.mubr.bf16.mxu0 0
        %1055 = vmatmul.mubr.bf16.gmra.mrb[0].mxu0 %v959
        %v1056 = vpop.f32.mrb[0].mxu0
        %v1057 = vadd.f32 0.0, %v1056
        %v1058 = vpop.f32.mrb[0].mxu0
        %v1059 = vpop.f32.mrb[0].mxu0
        %v1060 = vadd.f32 0.0, %v1059
        %v1061 = vpop.f32.mrb[0].mxu0
        %1062 = vmatprep.mubr.bf16.mxu0 0
        %1063 = vmatmul.mubr.bf16.gmra.mrb[0].mxu0 %v960
        %v1064 = vpop.f32.mrb[0].mxu0
        %v1065 = vadd.f32 0.0, %v1064
        %v1066 = vpop.f32.mrb[0].mxu0
        %v1067 = vpop.f32.mrb[0].mxu0
        %v1068 = vadd.f32 0.0, %v1067
        %v1069 = vpop.f32.mrb[0].mxu0
        %1070 = vmatprep.mubr.bf16.mxu0 0
        %1071 = vmatmul.mubr.bf16.gmra.mrb[0].mxu0 %v961
        %v1072 = vpop.f32.mrb[0].mxu0
        %v1073 = vadd.f32 0.0, %v1072
        %v1074 = vpop.f32.mrb[0].mxu0
        %v1075 = vpop.f32.mrb[0].mxu0
        %v1076 = vadd.f32 0.0, %v1075
        %v1077 = vpop.f32.mrb[0].mxu0
        %1078 = vdwg.mxu0
        %v1079 = vadd.f32 %v909, %v1049
        %v1080 = vadd.f32 %v910, %v1052
        %v1081 = vadd.f32 %v911, %v1057
        %v1082 = vadd.f32 %v912, %v1060
        %v1083 = vadd.f32 %v913, %v1065
        %v1084 = vadd.f32 %v914, %v1068
        %v1085 = vadd.f32 %v915, %v1073
        %v1086 = vadd.f32 %v916, %v1076
        %v1087 = vld [vmem:[%s917] sm:$0xf]
        %v1088 = vld [vmem:[%s917 + $0x4] sm:$0x1]
        %v1089 = vld [vmem:[%s917 + $0x8] sm:$0xf]
        %v1090 = vld [vmem:[%s917 + $0xc] sm:$0x1]
        %v1091 = vld [vmem:[%s917 + $0x10] sm:$0xf]
        %v1092 = vld [vmem:[%s917 + $0x14] sm:$0x1]
        %v1093 = vld [vmem:[%s917 + $0x18] sm:$0xf]
        %v1094 = vld [vmem:[%s917 + $0x1c] sm:$0x1]
        %v1095 = vld [vmem:[%s917 + $0x20] sm:$0xf]
        %v1096 = vld [vmem:[%s917 + $0x24] sm:$0x1]
        %v1097 = vld [vmem:[%s917 + $0x28] sm:$0xf]
        %v1098 = vld [vmem:[%s917 + $0x2c] sm:$0x1]
        %v1099 = vld [vmem:[%s917 + $0x30] sm:$0xf]
        %v1100 = vld [vmem:[%s917 + $0x34] sm:$0x1]
        %v1101 = vld [vmem:[%s917 + $0x38] sm:$0xf]
        %v1102 = vld [vmem:[%s917 + $0x3c] sm:$0x1]
        %v1104 = vshrl.u32 %v1087, 16
        %v1106 = vrot.slane %v1104, 4
        %v1107 = vshll.u32 %v1087, 16
        %v1109 = vrot.slane %v1107, 5
        %v1110 = vor.u32 %v1106, %v1109
        %v1111 = vrot.slane %v1110, 4
        %v1113 = vshll.u32 %v1088, 16
        %v1115 = vrot.slane %v1113, 5
        %v1116 = vsel %vm310, %v1111, %v1115
        %v1118 = vshrl.u32 %v1089, 16
        %v1120 = vrot.slane %v1118, 4
        %v1121 = vshll.u32 %v1089, 16
        %v1123 = vrot.slane %v1121, 5
        %v1124 = vor.u32 %v1120, %v1123
        %v1125 = vrot.slane %v1124, 4
        %v1127 = vshll.u32 %v1090, 16
        %v1129 = vrot.slane %v1127, 5
        %v1130 = vsel %vm310, %v1125, %v1129
        %v1132 = vshrl.u32 %v1091, 16
        %v1134 = vrot.slane %v1132, 4
        %v1135 = vshll.u32 %v1091, 16
        %v1137 = vrot.slane %v1135, 5
        %v1138 = vor.u32 %v1134, %v1137
        %v1139 = vrot.slane %v1138, 4
        %v1141 = vshll.u32 %v1092, 16
        %v1143 = vrot.slane %v1141, 5
        %v1144 = vsel %vm310, %v1139, %v1143
        %v1146 = vshrl.u32 %v1093, 16
        %v1148 = vrot.slane %v1146, 4
        %v1149 = vshll.u32 %v1093, 16
        %v1151 = vrot.slane %v1149, 5
        %v1152 = vor.u32 %v1148, %v1151
        %v1153 = vrot.slane %v1152, 4
        %v1155 = vshll.u32 %v1094, 16
        %v1157 = vrot.slane %v1155, 5
        %v1158 = vsel %vm310, %v1153, %v1157
        %v1160 = vshrl.u32 %v1095, 16
        %v1162 = vrot.slane %v1160, 4
        %v1163 = vshll.u32 %v1095, 16
        %v1165 = vrot.slane %v1163, 5
        %v1166 = vor.u32 %v1162, %v1165
        %v1167 = vrot.slane %v1166, 4
        %v1169 = vshll.u32 %v1096, 16
        %v1171 = vrot.slane %v1169, 5
        %v1172 = vsel %vm310, %v1167, %v1171
        %v1174 = vshrl.u32 %v1097, 16
        %v1176 = vrot.slane %v1174, 4
        %v1177 = vshll.u32 %v1097, 16
        %v1179 = vrot.slane %v1177, 5
        %v1180 = vor.u32 %v1176, %v1179
        %v1181 = vrot.slane %v1180, 4
        %v1183 = vshll.u32 %v1098, 16
        %v1185 = vrot.slane %v1183, 5
        %v1186 = vsel %vm310, %v1181, %v1185
        %v1188 = vshrl.u32 %v1099, 16
        %v1190 = vrot.slane %v1188, 4
        %v1191 = vshll.u32 %v1099, 16
        %v1193 = vrot.slane %v1191, 5
        %v1194 = vor.u32 %v1190, %v1193
        %v1195 = vrot.slane %v1194, 4
        %v1197 = vshll.u32 %v1100, 16
        %v1199 = vrot.slane %v1197, 5
        %v1200 = vsel %vm310, %v1195, %v1199
        %v1202 = vshrl.u32 %v1101, 16
        %v1204 = vrot.slane %v1202, 4
        %v1205 = vshll.u32 %v1101, 16
        %v1207 = vrot.slane %v1205, 5
        %v1208 = vor.u32 %v1204, %v1207
        %v1209 = vrot.slane %v1208, 4
        %v1211 = vshll.u32 %v1102, 16
        %v1213 = vrot.slane %v1211, 5
        %v1214 = vsel %vm310, %v1209, %v1213
        %v1215 = vld [vmem:[%s261 + $0x100] sm:$0xf]
        %v1216 = vld [vmem:[%s261 + $0x104] sm:$0xf]
        %v1217 = vld [vmem:[%s261 + $0x108] sm:$0xf]
        %v1218 = vld [vmem:[%s261 + $0x10c] sm:$0xf]
        %v1219 = vld [vmem:[%s261 + $0x110] sm:$0xf]
        %v1220 = vld [vmem:[%s261 + $0x114] sm:$0xf]
        %v1221 = vld [vmem:[%s261 + $0x118] sm:$0xf]
        %v1222 = vld [vmem:[%s261 + $0x11c] sm:$0xf]
        %v1223 = vld [vmem:[%s261 + $0x120] sm:$0xf]
        %v1224 = vld [vmem:[%s261 + $0x124] sm:$0xf]
        %v1225 = vld [vmem:[%s261 + $0x128] sm:$0xf]
        %v1226 = vld [vmem:[%s261 + $0x12c] sm:$0xf]
        %v1227 = vld [vmem:[%s261 + $0x130] sm:$0xf]
        %v1228 = vld [vmem:[%s261 + $0x134] sm:$0xf]
        %v1229 = vld [vmem:[%s261 + $0x138] sm:$0xf]
        %v1230 = vld [vmem:[%s261 + $0x13c] sm:$0xf]
        %v1231 = vunpack.c.l.b16 %v1116
        %v1232 = vunpack.c.l.b16 %v1130
        %v1233 = vunpack.c.l.b16 %v1144
        %v1234 = vunpack.c.l.b16 %v1158
        %v1235 = vunpack.c.l.b16 %v1172
        %v1236 = vunpack.c.l.b16 %v1186
        %v1237 = vunpack.c.l.b16 %v1200
        %v1238 = vunpack.c.l.b16 %v1214
        %v1239 = vpack.c.b16 %v1232, %v1231
        %v1240 = vpack.c.b16 %v1234, %v1233
        %v1241 = vpack.c.b16 %v1236, %v1235
        %v1242 = vpack.c.b16 %v1238, %v1237
        %v1263 = vunpack.c.l.b16 %v1215
        %v1264 = vunpack.c.l.b16 %v1216
        %v1265 = vunpack.c.l.b16 %v1217
        %v1266 = vunpack.c.l.b16 %v1218
        %v1267 = vunpack.c.l.b16 %v1219
        %v1268 = vunpack.c.l.b16 %v1220
        %v1269 = vunpack.c.l.b16 %v1221
        %v1270 = vunpack.c.l.b16 %v1222
        %v1271 = vunpack.c.l.b16 %v1223
        %v1272 = vunpack.c.l.b16 %v1224
        %v1273 = vunpack.c.l.b16 %v1225
        %v1274 = vunpack.c.l.b16 %v1226
        %v1275 = vunpack.c.l.b16 %v1227
        %v1276 = vunpack.c.l.b16 %v1228
        %v1277 = vunpack.c.l.b16 %v1229
        %v1278 = vunpack.c.l.b16 %v1230
        %v1279 = vpack.c.b16 %v1264, %v1263
        %v1280 = vpack.c.b16 %v1266, %v1265
        %v1281 = vpack.c.b16 %v1268, %v1267
        %v1282 = vpack.c.b16 %v1270, %v1269
        %v1283 = vpack.c.b16 %v1272, %v1271
        %v1284 = vpack.c.b16 %v1274, %v1273
        %v1285 = vpack.c.b16 %v1276, %v1275
        %v1286 = vpack.c.b16 %v1278, %v1277
        %1295 = vmatprep.subr.bf16.mxu0 0
        %1296 = vmatpush1.bf16.msra.mxu0 %v1279
        %1297 = vmatprep.subr.bf16.mxu0 0
        %1298 = vmatpush1.bf16.msra.mxu0 %v1280
        %1299 = vmatprep.subr.bf16.mxu0 0
        %1300 = vmatpush1.bf16.msra.mxu0 %v1281
        %1301 = vmatprep.subr.bf16.mxu0 0
        %1302 = vmatpush1.bf16.msra.mxu0 %v1282
        %1303 = vmatprep.subr.bf16.mxu0 0
        %1304 = vmatpush1.bf16.msra.mxu0 %v1283
        %1305 = vmatprep.subr.bf16.mxu0 0
        %1306 = vmatpush1.bf16.msra.mxu0 %v1284
        %1307 = vmatprep.subr.bf16.mxu0 0
        %1308 = vmatpush1.bf16.msra.mxu0 %v1285
        %1309 = vmatprep.subr.bf16.mxu0 0
        %1310 = vmatpush1.bf16.msra.mxu0 %v1286
        %1311 = vmatprep.subr.bf16.mxu0 0
        %1312 = vmatpush1.bf16.msra.mxu0 0
        %1313 = vmatprep.subr.bf16.mxu0 0
        %1314 = vmatpush1.bf16.msra.mxu0 0
        %1315 = vmatprep.subr.bf16.mxu0 0
        %1316 = vmatpush1.bf16.msra.mxu0 0
        %1317 = vmatprep.subr.bf16.mxu0 0
        %1318 = vmatpush1.bf16.msra.mxu0 0
        %1319 = vmatprep.subr.bf16.mxu0 0
        %1320 = vmatpush1.bf16.msra.mxu0 0
        %1321 = vmatprep.subr.bf16.mxu0 0
        %1322 = vmatpush1.bf16.msra.mxu0 0
        %1323 = vmatprep.subr.bf16.mxu0 0
        %1324 = vmatpush1.bf16.msra.mxu0 0
        %1325 = vmatprep.subr.bf16.mxu0 0
        %1326 = vmatpush1.bf16.msra.mxu0 0
        %1327 = vmatprep.mubr.bf16.mxu0 0
        %1328 = vmatmul.mubr.bf16.gmra.mrb[0].mxu0 %v1239
        %v1329 = vpop.f32.mrb[0].mxu0
        %v1330 = vadd.f32 0.0, %v1329
        %v1331 = vpop.f32.mrb[0].mxu0
        %v1332 = vpop.f32.mrb[0].mxu0
        %v1333 = vadd.f32 0.0, %v1332
        %v1334 = vpop.f32.mrb[0].mxu0
        %1335 = vmatprep.mubr.bf16.mxu0 0
        %1336 = vmatmul.mubr.bf16.gmra.mrb[0].mxu0 %v1240
        %v1337 = vpop.f32.mrb[0].mxu0
        %v1338 = vadd.f32 0.0, %v1337
        %v1339 = vpop.f32.mrb[0].mxu0
        %v1340 = vpop.f32.mrb[0].mxu0
        %v1341 = vadd.f32 0.0, %v1340
        %v1342 = vpop.f32.mrb[0].mxu0
        %1343 = vmatprep.mubr.bf16.mxu0 0
        %1344 = vmatmul.mubr.bf16.gmra.mrb[0].mxu0 %v1241
        %v1345 = vpop.f32.mrb[0].mxu0
        %v1346 = vadd.f32 0.0, %v1345
        %v1347 = vpop.f32.mrb[0].mxu0
        %v1348 = vpop.f32.mrb[0].mxu0
        %v1349 = vadd.f32 0.0, %v1348
        %v1350 = vpop.f32.mrb[0].mxu0
        %1351 = vmatprep.mubr.bf16.mxu0 0
        %1352 = vmatmul.mubr.bf16.gmra.mrb[0].mxu0 %v1242
        %v1353 = vpop.f32.mrb[0].mxu0
        %v1354 = vadd.f32 0.0, %v1353
        %v1355 = vpop.f32.mrb[0].mxu0
        %v1356 = vpop.f32.mrb[0].mxu0
        %v1357 = vadd.f32 0.0, %v1356
        %v1358 = vpop.f32.mrb[0].mxu0
        %1359 = vdwg.mxu0
        %v1360 = vadd.f32 %v1079, %v1330
        %v1361 = vadd.f32 %v1080, %v1333
        %v1362 = vadd.f32 %v1081, %v1338
        %v1363 = vadd.f32 %v1082, %v1341
        %v1364 = vadd.f32 %v1083, %v1346
        %v1365 = vadd.f32 %v1084, %v1349
        %v1366 = vadd.f32 %v1085, %v1354
        %v1367 = vadd.f32 %v1086, %v1357
        %v1368 = vld [vmem:[%s917] sm:$0xe]
        %v1369 = vld [vmem:[%s917 + $0x8] sm:$0xe]
        %v1370 = vld [vmem:[%s917 + $0x10] sm:$0xe]
        %v1371 = vld [vmem:[%s917 + $0x18] sm:$0xe]
        %v1372 = vld [vmem:[%s917 + $0x20] sm:$0xe]
        %v1373 = vld [vmem:[%s917 + $0x28] sm:$0xe]
        %v1374 = vld [vmem:[%s917 + $0x30] sm:$0xe]
        %v1375 = vld [vmem:[%s917 + $0x38] sm:$0xe]
        %v1392 = vrot.slane %v1368, 5
        %v1393 = vrot.slane %v1392, 4
        %v1394 = vrot.slane %v1088, 5
        %v1395 = vsel %vm731, %v1393, %v1394
        %v1396 = vrot.slane %v1369, 5
        %v1397 = vrot.slane %v1396, 4
        %v1398 = vrot.slane %v1090, 5
        %v1399 = vsel %vm731, %v1397, %v1398
        %v1400 = vrot.slane %v1370, 5
        %v1401 = vrot.slane %v1400, 4
        %v1402 = vrot.slane %v1092, 5
        %v1403 = vsel %vm731, %v1401, %v1402
        %v1404 = vrot.slane %v1371, 5
        %v1405 = vrot.slane %v1404, 4
        %v1406 = vrot.slane %v1094, 5
        %v1407 = vsel %vm731, %v1405, %v1406
        %v1408 = vrot.slane %v1372, 5
        %v1409 = vrot.slane %v1408, 4
        %v1410 = vrot.slane %v1096, 5
        %v1411 = vsel %vm731, %v1409, %v1410
        %v1412 = vrot.slane %v1373, 5
        %v1413 = vrot.slane %v1412, 4
        %v1414 = vrot.slane %v1098, 5
        %v1415 = vsel %vm731, %v1413, %v1414
        %v1416 = vrot.slane %v1374, 5
        %v1417 = vrot.slane %v1416, 4
        %v1418 = vrot.slane %v1100, 5
        %v1419 = vsel %vm731, %v1417, %v1418
        %v1420 = vrot.slane %v1375, 5
        %v1421 = vrot.slane %v1420, 4
        %v1422 = vrot.slane %v1102, 5
        %v1423 = vsel %vm731, %v1421, %v1422
        %v1424 = vld [vmem:[%s261 + $0x140] sm:$0xf]
        %v1425 = vld [vmem:[%s261 + $0x144] sm:$0xf]
        %v1426 = vld [vmem:[%s261 + $0x148] sm:$0xf]
        %v1427 = vld [vmem:[%s261 + $0x14c] sm:$0xf]
        %v1428 = vld [vmem:[%s261 + $0x150] sm:$0xf]
        %v1429 = vld [vmem:[%s261 + $0x154] sm:$0xf]
        %v1430 = vld [vmem:[%s261 + $0x158] sm:$0xf]
        %v1431 = vld [vmem:[%s261 + $0x15c] sm:$0xf]
        %v1432 = vld [vmem:[%s261 + $0x160] sm:$0xf]
        %v1433 = vld [vmem:[%s261 + $0x164] sm:$0xf]
        %v1434 = vld [vmem:[%s261 + $0x168] sm:$0xf]
        %v1435 = vld [vmem:[%s261 + $0x16c] sm:$0xf]
        %v1436 = vld [vmem:[%s261 + $0x170] sm:$0xf]
        %v1437 = vld [vmem:[%s261 + $0x174] sm:$0xf]
        %v1438 = vld [vmem:[%s261 + $0x178] sm:$0xf]
        %v1439 = vld [vmem:[%s261 + $0x17c] sm:$0xf]
        %v1440 = vunpack.c.l.b16 %v1395
        %v1441 = vunpack.c.l.b16 %v1399
        %v1442 = vunpack.c.l.b16 %v1403
        %v1443 = vunpack.c.l.b16 %v1407
        %v1444 = vunpack.c.l.b16 %v1411
        %v1445 = vunpack.c.l.b16 %v1415
        %v1446 = vunpack.c.l.b16 %v1419
        %v1447 = vunpack.c.l.b16 %v1423
        %v1448 = vpack.c.b16 %v1441, %v1440
        %v1449 = vpack.c.b16 %v1443, %v1442
        %v1450 = vpack.c.b16 %v1445, %v1444
        %v1451 = vpack.c.b16 %v1447, %v1446
        %v1472 = vunpack.c.l.b16 %v1424
        %v1473 = vunpack.c.l.b16 %v1425
        %v1474 = vunpack.c.l.b16 %v1426
        %v1475 = vunpack.c.l.b16 %v1427
        %v1476 = vunpack.c.l.b16 %v1428
        %v1477 = vunpack.c.l.b16 %v1429
        %v1478 = vunpack.c.l.b16 %v1430
        %v1479 = vunpack.c.l.b16 %v1431
        %v1480 = vunpack.c.l.b16 %v1432
        %v1481 = vunpack.c.l.b16 %v1433
        %v1482 = vunpack.c.l.b16 %v1434
        %v1483 = vunpack.c.l.b16 %v1435
        %v1484 = vunpack.c.l.b16 %v1436
        %v1485 = vunpack.c.l.b16 %v1437
        %v1486 = vunpack.c.l.b16 %v1438
        %v1487 = vunpack.c.l.b16 %v1439
        %v1488 = vpack.c.b16 %v1473, %v1472
        %v1489 = vpack.c.b16 %v1475, %v1474
        %v1490 = vpack.c.b16 %v1477, %v1476
        %v1491 = vpack.c.b16 %v1479, %v1478
        %v1492 = vpack.c.b16 %v1481, %v1480
        %v1493 = vpack.c.b16 %v1483, %v1482
        %v1494 = vpack.c.b16 %v1485, %v1484
        %v1495 = vpack.c.b16 %v1487, %v1486
        %1504 = vmatprep.subr.bf16.mxu0 0
        %1505 = vmatpush1.bf16.msra.mxu0 %v1488
        %1506 = vmatprep.subr.bf16.mxu0 0
        %1507 = vmatpush1.bf16.msra.mxu0 %v1489
        %1508 = vmatprep.subr.bf16.mxu0 0
        %1509 = vmatpush1.bf16.msra.mxu0 %v1490
        %1510 = vmatprep.subr.bf16.mxu0 0
        %1511 = vmatpush1.bf16.msra.mxu0 %v1491
        %1512 = vmatprep.subr.bf16.mxu0 0
        %1513 = vmatpush1.bf16.msra.mxu0 %v1492
        %1514 = vmatprep.subr.bf16.mxu0 0
        %1515 = vmatpush1.bf16.msra.mxu0 %v1493
        %1516 = vmatprep.subr.bf16.mxu0 0
        %1517 = vmatpush1.bf16.msra.mxu0 %v1494
        %1518 = vmatprep.subr.bf16.mxu0 0
        %1519 = vmatpush1.bf16.msra.mxu0 %v1495
        %1520 = vmatprep.subr.bf16.mxu0 0
        %1521 = vmatpush1.bf16.msra.mxu0 0
        %1522 = vmatprep.subr.bf16.mxu0 0
        %1523 = vmatpush1.bf16.msra.mxu0 0
        %1524 = vmatprep.subr.bf16.mxu0 0
        %1525 = vmatpush1.bf16.msra.mxu0 0
        %1526 = vmatprep.subr.bf16.mxu0 0
        %1527 = vmatpush1.bf16.msra.mxu0 0
        %1528 = vmatprep.subr.bf16.mxu0 0
        %1529 = vmatpush1.bf16.msra.mxu0 0
        %1530 = vmatprep.subr.bf16.mxu0 0
        %1531 = vmatpush1.bf16.msra.mxu0 0
        %1532 = vmatprep.subr.bf16.mxu0 0
        %1533 = vmatpush1.bf16.msra.mxu0 0
        %1534 = vmatprep.subr.bf16.mxu0 0
        %1535 = vmatpush1.bf16.msra.mxu0 0
        %1536 = vmatprep.mubr.bf16.mxu0 0
        %1537 = vmatmul.mubr.bf16.gmra.mrb[0].mxu0 %v1448
        %v1538 = vpop.f32.mrb[0].mxu0
        %v1539 = vadd.f32 0.0, %v1538
        %v1540 = vpop.f32.mrb[0].mxu0
        %v1541 = vpop.f32.mrb[0].mxu0
        %v1542 = vadd.f32 0.0, %v1541
        %v1543 = vpop.f32.mrb[0].mxu0
        %1544 = vmatprep.mubr.bf16.mxu0 0
        %1545 = vmatmul.mubr.bf16.gmra.mrb[0].mxu0 %v1449
        %v1546 = vpop.f32.mrb[0].mxu0
        %v1547 = vadd.f32 0.0, %v1546
        %v1548 = vpop.f32.mrb[0].mxu0
        %v1549 = vpop.f32.mrb[0].mxu0
        %v1550 = vadd.f32 0.0, %v1549
        %v1551 = vpop.f32.mrb[0].mxu0
        %1552 = vmatprep.mubr.bf16.mxu0 0
        %1553 = vmatmul.mubr.bf16.gmra.mrb[0].mxu0 %v1450
        %v1554 = vpop.f32.mrb[0].mxu0
        %v1555 = vadd.f32 0.0, %v1554
        %v1556 = vpop.f32.mrb[0].mxu0
        %v1557 = vpop.f32.mrb[0].mxu0
        %v1558 = vadd.f32 0.0, %v1557
        %v1559 = vpop.f32.mrb[0].mxu0
        %1560 = vmatprep.mubr.bf16.mxu0 0
        %1561 = vmatmul.mubr.bf16.gmra.mrb[0].mxu0 %v1451
        %v1562 = vpop.f32.mrb[0].mxu0
        %v1563 = vadd.f32 0.0, %v1562
        %v1564 = vpop.f32.mrb[0].mxu0
        %v1565 = vpop.f32.mrb[0].mxu0
        %v1566 = vadd.f32 0.0, %v1565
        %v1567 = vpop.f32.mrb[0].mxu0
        %1568 = vdwg.mxu0
        %v1569 = vadd.f32 %v1360, %v1539
        %v1570 = vadd.f32 %v1361, %v1542
        %v1571 = vadd.f32 %v1362, %v1547
        %v1572 = vadd.f32 %v1363, %v1550
        %v1573 = vadd.f32 %v1364, %v1555
        %v1574 = vadd.f32 %v1365, %v1558
        %v1575 = vadd.f32 %v1366, %v1563
        %v1576 = vadd.f32 %v1367, %v1566
        %s1577 = scalar_lea.vmem %s257, 16
        %v1578 = vld [vmem:[%s1577] sm:$0xf]
        %v1579 = vld [vmem:[%s1577 + $0x8] sm:$0xf]
        %v1580 = vld [vmem:[%s1577 + $0x10] sm:$0xf]
        %v1581 = vld [vmem:[%s1577 + $0x18] sm:$0xf]
        %v1582 = vld [vmem:[%s1577 + $0x20] sm:$0xf]
        %v1583 = vld [vmem:[%s1577 + $0x28] sm:$0xf]
        %v1584 = vld [vmem:[%s1577 + $0x30] sm:$0xf]
        %v1585 = vld [vmem:[%s1577 + $0x38] sm:$0xf]
        %v1586 = vld [vmem:[%s261 + $0x180] sm:$0xf]
        %v1587 = vld [vmem:[%s261 + $0x184] sm:$0xf]
        %v1588 = vld [vmem:[%s261 + $0x188] sm:$0xf]
        %v1589 = vld [vmem:[%s261 + $0x18c] sm:$0xf]
        %v1590 = vld [vmem:[%s261 + $0x190] sm:$0xf]
        %v1591 = vld [vmem:[%s261 + $0x194] sm:$0xf]
        %v1592 = vld [vmem:[%s261 + $0x198] sm:$0xf]
        %v1593 = vld [vmem:[%s261 + $0x19c] sm:$0xf]
        %v1594 = vld [vmem:[%s261 + $0x1a0] sm:$0xf]
        %v1595 = vld [vmem:[%s261 + $0x1a4] sm:$0xf]
        %v1596 = vld [vmem:[%s261 + $0x1a8] sm:$0xf]
        %v1597 = vld [vmem:[%s261 + $0x1ac] sm:$0xf]
        %v1598 = vld [vmem:[%s261 + $0x1b0] sm:$0xf]
        %v1599 = vld [vmem:[%s261 + $0x1b4] sm:$0xf]
        %v1600 = vld [vmem:[%s261 + $0x1b8] sm:$0xf]
        %v1601 = vld [vmem:[%s261 + $0x1bc] sm:$0xf]
        %v1610 = vunpack.c.l.b16 %v1578
        %v1611 = vunpack.c.l.b16 %v1579
        %v1612 = vunpack.c.l.b16 %v1580
        %v1613 = vunpack.c.l.b16 %v1581
        %v1614 = vunpack.c.l.b16 %v1582
        %v1615 = vunpack.c.l.b16 %v1583
        %v1616 = vunpack.c.l.b16 %v1584
        %v1617 = vunpack.c.l.b16 %v1585
        %v1618 = vpack.c.b16 %v1611, %v1610
        %v1619 = vpack.c.b16 %v1613, %v1612
        %v1620 = vpack.c.b16 %v1615, %v1614
        %v1621 = vpack.c.b16 %v1617, %v1616
        %v1642 = vunpack.c.l.b16 %v1586
        %v1643 = vunpack.c.l.b16 %v1587
        %v1644 = vunpack.c.l.b16 %v1588
        %v1645 = vunpack.c.l.b16 %v1589
        %v1646 = vunpack.c.l.b16 %v1590
        %v1647 = vunpack.c.l.b16 %v1591
        %v1648 = vunpack.c.l.b16 %v1592
        %v1649 = vunpack.c.l.b16 %v1593
        %v1650 = vunpack.c.l.b16 %v1594
        %v1651 = vunpack.c.l.b16 %v1595
        %v1652 = vunpack.c.l.b16 %v1596
        %v1653 = vunpack.c.l.b16 %v1597
        %v1654 = vunpack.c.l.b16 %v1598
        %v1655 = vunpack.c.l.b16 %v1599
        %v1656 = vunpack.c.l.b16 %v1600
        %v1657 = vunpack.c.l.b16 %v1601
        %v1658 = vpack.c.b16 %v1643, %v1642
        %v1659 = vpack.c.b16 %v1645, %v1644
        %v1660 = vpack.c.b16 %v1647, %v1646
        %v1661 = vpack.c.b16 %v1649, %v1648
        %v1662 = vpack.c.b16 %v1651, %v1650
        %v1663 = vpack.c.b16 %v1653, %v1652
        %v1664 = vpack.c.b16 %v1655, %v1654
        %v1665 = vpack.c.b16 %v1657, %v1656
        %1674 = vmatprep.subr.bf16.mxu0 0
        %1675 = vmatpush1.bf16.msra.mxu0 %v1658
        %1676 = vmatprep.subr.bf16.mxu0 0
        %1677 = vmatpush1.bf16.msra.mxu0 %v1659
        %1678 = vmatprep.subr.bf16.mxu0 0
        %1679 = vmatpush1.bf16.msra.mxu0 %v1660
        %1680 = vmatprep.subr.bf16.mxu0 0
        %1681 = vmatpush1.bf16.msra.mxu0 %v1661
        %1682 = vmatprep.subr.bf16.mxu0 0
        %1683 = vmatpush1.bf16.msra.mxu0 %v1662
        %1684 = vmatprep.subr.bf16.mxu0 0
        %1685 = vmatpush1.bf16.msra.mxu0 %v1663
        %1686 = vmatprep.subr.bf16.mxu0 0
        %1687 = vmatpush1.bf16.msra.mxu0 %v1664
        %1688 = vmatprep.subr.bf16.mxu0 0
        %1689 = vmatpush1.bf16.msra.mxu0 %v1665
        %1690 = vmatprep.subr.bf16.mxu0 0
        %1691 = vmatpush1.bf16.msra.mxu0 0
        %1692 = vmatprep.subr.bf16.mxu0 0
        %1693 = vmatpush1.bf16.msra.mxu0 0
        %1694 = vmatprep.subr.bf16.mxu0 0
        %1695 = vmatpush1.bf16.msra.mxu0 0
        %1696 = vmatprep.subr.bf16.mxu0 0
        %1697 = vmatpush1.bf16.msra.mxu0 0
        %1698 = vmatprep.subr.bf16.mxu0 0
        %1699 = vmatpush1.bf16.msra.mxu0 0
        %1700 = vmatprep.subr.bf16.mxu0 0
        %1701 = vmatpush1.bf16.msra.mxu0 0
        %1702 = vmatprep.subr.bf16.mxu0 0
        %1703 = vmatpush1.bf16.msra.mxu0 0
        %1704 = vmatprep.subr.bf16.mxu0 0
        %1705 = vmatpush1.bf16.msra.mxu0 0
        %1706 = vmatprep.mubr.bf16.mxu0 0
        %1707 = vmatmul.mubr.bf16.gmra.mrb[0].mxu0 %v1618
        %v1708 = vpop.f32.mrb[0].mxu0
        %v1709 = vadd.f32 0.0, %v1708
        %v1710 = vpop.f32.mrb[0].mxu0
        %v1711 = vpop.f32.mrb[0].mxu0
        %v1712 = vadd.f32 0.0, %v1711
        %v1713 = vpop.f32.mrb[0].mxu0
        %1714 = vmatprep.mubr.bf16.mxu0 0
        %1715 = vmatmul.mubr.bf16.gmra.mrb[0].mxu0 %v1619
        %v1716 = vpop.f32.mrb[0].mxu0
        %v1717 = vadd.f32 0.0, %v1716
        %v1718 = vpop.f32.mrb[0].mxu0
        %v1719 = vpop.f32.mrb[0].mxu0
        %v1720 = vadd.f32 0.0, %v1719
        %v1721 = vpop.f32.mrb[0].mxu0
        %1722 = vmatprep.mubr.bf16.mxu0 0
        %1723 = vmatmul.mubr.bf16.gmra.mrb[0].mxu0 %v1620
        %v1724 = vpop.f32.mrb[0].mxu0
        %v1725 = vadd.f32 0.0, %v1724
        %v1726 = vpop.f32.mrb[0].mxu0
        %v1727 = vpop.f32.mrb[0].mxu0
        %v1728 = vadd.f32 0.0, %v1727
        %v1729 = vpop.f32.mrb[0].mxu0
        %1730 = vmatprep.mubr.bf16.mxu0 0
        %1731 = vmatmul.mubr.bf16.gmra.mrb[0].mxu0 %v1621
        %v1732 = vpop.f32.mrb[0].mxu0
        %v1733 = vadd.f32 0.0, %v1732
        %v1734 = vpop.f32.mrb[0].mxu0
        %v1735 = vpop.f32.mrb[0].mxu0
        %v1736 = vadd.f32 0.0, %v1735
        %v1737 = vpop.f32.mrb[0].mxu0
        %1738 = vdwg.mxu0
        %v1739 = vadd.f32 %v1569, %v1709
        %v1740 = vadd.f32 %v1570, %v1712
        %v1741 = vadd.f32 %v1571, %v1717
        %v1742 = vadd.f32 %v1572, %v1720
        %v1743 = vadd.f32 %v1573, %v1725
        %v1744 = vadd.f32 %v1574, %v1728
        %v1745 = vadd.f32 %v1575, %v1733
        %v1746 = vadd.f32 %v1576, %v1736
        %v1747 = vld [vmem:[%s1577] sm:$0xf]
        %v1748 = vld [vmem:[%s1577 + $0x4] sm:$0x1]
        %v1749 = vld [vmem:[%s1577 + $0x8] sm:$0xf]
        %v1750 = vld [vmem:[%s1577 + $0xc] sm:$0x1]
        %v1751 = vld [vmem:[%s1577 + $0x10] sm:$0xf]
        %v1752 = vld [vmem:[%s1577 + $0x14] sm:$0x1]
        %v1753 = vld [vmem:[%s1577 + $0x18] sm:$0xf]
        %v1754 = vld [vmem:[%s1577 + $0x1c] sm:$0x1]
        %v1755 = vld [vmem:[%s1577 + $0x20] sm:$0xf]
        %v1756 = vld [vmem:[%s1577 + $0x24] sm:$0x1]
        %v1757 = vld [vmem:[%s1577 + $0x28] sm:$0xf]
        %v1758 = vld [vmem:[%s1577 + $0x2c] sm:$0x1]
        %v1759 = vld [vmem:[%s1577 + $0x30] sm:$0xf]
        %v1760 = vld [vmem:[%s1577 + $0x34] sm:$0x1]
        %v1761 = vld [vmem:[%s1577 + $0x38] sm:$0xf]
        %v1762 = vld [vmem:[%s1577 + $0x3c] sm:$0x1]
        %v1764 = vshrl.u32 %v1747, 16
        %v1766 = vrot.slane %v1764, 4
        %v1767 = vshll.u32 %v1747, 16
        %v1769 = vrot.slane %v1767, 5
        %v1770 = vor.u32 %v1766, %v1769
        %v1771 = vrot.slane %v1770, 4
        %v1773 = vshll.u32 %v1748, 16
        %v1775 = vrot.slane %v1773, 5
        %v1776 = vsel %vm310, %v1771, %v1775
        %v1778 = vshrl.u32 %v1749, 16
        %v1780 = vrot.slane %v1778, 4
        %v1781 = vshll.u32 %v1749, 16
        %v1783 = vrot.slane %v1781, 5
        %v1784 = vor.u32 %v1780, %v1783
        %v1785 = vrot.slane %v1784, 4
        %v1787 = vshll.u32 %v1750, 16
        %v1789 = vrot.slane %v1787, 5
        %v1790 = vsel %vm310, %v1785, %v1789
        %v1792 = vshrl.u32 %v1751, 16
        %v1794 = vrot.slane %v1792, 4
        %v1795 = vshll.u32 %v1751, 16
        %v1797 = vrot.slane %v1795, 5
        %v1798 = vor.u32 %v1794, %v1797
        %v1799 = vrot.slane %v1798, 4
        %v1801 = vshll.u32 %v1752, 16
        %v1803 = vrot.slane %v1801, 5
        %v1804 = vsel %vm310, %v1799, %v1803
        %v1806 = vshrl.u32 %v1753, 16
        %v1808 = vrot.slane %v1806, 4
        %v1809 = vshll.u32 %v1753, 16
        %v1811 = vrot.slane %v1809, 5
        %v1812 = vor.u32 %v1808, %v1811
        %v1813 = vrot.slane %v1812, 4
        %v1815 = vshll.u32 %v1754, 16
        %v1817 = vrot.slane %v1815, 5
        %v1818 = vsel %vm310, %v1813, %v1817
        %v1820 = vshrl.u32 %v1755, 16
        %v1822 = vrot.slane %v1820, 4
        %v1823 = vshll.u32 %v1755, 16
        %v1825 = vrot.slane %v1823, 5
        %v1826 = vor.u32 %v1822, %v1825
        %v1827 = vrot.slane %v1826, 4
        %v1829 = vshll.u32 %v1756, 16
        %v1831 = vrot.slane %v1829, 5
        %v1832 = vsel %vm310, %v1827, %v1831
        %v1834 = vshrl.u32 %v1757, 16
        %v1836 = vrot.slane %v1834, 4
        %v1837 = vshll.u32 %v1757, 16
        %v1839 = vrot.slane %v1837, 5
        %v1840 = vor.u32 %v1836, %v1839
        %v1841 = vrot.slane %v1840, 4
        %v1843 = vshll.u32 %v1758, 16
        %v1845 = vrot.slane %v1843, 5
        %v1846 = vsel %vm310, %v1841, %v1845
        %v1848 = vshrl.u32 %v1759, 16
        %v1850 = vrot.slane %v1848, 4
        %v1851 = vshll.u32 %v1759, 16
        %v1853 = vrot.slane %v1851, 5
        %v1854 = vor.u32 %v1850, %v1853
        %v1855 = vrot.slane %v1854, 4
        %v1857 = vshll.u32 %v1760, 16
        %v1859 = vrot.slane %v1857, 5
        %v1860 = vsel %vm310, %v1855, %v1859
        %v1862 = vshrl.u32 %v1761, 16
        %v1864 = vrot.slane %v1862, 4
        %v1865 = vshll.u32 %v1761, 16
        %v1867 = vrot.slane %v1865, 5
        %v1868 = vor.u32 %v1864, %v1867
        %v1869 = vrot.slane %v1868, 4
        %v1871 = vshll.u32 %v1762, 16
        %v1873 = vrot.slane %v1871, 5
        %v1874 = vsel %vm310, %v1869, %v1873
        %v1875 = vld [vmem:[%s261 + $0x1c0] sm:$0xf]
        %v1876 = vld [vmem:[%s261 + $0x1c4] sm:$0xf]
        %v1877 = vld [vmem:[%s261 + $0x1c8] sm:$0xf]
        %v1878 = vld [vmem:[%s261 + $0x1cc] sm:$0xf]
        %v1879 = vld [vmem:[%s261 + $0x1d0] sm:$0xf]
        %v1880 = vld [vmem:[%s261 + $0x1d4] sm:$0xf]
        %v1881 = vld [vmem:[%s261 + $0x1d8] sm:$0xf]
        %v1882 = vld [vmem:[%s261 + $0x1dc] sm:$0xf]
        %v1883 = vld [vmem:[%s261 + $0x1e0] sm:$0xf]
        %v1884 = vld [vmem:[%s261 + $0x1e4] sm:$0xf]
        %v1885 = vld [vmem:[%s261 + $0x1e8] sm:$0xf]
        %v1886 = vld [vmem:[%s261 + $0x1ec] sm:$0xf]
        %v1887 = vld [vmem:[%s261 + $0x1f0] sm:$0xf]
        %v1888 = vld [vmem:[%s261 + $0x1f4] sm:$0xf]
        %v1889 = vld [vmem:[%s261 + $0x1f8] sm:$0xf]
        %v1890 = vld [vmem:[%s261 + $0x1fc] sm:$0xf]
        %v1891 = vunpack.c.l.b16 %v1776
        %v1892 = vunpack.c.l.b16 %v1790
        %v1893 = vunpack.c.l.b16 %v1804
        %v1894 = vunpack.c.l.b16 %v1818
        %v1895 = vunpack.c.l.b16 %v1832
        %v1896 = vunpack.c.l.b16 %v1846
        %v1897 = vunpack.c.l.b16 %v1860
        %v1898 = vunpack.c.l.b16 %v1874
        %v1899 = vpack.c.b16 %v1892, %v1891
        %v1900 = vpack.c.b16 %v1894, %v1893
        %v1901 = vpack.c.b16 %v1896, %v1895
        %v1902 = vpack.c.b16 %v1898, %v1897
        %v1923 = vunpack.c.l.b16 %v1875
        %v1924 = vunpack.c.l.b16 %v1876
        %v1925 = vunpack.c.l.b16 %v1877
        %v1926 = vunpack.c.l.b16 %v1878
        %v1927 = vunpack.c.l.b16 %v1879
        %v1928 = vunpack.c.l.b16 %v1880
        %v1929 = vunpack.c.l.b16 %v1881
        %v1930 = vunpack.c.l.b16 %v1882
        %v1931 = vunpack.c.l.b16 %v1883
        %v1932 = vunpack.c.l.b16 %v1884
        %v1933 = vunpack.c.l.b16 %v1885
        %v1934 = vunpack.c.l.b16 %v1886
        %v1935 = vunpack.c.l.b16 %v1887
        %v1936 = vunpack.c.l.b16 %v1888
        %v1937 = vunpack.c.l.b16 %v1889
        %v1938 = vunpack.c.l.b16 %v1890
        %v1939 = vpack.c.b16 %v1924, %v1923
        %v1940 = vpack.c.b16 %v1926, %v1925
        %v1941 = vpack.c.b16 %v1928, %v1927
        %v1942 = vpack.c.b16 %v1930, %v1929
        %v1943 = vpack.c.b16 %v1932, %v1931
        %v1944 = vpack.c.b16 %v1934, %v1933
        %v1945 = vpack.c.b16 %v1936, %v1935
        %v1946 = vpack.c.b16 %v1938, %v1937
        %1955 = vmatprep.subr.bf16.mxu0 0
        %1956 = vmatpush1.bf16.msra.mxu0 %v1939
        %1957 = vmatprep.subr.bf16.mxu0 0
        %1958 = vmatpush1.bf16.msra.mxu0 %v1940
        %1959 = vmatprep.subr.bf16.mxu0 0
        %1960 = vmatpush1.bf16.msra.mxu0 %v1941
        %1961 = vmatprep.subr.bf16.mxu0 0
        %1962 = vmatpush1.bf16.msra.mxu0 %v1942
        %1963 = vmatprep.subr.bf16.mxu0 0
        %1964 = vmatpush1.bf16.msra.mxu0 %v1943
        %1965 = vmatprep.subr.bf16.mxu0 0
        %1966 = vmatpush1.bf16.msra.mxu0 %v1944
        %1967 = vmatprep.subr.bf16.mxu0 0
        %1968 = vmatpush1.bf16.msra.mxu0 %v1945
        %1969 = vmatprep.subr.bf16.mxu0 0
        %1970 = vmatpush1.bf16.msra.mxu0 %v1946
        %1971 = vmatprep.subr.bf16.mxu0 0
        %1972 = vmatpush1.bf16.msra.mxu0 0
        %1973 = vmatprep.subr.bf16.mxu0 0
        %1974 = vmatpush1.bf16.msra.mxu0 0
        %1975 = vmatprep.subr.bf16.mxu0 0
        %1976 = vmatpush1.bf16.msra.mxu0 0
        %1977 = vmatprep.subr.bf16.mxu0 0
        %1978 = vmatpush1.bf16.msra.mxu0 0
        %1979 = vmatprep.subr.bf16.mxu0 0
        %1980 = vmatpush1.bf16.msra.mxu0 0
        %1981 = vmatprep.subr.bf16.mxu0 0
        %1982 = vmatpush1.bf16.msra.mxu0 0
        %1983 = vmatprep.subr.bf16.mxu0 0
        %1984 = vmatpush1.bf16.msra.mxu0 0
        %1985 = vmatprep.subr.bf16.mxu0 0
        %1986 = vmatpush1.bf16.msra.mxu0 0
        %1987 = vmatprep.mubr.bf16.mxu0 0
        %1988 = vmatmul.mubr.bf16.gmra.mrb[0].mxu0 %v1899
        %v1989 = vpop.f32.mrb[0].mxu0
        %v1990 = vadd.f32 0.0, %v1989
        %v1991 = vpop.f32.mrb[0].mxu0
        %v1992 = vpop.f32.mrb[0].mxu0
        %v1993 = vadd.f32 0.0, %v1992
        %v1994 = vpop.f32.mrb[0].mxu0
        %1995 = vmatprep.mubr.bf16.mxu0 0
        %1996 = vmatmul.mubr.bf16.gmra.mrb[0].mxu0 %v1900
        %v1997 = vpop.f32.mrb[0].mxu0
        %v1998 = vadd.f32 0.0, %v1997
        %v1999 = vpop.f32.mrb[0].mxu0
        %v2000 = vpop.f32.mrb[0].mxu0
        %v2001 = vadd.f32 0.0, %v2000
        %v2002 = vpop.f32.mrb[0].mxu0
        %2003 = vmatprep.mubr.bf16.mxu0 0
        %2004 = vmatmul.mubr.bf16.gmra.mrb[0].mxu0 %v1901
        %v2005 = vpop.f32.mrb[0].mxu0
        %v2006 = vadd.f32 0.0, %v2005
        %v2007 = vpop.f32.mrb[0].mxu0
        %v2008 = vpop.f32.mrb[0].mxu0
        %v2009 = vadd.f32 0.0, %v2008
        %v2010 = vpop.f32.mrb[0].mxu0
        %2011 = vmatprep.mubr.bf16.mxu0 0
        %2012 = vmatmul.mubr.bf16.gmra.mrb[0].mxu0 %v1902
        %v2013 = vpop.f32.mrb[0].mxu0
        %v2014 = vadd.f32 0.0, %v2013
        %v2015 = vpop.f32.mrb[0].mxu0
        %v2016 = vpop.f32.mrb[0].mxu0
        %v2017 = vadd.f32 0.0, %v2016
        %v2018 = vpop.f32.mrb[0].mxu0
        %2019 = vdwg.mxu0
        %v2020 = vadd.f32 %v1739, %v1990
        %v2021 = vadd.f32 %v1740, %v1993
        %v2022 = vadd.f32 %v1741, %v1998
        %v2023 = vadd.f32 %v1742, %v2001
        %v2024 = vadd.f32 %v1743, %v2006
        %v2025 = vadd.f32 %v1744, %v2009
        %v2026 = vadd.f32 %v1745, %v2014
        %v2027 = vadd.f32 %v1746, %v2017
        %v2028 = vld [vmem:[%s1577] sm:$0xe]
        %v2029 = vld [vmem:[%s1577 + $0x8] sm:$0xe]
        %v2030 = vld [vmem:[%s1577 + $0x10] sm:$0xe]
        %v2031 = vld [vmem:[%s1577 + $0x18] sm:$0xe]
        %v2032 = vld [vmem:[%s1577 + $0x20] sm:$0xe]
        %v2033 = vld [vmem:[%s1577 + $0x28] sm:$0xe]
        %v2034 = vld [vmem:[%s1577 + $0x30] sm:$0xe]
        %v2035 = vld [vmem:[%s1577 + $0x38] sm:$0xe]
        %v2052 = vrot.slane %v2028, 5
        %v2053 = vrot.slane %v2052, 4
        %v2054 = vrot.slane %v1748, 5
        %v2055 = vsel %vm731, %v2053, %v2054
        %v2056 = vrot.slane %v2029, 5
        %v2057 = vrot.slane %v2056, 4
        %v2058 = vrot.slane %v1750, 5
        %v2059 = vsel %vm731, %v2057, %v2058
        %v2060 = vrot.slane %v2030, 5
        %v2061 = vrot.slane %v2060, 4
        %v2062 = vrot.slane %v1752, 5
        %v2063 = vsel %vm731, %v2061, %v2062
        %v2064 = vrot.slane %v2031, 5
        %v2065 = vrot.slane %v2064, 4
        %v2066 = vrot.slane %v1754, 5
        %v2067 = vsel %vm731, %v2065, %v2066
        %v2068 = vrot.slane %v2032, 5
        %v2069 = vrot.slane %v2068, 4
        %v2070 = vrot.slane %v1756, 5
        %v2071 = vsel %vm731, %v2069, %v2070
        %v2072 = vrot.slane %v2033, 5
        %v2073 = vrot.slane %v2072, 4
        %v2074 = vrot.slane %v1758, 5
        %v2075 = vsel %vm731, %v2073, %v2074
        %v2076 = vrot.slane %v2034, 5
        %v2077 = vrot.slane %v2076, 4
        %v2078 = vrot.slane %v1760, 5
        %v2079 = vsel %vm731, %v2077, %v2078
        %v2080 = vrot.slane %v2035, 5
        %v2081 = vrot.slane %v2080, 4
        %v2082 = vrot.slane %v1762, 5
        %v2083 = vsel %vm731, %v2081, %v2082
        %v2084 = vld [vmem:[%s261 + $0x200] sm:$0xf]
        %v2085 = vld [vmem:[%s261 + $0x204] sm:$0xf]
        %v2086 = vld [vmem:[%s261 + $0x208] sm:$0xf]
        %v2087 = vld [vmem:[%s261 + $0x20c] sm:$0xf]
        %v2088 = vld [vmem:[%s261 + $0x210] sm:$0xf]
        %v2089 = vld [vmem:[%s261 + $0x214] sm:$0xf]
        %v2090 = vld [vmem:[%s261 + $0x218] sm:$0xf]
        %v2091 = vld [vmem:[%s261 + $0x21c] sm:$0xf]
        %v2092 = vld [vmem:[%s261 + $0x220] sm:$0xf]
        %v2093 = vld [vmem:[%s261 + $0x224] sm:$0xf]
        %v2094 = vld [vmem:[%s261 + $0x228] sm:$0xf]
        %v2095 = vld [vmem:[%s261 + $0x22c] sm:$0xf]
        %v2096 = vld [vmem:[%s261 + $0x230] sm:$0xf]
        %v2097 = vld [vmem:[%s261 + $0x234] sm:$0xf]
        %v2098 = vld [vmem:[%s261 + $0x238] sm:$0xf]
        %v2099 = vld [vmem:[%s261 + $0x23c] sm:$0xf]
        %v2100 = vunpack.c.l.b16 %v2055
        %v2101 = vunpack.c.l.b16 %v2059
        %v2102 = vunpack.c.l.b16 %v2063
        %v2103 = vunpack.c.l.b16 %v2067
        %v2104 = vunpack.c.l.b16 %v2071
        %v2105 = vunpack.c.l.b16 %v2075
        %v2106 = vunpack.c.l.b16 %v2079
        %v2107 = vunpack.c.l.b16 %v2083
        %v2108 = vpack.c.b16 %v2101, %v2100
        %v2109 = vpack.c.b16 %v2103, %v2102
        %v2110 = vpack.c.b16 %v2105, %v2104
        %v2111 = vpack.c.b16 %v2107, %v2106
        %v2132 = vunpack.c.l.b16 %v2084
        %v2133 = vunpack.c.l.b16 %v2085
        %v2134 = vunpack.c.l.b16 %v2086
        %v2135 = vunpack.c.l.b16 %v2087
        %v2136 = vunpack.c.l.b16 %v2088
        %v2137 = vunpack.c.l.b16 %v2089
        %v2138 = vunpack.c.l.b16 %v2090
        %v2139 = vunpack.c.l.b16 %v2091
        %v2140 = vunpack.c.l.b16 %v2092
        %v2141 = vunpack.c.l.b16 %v2093
        %v2142 = vunpack.c.l.b16 %v2094
        %v2143 = vunpack.c.l.b16 %v2095
        %v2144 = vunpack.c.l.b16 %v2096
        %v2145 = vunpack.c.l.b16 %v2097
        %v2146 = vunpack.c.l.b16 %v2098
        %v2147 = vunpack.c.l.b16 %v2099
        %v2148 = vpack.c.b16 %v2133, %v2132
        %v2149 = vpack.c.b16 %v2135, %v2134
        %v2150 = vpack.c.b16 %v2137, %v2136
        %v2151 = vpack.c.b16 %v2139, %v2138
        %v2152 = vpack.c.b16 %v2141, %v2140
        %v2153 = vpack.c.b16 %v2143, %v2142
        %v2154 = vpack.c.b16 %v2145, %v2144
        %v2155 = vpack.c.b16 %v2147, %v2146
        %2164 = vmatprep.subr.bf16.mxu0 0
        %2165 = vmatpush1.bf16.msra.mxu0 %v2148
        %2166 = vmatprep.subr.bf16.mxu0 0
        %2167 = vmatpush1.bf16.msra.mxu0 %v2149
        %2168 = vmatprep.subr.bf16.mxu0 0
        %2169 = vmatpush1.bf16.msra.mxu0 %v2150
        %2170 = vmatprep.subr.bf16.mxu0 0
        %2171 = vmatpush1.bf16.msra.mxu0 %v2151
        %2172 = vmatprep.subr.bf16.mxu0 0
        %2173 = vmatpush1.bf16.msra.mxu0 %v2152
        %2174 = vmatprep.subr.bf16.mxu0 0
        %2175 = vmatpush1.bf16.msra.mxu0 %v2153
        %2176 = vmatprep.subr.bf16.mxu0 0
        %2177 = vmatpush1.bf16.msra.mxu0 %v2154
        %2178 = vmatprep.subr.bf16.mxu0 0
        %2179 = vmatpush1.bf16.msra.mxu0 %v2155
        %2180 = vmatprep.subr.bf16.mxu0 0
        %2181 = vmatpush1.bf16.msra.mxu0 0
        %2182 = vmatprep.subr.bf16.mxu0 0
        %2183 = vmatpush1.bf16.msra.mxu0 0
        %2184 = vmatprep.subr.bf16.mxu0 0
        %2185 = vmatpush1.bf16.msra.mxu0 0
        %2186 = vmatprep.subr.bf16.mxu0 0
        %2187 = vmatpush1.bf16.msra.mxu0 0
        %2188 = vmatprep.subr.bf16.mxu0 0
        %2189 = vmatpush1.bf16.msra.mxu0 0
        %2190 = vmatprep.subr.bf16.mxu0 0
        %2191 = vmatpush1.bf16.msra.mxu0 0
        %2192 = vmatprep.subr.bf16.mxu0 0
        %2193 = vmatpush1.bf16.msra.mxu0 0
        %2194 = vmatprep.subr.bf16.mxu0 0
        %2195 = vmatpush1.bf16.msra.mxu0 0
        %2196 = vmatprep.mubr.bf16.mxu0 0
        %2197 = vmatmul.mubr.bf16.gmra.mrb[0].mxu0 %v2108
        %v2198 = vpop.f32.mrb[0].mxu0
        %v2199 = vadd.f32 0.0, %v2198
        %v2200 = vpop.f32.mrb[0].mxu0
        %v2201 = vpop.f32.mrb[0].mxu0
        %v2202 = vadd.f32 0.0, %v2201
        %v2203 = vpop.f32.mrb[0].mxu0
        %2204 = vmatprep.mubr.bf16.mxu0 0
        %2205 = vmatmul.mubr.bf16.gmra.mrb[0].mxu0 %v2109
        %v2206 = vpop.f32.mrb[0].mxu0
        %v2207 = vadd.f32 0.0, %v2206
        %v2208 = vpop.f32.mrb[0].mxu0
        %v2209 = vpop.f32.mrb[0].mxu0
        %v2210 = vadd.f32 0.0, %v2209
        %v2211 = vpop.f32.mrb[0].mxu0
        %2212 = vmatprep.mubr.bf16.mxu0 0
        %2213 = vmatmul.mubr.bf16.gmra.mrb[0].mxu0 %v2110
        %v2214 = vpop.f32.mrb[0].mxu0
        %v2215 = vadd.f32 0.0, %v2214
        %v2216 = vpop.f32.mrb[0].mxu0
        %v2217 = vpop.f32.mrb[0].mxu0
        %v2218 = vadd.f32 0.0, %v2217
        %v2219 = vpop.f32.mrb[0].mxu0
        %2220 = vmatprep.mubr.bf16.mxu0 0
        %2221 = vmatmul.mubr.bf16.gmra.mrb[0].mxu0 %v2111
        %v2222 = vpop.f32.mrb[0].mxu0
        %v2223 = vadd.f32 0.0, %v2222
        %v2224 = vpop.f32.mrb[0].mxu0
        %v2225 = vpop.f32.mrb[0].mxu0
        %v2226 = vadd.f32 0.0, %v2225
        %v2227 = vpop.f32.mrb[0].mxu0
        %2228 = vdwg.mxu0
        %v2229 = vadd.f32 %v2020, %v2199
        %v2230 = vadd.f32 %v2021, %v2202
        %v2231 = vadd.f32 %v2022, %v2207
        %v2232 = vadd.f32 %v2023, %v2210
        %v2233 = vadd.f32 %v2024, %v2215
        %v2234 = vadd.f32 %v2025, %v2218
        %v2235 = vadd.f32 %v2026, %v2223
        %v2236 = vadd.f32 %v2027, %v2226
        %v2237 = vld [vmem:[%s264] sm:$0x1]
        %v2239 = vlaneseq
        %v2240 = vshrl.u32 %v2239, 7
        %v2241 = vsub.s32 0, %v2240
        %v2242 = vrot.slane %v2237, %v2241
        %v2244 = vadd.f32 %v2229, %v2242
        %v2245 = vadd.f32 %v2230, %v2242
        %v2246 = vadd.f32 %v2231, %v2242
        %v2247 = vadd.f32 %v2232, %v2242
        %v2248 = vadd.f32 %v2233, %v2242
        %v2249 = vadd.f32 %v2234, %v2242
        %v2250 = vadd.f32 %v2235, %v2242
        %v2251 = vadd.f32 %v2236, %v2242
        %v2252 = vld [vmem:[%s272] sm:$0xf]
        %v2253 = vld [vmem:[%s272 + $0x4] sm:$0xf]
        %v2254 = vld [vmem:[%s272 + $0x8] sm:$0xf]
        %v2255 = vld [vmem:[%s272 + $0xc] sm:$0xf]
        %v2256 = vld [vmem:[%s272 + $0x10] sm:$0xf]
        %v2257 = vld [vmem:[%s272 + $0x14] sm:$0xf]
        %v2258 = vld [vmem:[%s272 + $0x18] sm:$0xf]
        %v2259 = vld [vmem:[%s272 + $0x1c] sm:$0xf]
        %v2260 = vunpack.c.l.bf16 %v2252
        %v2261 = vunpack.c.l.bf16 %v2253
        %v2262 = vunpack.c.l.bf16 %v2254
        %v2263 = vunpack.c.l.bf16 %v2255
        %v2264 = vunpack.c.l.bf16 %v2256
        %v2265 = vunpack.c.l.bf16 %v2257
        %v2266 = vunpack.c.l.bf16 %v2258
        %v2267 = vunpack.c.l.bf16 %v2259
        %v2268 = vadd.f32 %v2244, %v2260
        %v2269 = vadd.f32 %v2245, %v2261
        %v2270 = vadd.f32 %v2246, %v2262
        %v2271 = vadd.f32 %v2247, %v2263
        %v2272 = vadd.f32 %v2248, %v2264
        %v2273 = vadd.f32 %v2249, %v2265
        %v2274 = vadd.f32 %v2250, %v2266
        %v2275 = vadd.f32 %v2251, %v2267
        %v2276 = vmax.f32 %v2268, 0.0
        %v2277 = vmax.f32 %v2269, 0.0
        %v2278 = vmax.f32 %v2270, 0.0
        %v2279 = vmax.f32 %v2271, 0.0
        %v2280 = vmax.f32 %v2272, 0.0
        %v2281 = vmax.f32 %v2273, 0.0
        %v2282 = vmax.f32 %v2274, 0.0
        %v2283 = vmax.f32 %v2275, 0.0
        %2284 = vst [vmem:[%s252] sm:$0xff] %v2276
        %2285 = vst [vmem:[%s252 + $0x8] sm:$0xff] %v2277
        %2286 = vst [vmem:[%s252 + $0x10] sm:$0xff] %v2278
        %2287 = vst [vmem:[%s252 + $0x18] sm:$0xff] %v2279
        %2288 = vst [vmem:[%s252 + $0x20] sm:$0xff] %v2280
        %2289 = vst [vmem:[%s252 + $0x28] sm:$0xff] %v2281
        %2290 = vst [vmem:[%s252 + $0x30] sm:$0xff] %v2282
        %2291 = vst [vmem:[%s252 + $0x38] sm:$0xff] %v2283
        %s2292 = sand.u32 %s146, 1
        %s2293 = scalar_lea.sflag [#allocation3], %s2292
        %s2294 = sand.u32 %s146, 1
        %s2295 = smul.addr %s2294, 64
        %s2296 = scalar_lea.vmem [#allocation2], %s2295
        // Predicated region
        $region37: #{resblock_forward.5} parent=35 // pred_check
          %p2297 = pneg %p156
        $region38: #{resblock_forward.5} parent=35 // pred_check_branch
          %2299 = sbr.rel (%p2297) target = $region40
        $region39: #{resblock_forward.5} parent=35 // pred_region
          %s2300 = smul.u32 8, %s22
          %s2302 = ssub.s32 1024, 1024
          %2303 = vsyncadd %s2293, %s2302
          %s2304 = sadd.s32 %s23, %s2300
          %s2305 = smul.addr %s2304, 128
          %s2306 = scalar_lea.hbm %s4, %s2305
          %s2307 = sshll.u32 %s2296, 4
          %s2308 = int_to_ptr.vmem [resolvable:$true] %s2307
          %2313 = dma.vmem_to_hbm [thread:$0]  %s2308, 1024, %s2306, %s2293, 128, 128, 8
        $region40: #{resblock_forward.5} parent=35 // pred_fallthru
          _
      $region36: #{resblock_forward.5} parent=5 // pred_fallthru
        _
      %p2314 = scmp.le.s32.totalorder 2, %s13
      // Predicated region
      $region41: #{resblock_forward.5} parent=5 // pred_check
        %p2315 = pneg %p2314
      $region42: #{resblock_forward.5} parent=5 // pred_check_branch
        %2317 = sbr.rel (%p2315) target = $region44
      $region43: #{resblock_forward.5} parent=5 // pred_region
        %s2318 = ssub.s32 %s13, 2
        // Predicated region
        $region45: #{resblock_forward.5} parent=43 // pred_check
          %p2319 = pneg %p162
        $region46: #{resblock_forward.5} parent=43 // pred_check_branch
          %2321 = sbr.rel (%p2319) target = $region48
        $region47: #{resblock_forward.5} parent=43 // pred_region
          %s2322 = sand.u32 %s147, 1
          %s2323 = scalar_lea.sflag [#allocation3], %s2322
          %s2324 = sand.u32 %s147, 1
          %s2325 = smul.addr %s2324, 64
          %s2326 = scalar_lea.vmem [#allocation2], %s2325
          %2327 = dma.done %s2323, 1024
        $region48: #{resblock_forward.5} parent=43 // pred_fallthru
          _
      $region44: #{resblock_forward.5} parent=5 // pred_fallthru
        _
    $region6: #{resblock_forward.5} parent=1 // loop_footer
      %s17 = sadd.s32 1, %s13
    $region7: #{resblock_forward.5} parent=1 // loop_footer_branch
      %12 = sbr.rel target = $region3
    $region8: #{resblock_forward.5} parent=1 // loop_exit
      _
    %2328 = vsyncpa [#allocation3], 1
    %s2329 = scalar_lea.sflag [#allocation3], 1
    %2330 = vsyncpa %s2329, 1

</llo_original>
